<compile_context>
chip_gen: v6e
topology: v6e:2x2x1
jax: 0.10.0
libtpu: 0.0.40
codegen_flags: <defaults>
</compile_context>

<pallas_src>
import jax
import jax.numpy as jnp
from jax.experimental import pallas as pl
from jax.experimental.pallas import tpu as pltpu

DILATED_CH = 16     # dilated_channels
PRED_CH = 128       # pred_channels
SKIP_CH = 2         # skip_channels
QUANT = 256         # target_quant_size
AV_POOL_SIZE = 160
AV_POOL_STRIDE = 80
N_LAYERS = 7


# ---------------------------------------------------------------------------
# Fused kernel: 7 x (dilated gated conv -> conv_skip -> residual) + head.
# One batch element per grid step; everything stays in VMEM / vregs.
# ---------------------------------------------------------------------------
def wavenet_kernel(x_ref, wf_ref, wg_ref, ws_ref, wps_ref,
                   wsk1_ref, bsk1_ref, wsk2_ref, bsk2_ref,
                   wp1_ref, bp1_ref, wp2_ref, bp2_ref, wfct_ref, bfc_ref,
                   t_ref, prob_ref):
    T = x_ref.shape[-1]
    L = (T - AV_POOL_SIZE) // AV_POOL_STRIDE + 1          # AvgPool1d output length

    lane = jax.lax.broadcasted_iota(jnp.int32, (1, T), 1)

    o = x_ref[0]                                          # (1, T) residual stream
    s = jnp.zeros((1, T), jnp.float32)                    # skip accumulator
    gated = []                                            # per-layer (16, T)

    for l in range(N_LAYERS):                             # static -> fully unrolled
        d = 2 ** l
        # causal shift-right by d with zero fill (== left zero-pad of the conv)
        xs = jnp.where(lane >= d, pltpu.roll(o, shift=d, axis=1), 0.0)     # (1, T)
        wf = wf_ref[l]                                    # (16, 2)
        wg = wg_ref[l]                                    # (16, 2)
        # dilated conv k=2, C_in=1: out[c,t] = w[c,0]*o[t-d] + w[c,1]*o[t]  (VPU)
        a = wf[:, 0:1] * xs + wf[:, 1:2] * o              # (16, T)
        g = wg[:, 0:1] * xs + wg[:, 1:2] * o              # (16, T)
        ob = jnp.tanh(a) * jax.nn.sigmoid(g)              # gated activation (16, T)
        gated.append(ob)
        # conv_skip (16 -> 1, k=1) as a sublane reduce (VPU/XLU, not MXU)
        skip = jnp.sum(ws_ref[l] * ob, axis=0, keepdims=True)             # (1, T)
        s = s + skip
        o = o + skip                                      # residual -> next layer in

    # ---- prediction ("y") path: pool once, project once --------------------
    ob_stack = jnp.concatenate(gated, axis=0)             # (7*16, T)
    # AvgPool1d(k=160, s=80) as one matmul against an iota-built (T, L) matrix.
    # TODO(synk): for very large T switch to a chunked time-tile reduce to keep
    # this O(T) instead of O(T*L).
    t_idx = jax.lax.broadcasted_iota(jnp.int32, (T, L), 0)
    j_idx = jax.lax.broadcasted_iota(jnp.int32, (T, L), 1)
    win = j_idx * AV_POOL_STRIDE
    pm = jnp.where((t_idx >= win) & (t_idx < win + AV_POOL_SIZE),
                   jnp.float32(1.0 / AV_POOL_SIZE), jnp.float32(0.0))      # (T, L)
    pooled = jnp.dot(ob_stack, pm, preferred_element_type=jnp.float32)     # (112, L)
    # sum over layers of conv_pred1_l(pool_l) == one stacked (128,112) matmul
    yacc = jnp.dot(wps_ref[...], pooled, preferred_element_type=jnp.float32)  # (128, L)

    # ---- head, skip ("t") path (largest tensor; pure VPU streaming) --------
    sb = jnp.maximum(s, 0.0)                                               # (1, T)
    t1 = jnp.maximum(wsk1_ref[...] * sb + bsk1_ref[...], 0.0)              # (2, T)
    wsk2 = wsk2_ref[...]                                                   # (256, 2)
    t2 = (wsk2[:, 0:1] * t1[0:1, :] + wsk2[:, 1:2] * t1[1:2, :]
          + bsk2_ref[...])                                                 # (256, T)
    t_ref[0] = t2

    # ---- head, prediction path ---------------------------------------------
    yb = jnp.maximum(yacc, 0.0)                                            # (128, L)
    y1 = jnp.maximum(
        jnp.dot(wp1_ref[...], yb, preferred_element_type=jnp.float32)
        + bp1_ref[...], 0.0)                                               # (128, L)
    y2 = jnp.maximum(
        jnp.dot(wp2_ref[...], y1, preferred_element_type=jnp.float32)
        + bp2_ref[...], 0.0)                                               # (1, L)
    logits = (jnp.dot(y2, wfct_ref[...], preferred_element_type=jnp.float32)
              + bfc_ref[...])                                              # (1, C)
    m = jnp.max(logits, axis=1, keepdims=True)
    e = jnp.exp(logits - m)
    prob_ref[0] = e / jnp.sum(e, axis=1, keepdims=True)


# ---------------------------------------------------------------------------
# Wrapper
# ---------------------------------------------------------------------------
def _const_spec(shape):
    zeros = (0,) * len(shape)
    return pl.BlockSpec(shape, lambda b: zeros)


def wavenet_forward(x, params):
    """x: (B, 1, T) float32  ->  (t: (B, 256, T), probs: (B, n_classes))."""
    B, _, T = x.shape
    L = (T - AV_POOL_SIZE) // AV_POOL_STRIDE + 1
    n_classes = params["bfc"].shape[-1]

    weight_args = (params["wf"], params["wg"], params["ws"], params["wp_stack"],
                   params["wsk1"], params["bsk1"], params["wsk2"], params["bsk2"],
                   params["wp1"], params["bp1"], params["wp2"], params["bp2"],
                   params["wfct"], params["bfc"])

    in_specs = ([pl.BlockSpec((1, 1, T), lambda b: (b, 0, 0))]
                + [_const_spec(w.shape) for w in weight_args])
    out_specs = (pl.BlockSpec((1, QUANT, T), lambda b: (b, 0, 0)),
                 pl.BlockSpec((1, 1, n_classes), lambda b: (b, 0, 0)))

    weight_elems = int(sum(int(w.size) for w in weight_args))
    flops = B * (N_LAYERS * (12 * DILATED_CH * T + 4 * T)
                 + 2 * N_LAYERS * DILATED_CH * T * L
                 + 2 * PRED_CH * N_LAYERS * DILATED_CH * L
                 + 8 * QUANT * T
                 + 2 * PRED_CH * PRED_CH * L + 4 * PRED_CH * L
                 + 2 * L * n_classes + 4 * n_classes)
    cost = pl.CostEstimate(
        flops=int(flops),
        transcendentals=int(B * (2 * N_LAYERS * DILATED_CH * T + n_classes)),
        bytes_accessed=int(4 * (B * T + weight_elems
                                + B * QUANT * T + B * n_classes)))

    t, probs = pl.pallas_call(
        wavenet_kernel,
        grid=(B,),
        in_specs=in_specs,
        out_specs=out_specs,
        out_shape=(jax.ShapeDtypeStruct((B, QUANT, T), jnp.float32),
                   jax.ShapeDtypeStruct((B, 1, n_classes), jnp.float32)),
        compiler_params=pltpu.CompilerParams(dimension_semantics=("parallel",)),
        cost_estimate=cost,
    )(x, *weight_args)
    return t, probs[:, 0, :]


def init_params(key, n_classes, n_samples):
    L = (n_samples - AV_POOL_SIZE) // AV_POOL_STRIDE + 1

    def u(k, shape, fan_in):
        bound = 1.0 / float(fan_in) ** 0.5
        return jax.random.uniform(k, shape, jnp.float32, -bound, bound)

    keys = jax.random.split(key, N_LAYERS + 1)
    wf, wg, ws, wp = [], [], [], []
    for i in range(N_LAYERS):
        kf, kg, ks, kp = jax.random.split(keys[i], 4)
        wf.append(u(kf, (DILATED_CH, 2), 2))                 # Conv1d(1,16,k=2), no bias
        wg.append(u(kg, (DILATED_CH, 2), 2))                 # Conv1d(1,16,k=2), no bias
        ws.append(u(ks, (DILATED_CH, 1), DILATED_CH))        # Conv1d(16,1,k=1) (transposed)
        wp.append(u(kp, (PRED_CH, DILATED_CH), DILATED_CH))  # Conv1d(16,128,k=1), no bias
    hk = jax.random.split(keys[-1], 10)
    return {
        "wf": jnp.stack(wf),                       # (7, 16, 2)
        "wg": jnp.stack(wg),                       # (7, 16, 2)
        "ws": jnp.stack(ws),                       # (7, 16, 1)
        "wp_stack": jnp.concatenate(wp, axis=1),   # (128, 7*16) stacked conv_pred1
        "wsk1": u(hk[0], (SKIP_CH, 1), 1),         # Conv1d(1,2,k=1)
        "bsk1": u(hk[1], (SKIP_CH, 1), 1),
        "wsk2": u(hk[2], (QUANT, SKIP_CH), SKIP_CH),   # Conv1d(2,256,k=1)
        "bsk2": u(hk[3], (QUANT, 1), SKIP_CH),
        "wp1": u(hk[4], (PRED_CH, PRED_CH), PRED_CH),  # Conv1d(128,128,k=1)
        "bp1": u(hk[5], (PRED_CH, 1), PRED_CH),
        "wp2": u(hk[6], (1, PRED_CH), PRED_CH),        # Conv1d(128,1,k=1)
        "bp2": u(hk[7], (1, 1), PRED_CH),
        "wfct": u(hk[8], (L, n_classes), L),           # fc1 weight (transposed)
        "bfc": u(hk[9], (1, n_classes), L),
    }


if __name__ == "__main__":
    B, n_classes, n_samples = 2, 8, 640        # 640 = 5*128 lanes; L = 7 pooled steps
    key = jax.random.PRNGKey(0)
    k_x, k_p = jax.random.split(key)
    x = jax.random.normal(k_x, (B, 1, n_samples), dtype=jnp.float32)
    params = init_params(k_p, n_classes, n_samples)

    fwd = jax.jit(wavenet_forward)
    t_out, probs = fwd(x, params)
    jax.block_until_ready((t_out, probs))

    assert t_out.shape == (B, QUANT, n_samples), t_out.shape
    assert probs.shape == (B, n_classes), probs.shape
    assert bool(jnp.all(jnp.isfinite(t_out))) and bool(jnp.all(jnp.isfinite(probs)))
    print("KERNEL_OK")
</pallas_src>

<mosaic_0001>
module attributes {stable_mosaic.version = 11 : i64} {
  func.func @wavenet_kernel(%arg0: i32, %arg1: memref<1x1x640xf32, #tpu.memory_space<vmem>>, %arg2: memref<7x16x2xf32, #tpu.memory_space<vmem>>, %arg3: memref<7x16x2xf32, #tpu.memory_space<vmem>>, %arg4: memref<7x16x1xf32, #tpu.memory_space<vmem>>, %arg5: memref<128x112xf32, #tpu.memory_space<vmem>>, %arg6: memref<2x1xf32, #tpu.memory_space<vmem>>, %arg7: memref<2x1xf32, #tpu.memory_space<vmem>>, %arg8: memref<256x2xf32, #tpu.memory_space<vmem>>, %arg9: memref<256x1xf32, #tpu.memory_space<vmem>>, %arg10: memref<128x128xf32, #tpu.memory_space<vmem>>, %arg11: memref<128x1xf32, #tpu.memory_space<vmem>>, %arg12: memref<1x128xf32, #tpu.memory_space<vmem>>, %arg13: memref<1x1xf32, #tpu.memory_space<vmem>>, %arg14: memref<7x8xf32, #tpu.memory_space<vmem>>, %arg15: memref<1x8xf32, #tpu.memory_space<vmem>>, %arg16: memref<1x256x640xf32, #tpu.memory_space<vmem>>, %arg17: memref<1x1x8xf32, #tpu.memory_space<vmem>>) attributes {dimension_semantics = [#tpu.dimension_semantics<parallel>], iteration_bounds = array<i64: 2>, scalar_prefetch = 0 : i64, scratch_operands = 0 : i64, tpu.core_type = #tpu.core_type<tc>, window_params = [{transform_indices = @transform_0, window_bounds = array<i64: 1, 1, 640>}, {pipeline_mode = #tpu.pipeline_mode<synchronous>, transform_indices = @transform_1, window_bounds = array<i64: 7, 16, 2>}, {pipeline_mode = #tpu.pipeline_mode<synchronous>, transform_indices = @transform_2, window_bounds = array<i64: 7, 16, 2>}, {pipeline_mode = #tpu.pipeline_mode<synchronous>, transform_indices = @transform_3, window_bounds = array<i64: 7, 16, 1>}, {pipeline_mode = #tpu.pipeline_mode<synchronous>, transform_indices = @transform_4, window_bounds = array<i64: 128, 112>}, {pipeline_mode = #tpu.pipeline_mode<synchronous>, transform_indices = @transform_5, window_bounds = array<i64: 2, 1>}, {pipeline_mode = #tpu.pipeline_mode<synchronous>, transform_indices = @transform_6, window_bounds = array<i64: 2, 1>}, {pipeline_mode = #tpu.pipeline_mode<synchronous>, transform_indices = @transform_7, window_bounds = array<i64: 256, 2>}, {pipeline_mode = #tpu.pipeline_mode<synchronous>, transform_indices = @transform_8, window_bounds = array<i64: 256, 1>}, {pipeline_mode = #tpu.pipeline_mode<synchronous>, transform_indices = @transform_9, window_bounds = array<i64: 128, 128>}, {pipeline_mode = #tpu.pipeline_mode<synchronous>, transform_indices = @transform_10, window_bounds = array<i64: 128, 1>}, {pipeline_mode = #tpu.pipeline_mode<synchronous>, transform_indices = @transform_11, window_bounds = array<i64: 1, 128>}, {pipeline_mode = #tpu.pipeline_mode<synchronous>, transform_indices = @transform_12, window_bounds = array<i64: 1, 1>}, {pipeline_mode = #tpu.pipeline_mode<synchronous>, transform_indices = @transform_13, window_bounds = array<i64: 7, 8>}, {pipeline_mode = #tpu.pipeline_mode<synchronous>, transform_indices = @transform_14, window_bounds = array<i64: 1, 8>}, {transform_indices = @transform_15, window_bounds = array<i64: 1, 256, 640>}, {transform_indices = @transform_16, window_bounds = array<i64: 1, 1, 8>}]} {
    %0 = tpu.iota {dimensions = array<i32: 1>} : vector<1x640xi32>
    %c0 = arith.constant 0 : index
    %c0_0 = arith.constant 0 : index
    %c0_1 = arith.constant 0 : index
    %1 = vector.load %arg1[%c0, %c0_0, %c0_1] : memref<1x1x640xf32, #tpu.memory_space<vmem>>, vector<1x1x640xf32>
    %2 = vector.shape_cast %1 : vector<1x1x640xf32> to vector<1x640xf32>
    %cst = arith.constant 0.000000e+00 : f32
    %3 = vector.broadcast %cst : f32 to vector<1x640xf32>
    %c1_i32 = arith.constant 1 : i32
    %4 = vector.broadcast %c1_i32 : i32 to vector<1x640xi32>
    %5 = arith.cmpi sge, %0, %4 : vector<1x640xi32>
    %c1_i32_2 = arith.constant 1 : i32
    %6 = tpu.dynamic_rotate %2 by %c1_i32_2 dim 1 : vector<1x640xf32>, i32 -> vector<1x640xf32>
    %cst_3 = arith.constant 0.000000e+00 : f32
    %7 = vector.broadcast %cst_3 : f32 to vector<1x640xf32>
    %8 = arith.select %5, %6, %7 : vector<1x640xi1>, vector<1x640xf32>
    %c0_4 = arith.constant 0 : index
    %c0_5 = arith.constant 0 : index
    %c0_6 = arith.constant 0 : index
    %9 = vector.load %arg2[%c0_4, %c0_5, %c0_6] : memref<7x16x2xf32, #tpu.memory_space<vmem>>, vector<1x16x2xf32>
    %10 = vector.shape_cast %9 : vector<1x16x2xf32> to vector<16x2xf32>
    %c0_7 = arith.constant 0 : index
    %c0_8 = arith.constant 0 : index
    %c0_9 = arith.constant 0 : index
    %11 = vector.load %arg3[%c0_7, %c0_8, %c0_9] : memref<7x16x2xf32, #tpu.memory_space<vmem>>, vector<1x16x2xf32>
    %12 = vector.shape_cast %11 : vector<1x16x2xf32> to vector<16x2xf32>
    %13 = vector.extract_strided_slice %10 {offsets = [0, 0], sizes = [16, 1], strides = [1, 1]} : vector<16x2xf32> to vector<16x1xf32>
    %14 = vector.broadcast %13 : vector<16x1xf32> to vector<16x640xf32>
    %15 = vector.broadcast %8 : vector<1x640xf32> to vector<16x640xf32>
    %16 = arith.mulf %14, %15 : vector<16x640xf32>
    %17 = vector.extract_strided_slice %10 {offsets = [0, 1], sizes = [16, 1], strides = [1, 1]} : vector<16x2xf32> to vector<16x1xf32>
    %18 = vector.broadcast %17 : vector<16x1xf32> to vector<16x640xf32>
    %19 = vector.broadcast %2 : vector<1x640xf32> to vector<16x640xf32>
    %20 = arith.mulf %18, %19 : vector<16x640xf32>
    %21 = arith.addf %16, %20 : vector<16x640xf32>
    %22 = vector.extract_strided_slice %12 {offsets = [0, 0], sizes = [16, 1], strides = [1, 1]} : vector<16x2xf32> to vector<16x1xf32>
    %23 = vector.broadcast %22 : vector<16x1xf32> to vector<16x640xf32>
    %24 = vector.broadcast %8 : vector<1x640xf32> to vector<16x640xf32>
    %25 = arith.mulf %23, %24 : vector<16x640xf32>
    %26 = vector.extract_strided_slice %12 {offsets = [0, 1], sizes = [16, 1], strides = [1, 1]} : vector<16x2xf32> to vector<16x1xf32>
    %27 = vector.broadcast %26 : vector<16x1xf32> to vector<16x640xf32>
    %28 = vector.broadcast %2 : vector<1x640xf32> to vector<16x640xf32>
    %29 = arith.mulf %27, %28 : vector<16x640xf32>
    %30 = arith.addf %25, %29 : vector<16x640xf32>
    %31 = math.tanh %21 : vector<16x640xf32>
    %32 = arith.negf %30 : vector<16x640xf32>
    %33 = math.exp %32 : vector<16x640xf32>
    %cst_10 = arith.constant 1.000000e+00 : f32
    %34 = vector.broadcast %cst_10 : f32 to vector<16x640xf32>
    %35 = arith.addf %34, %33 : vector<16x640xf32>
    %36 = arith.divf %34, %35 : vector<16x640xf32>
    %37 = arith.mulf %31, %36 : vector<16x640xf32>
    %c0_11 = arith.constant 0 : index
    %c0_12 = arith.constant 0 : index
    %c0_13 = arith.constant 0 : index
    %38 = vector.load %arg4[%c0_11, %c0_12, %c0_13] : memref<7x16x1xf32, #tpu.memory_space<vmem>>, vector<1x16x1xf32>
    %39 = vector.shape_cast %38 : vector<1x16x1xf32> to vector<16x1xf32>
    %40 = vector.broadcast %39 : vector<16x1xf32> to vector<16x640xf32>
    %41 = arith.mulf %40, %37 : vector<16x640xf32>
    %cst_14 = arith.constant dense<0.000000e+00> : vector<640xf32>
    %42 = vector.multi_reduction <add>, %41, %cst_14 [0] : vector<16x640xf32> to vector<640xf32>
    %43 = vector.shape_cast %42 : vector<640xf32> to vector<1x640xf32>
    %44 = arith.addf %3, %43 : vector<1x640xf32>
    %45 = arith.addf %2, %43 : vector<1x640xf32>
    %c2_i32 = arith.constant 2 : i32
    %46 = vector.broadcast %c2_i32 : i32 to vector<1x640xi32>
    %47 = arith.cmpi sge, %0, %46 : vector<1x640xi32>
    %c2_i32_15 = arith.constant 2 : i32
    %48 = tpu.dynamic_rotate %45 by %c2_i32_15 dim 1 : vector<1x640xf32>, i32 -> vector<1x640xf32>
    %cst_16 = arith.constant 0.000000e+00 : f32
    %49 = vector.broadcast %cst_16 : f32 to vector<1x640xf32>
    %50 = arith.select %47, %48, %49 : vector<1x640xi1>, vector<1x640xf32>
    %c1 = arith.constant 1 : index
    %c0_17 = arith.constant 0 : index
    %c0_18 = arith.constant 0 : index
    %51 = vector.load %arg2[%c1, %c0_17, %c0_18] : memref<7x16x2xf32, #tpu.memory_space<vmem>>, vector<1x16x2xf32>
    %52 = vector.shape_cast %51 : vector<1x16x2xf32> to vector<16x2xf32>
    %c1_19 = arith.constant 1 : index
    %c0_20 = arith.constant 0 : index
    %c0_21 = arith.constant 0 : index
    %53 = vector.load %arg3[%c1_19, %c0_20, %c0_21] : memref<7x16x2xf32, #tpu.memory_space<vmem>>, vector<1x16x2xf32>
    %54 = vector.shape_cast %53 : vector<1x16x2xf32> to vector<16x2xf32>
    %55 = vector.extract_strided_slice %52 {offsets = [0, 0], sizes = [16, 1], strides = [1, 1]} : vector<16x2xf32> to vector<16x1xf32>
    %56 = vector.broadcast %55 : vector<16x1xf32> to vector<16x640xf32>
    %57 = vector.broadcast %50 : vector<1x640xf32> to vector<16x640xf32>
    %58 = arith.mulf %56, %57 : vector<16x640xf32>
    %59 = vector.extract_strided_slice %52 {offsets = [0, 1], sizes = [16, 1], strides = [1, 1]} : vector<16x2xf32> to vector<16x1xf32>
    %60 = vector.broadcast %59 : vector<16x1xf32> to vector<16x640xf32>
    %61 = vector.broadcast %45 : vector<1x640xf32> to vector<16x640xf32>
    %62 = arith.mulf %60, %61 : vector<16x640xf32>
    %63 = arith.addf %58, %62 : vector<16x640xf32>
    %64 = vector.extract_strided_slice %54 {offsets = [0, 0], sizes = [16, 1], strides = [1, 1]} : vector<16x2xf32> to vector<16x1xf32>
    %65 = vector.broadcast %64 : vector<16x1xf32> to vector<16x640xf32>
    %66 = vector.broadcast %50 : vector<1x640xf32> to vector<16x640xf32>
    %67 = arith.mulf %65, %66 : vector<16x640xf32>
    %68 = vector.extract_strided_slice %54 {offsets = [0, 1], sizes = [16, 1], strides = [1, 1]} : vector<16x2xf32> to vector<16x1xf32>
    %69 = vector.broadcast %68 : vector<16x1xf32> to vector<16x640xf32>
    %70 = vector.broadcast %45 : vector<1x640xf32> to vector<16x640xf32>
    %71 = arith.mulf %69, %70 : vector<16x640xf32>
    %72 = arith.addf %67, %71 : vector<16x640xf32>
    %73 = math.tanh %63 : vector<16x640xf32>
    %74 = arith.negf %72 : vector<16x640xf32>
    %75 = math.exp %74 : vector<16x640xf32>
    %cst_22 = arith.constant 1.000000e+00 : f32
    %76 = vector.broadcast %cst_22 : f32 to vector<16x640xf32>
    %77 = arith.addf %76, %75 : vector<16x640xf32>
    %78 = arith.divf %76, %77 : vector<16x640xf32>
    %79 = arith.mulf %73, %78 : vector<16x640xf32>
    %c1_23 = arith.constant 1 : index
    %c0_24 = arith.constant 0 : index
    %c0_25 = arith.constant 0 : index
    %80 = vector.load %arg4[%c1_23, %c0_24, %c0_25] : memref<7x16x1xf32, #tpu.memory_space<vmem>>, vector<1x16x1xf32>
    %81 = vector.shape_cast %80 : vector<1x16x1xf32> to vector<16x1xf32>
    %82 = vector.broadcast %81 : vector<16x1xf32> to vector<16x640xf32>
    %83 = arith.mulf %82, %79 : vector<16x640xf32>
    %cst_26 = arith.constant dense<0.000000e+00> : vector<640xf32>
    %84 = vector.multi_reduction <add>, %83, %cst_26 [0] : vector<16x640xf32> to vector<640xf32>
    %85 = vector.shape_cast %84 : vector<640xf32> to vector<1x640xf32>
    %86 = arith.addf %44, %85 : vector<1x640xf32>
    %87 = arith.addf %45, %85 : vector<1x640xf32>
    %c4_i32 = arith.constant 4 : i32
    %88 = vector.broadcast %c4_i32 : i32 to vector<1x640xi32>
    %89 = arith.cmpi sge, %0, %88 : vector<1x640xi32>
    %c4_i32_27 = arith.constant 4 : i32
    %90 = tpu.dynamic_rotate %87 by %c4_i32_27 dim 1 : vector<1x640xf32>, i32 -> vector<1x640xf32>
    %cst_28 = arith.constant 0.000000e+00 : f32
    %91 = vector.broadcast %cst_28 : f32 to vector<1x640xf32>
    %92 = arith.select %89, %90, %91 : vector<1x640xi1>, vector<1x640xf32>
    %c2 = arith.constant 2 : index
    %c0_29 = arith.constant 0 : index
    %c0_30 = arith.constant 0 : index
    %93 = vector.load %arg2[%c2, %c0_29, %c0_30] : memref<7x16x2xf32, #tpu.memory_space<vmem>>, vector<1x16x2xf32>
    %94 = vector.shape_cast %93 : vector<1x16x2xf32> to vector<16x2xf32>
    %c2_31 = arith.constant 2 : index
    %c0_32 = arith.constant 0 : index
    %c0_33 = arith.constant 0 : index
    %95 = vector.load %arg3[%c2_31, %c0_32, %c0_33] : memref<7x16x2xf32, #tpu.memory_space<vmem>>, vector<1x16x2xf32>
    %96 = vector.shape_cast %95 : vector<1x16x2xf32> to vector<16x2xf32>
    %97 = vector.extract_strided_slice %94 {offsets = [0, 0], sizes = [16, 1], strides = [1, 1]} : vector<16x2xf32> to vector<16x1xf32>
    %98 = vector.broadcast %97 : vector<16x1xf32> to vector<16x640xf32>
    %99 = vector.broadcast %92 : vector<1x640xf32> to vector<16x640xf32>
    %100 = arith.mulf %98, %99 : vector<16x640xf32>
    %101 = vector.extract_strided_slice %94 {offsets = [0, 1], sizes = [16, 1], strides = [1, 1]} : vector<16x2xf32> to vector<16x1xf32>
    %102 = vector.broadcast %101 : vector<16x1xf32> to vector<16x640xf32>
    %103 = vector.broadcast %87 : vector<1x640xf32> to vector<16x640xf32>
    %104 = arith.mulf %102, %103 : vector<16x640xf32>
    %105 = arith.addf %100, %104 : vector<16x640xf32>
    %106 = vector.extract_strided_slice %96 {offsets = [0, 0], sizes = [16, 1], strides = [1, 1]} : vector<16x2xf32> to vector<16x1xf32>
    %107 = vector.broadcast %106 : vector<16x1xf32> to vector<16x640xf32>
    %108 = vector.broadcast %92 : vector<1x640xf32> to vector<16x640xf32>
    %109 = arith.mulf %107, %108 : vector<16x640xf32>
    %110 = vector.extract_strided_slice %96 {offsets = [0, 1], sizes = [16, 1], strides = [1, 1]} : vector<16x2xf32> to vector<16x1xf32>
    %111 = vector.broadcast %110 : vector<16x1xf32> to vector<16x640xf32>
    %112 = vector.broadcast %87 : vector<1x640xf32> to vector<16x640xf32>
    %113 = arith.mulf %111, %112 : vector<16x640xf32>
    %114 = arith.addf %109, %113 : vector<16x640xf32>
    %115 = math.tanh %105 : vector<16x640xf32>
    %116 = arith.negf %114 : vector<16x640xf32>
    %117 = math.exp %116 : vector<16x640xf32>
    %cst_34 = arith.constant 1.000000e+00 : f32
    %118 = vector.broadcast %cst_34 : f32 to vector<16x640xf32>
    %119 = arith.addf %118, %117 : vector<16x640xf32>
    %120 = arith.divf %118, %119 : vector<16x640xf32>
    %121 = arith.mulf %115, %120 : vector<16x640xf32>
    %c2_35 = arith.constant 2 : index
    %c0_36 = arith.constant 0 : index
    %c0_37 = arith.constant 0 : index
    %122 = vector.load %arg4[%c2_35, %c0_36, %c0_37] : memref<7x16x1xf32, #tpu.memory_space<vmem>>, vector<1x16x1xf32>
    %123 = vector.shape_cast %122 : vector<1x16x1xf32> to vector<16x1xf32>
    %124 = vector.broadcast %123 : vector<16x1xf32> to vector<16x640xf32>
    %125 = arith.mulf %124, %121 : vector<16x640xf32>
    %cst_38 = arith.constant dense<0.000000e+00> : vector<640xf32>
    %126 = vector.multi_reduction <add>, %125, %cst_38 [0] : vector<16x640xf32> to vector<640xf32>
    %127 = vector.shape_cast %126 : vector<640xf32> to vector<1x640xf32>
    %128 = arith.addf %86, %127 : vector<1x640xf32>
    %129 = arith.addf %87, %127 : vector<1x640xf32>
    %c8_i32 = arith.constant 8 : i32
    %130 = vector.broadcast %c8_i32 : i32 to vector<1x640xi32>
    %131 = arith.cmpi sge, %0, %130 : vector<1x640xi32>
    %c8_i32_39 = arith.constant 8 : i32
    %132 = tpu.dynamic_rotate %129 by %c8_i32_39 dim 1 : vector<1x640xf32>, i32 -> vector<1x640xf32>
    %cst_40 = arith.constant 0.000000e+00 : f32
    %133 = vector.broadcast %cst_40 : f32 to vector<1x640xf32>
    %134 = arith.select %131, %132, %133 : vector<1x640xi1>, vector<1x640xf32>
    %c3 = arith.constant 3 : index
    %c0_41 = arith.constant 0 : index
    %c0_42 = arith.constant 0 : index
    %135 = vector.load %arg2[%c3, %c0_41, %c0_42] : memref<7x16x2xf32, #tpu.memory_space<vmem>>, vector<1x16x2xf32>
    %136 = vector.shape_cast %135 : vector<1x16x2xf32> to vector<16x2xf32>
    %c3_43 = arith.constant 3 : index
    %c0_44 = arith.constant 0 : index
    %c0_45 = arith.constant 0 : index
    %137 = vector.load %arg3[%c3_43, %c0_44, %c0_45] : memref<7x16x2xf32, #tpu.memory_space<vmem>>, vector<1x16x2xf32>
    %138 = vector.shape_cast %137 : vector<1x16x2xf32> to vector<16x2xf32>
    %139 = vector.extract_strided_slice %136 {offsets = [0, 0], sizes = [16, 1], strides = [1, 1]} : vector<16x2xf32> to vector<16x1xf32>
    %140 = vector.broadcast %139 : vector<16x1xf32> to vector<16x640xf32>
    %141 = vector.broadcast %134 : vector<1x640xf32> to vector<16x640xf32>
    %142 = arith.mulf %140, %141 : vector<16x640xf32>
    %143 = vector.extract_strided_slice %136 {offsets = [0, 1], sizes = [16, 1], strides = [1, 1]} : vector<16x2xf32> to vector<16x1xf32>
    %144 = vector.broadcast %143 : vector<16x1xf32> to vector<16x640xf32>
    %145 = vector.broadcast %129 : vector<1x640xf32> to vector<16x640xf32>
    %146 = arith.mulf %144, %145 : vector<16x640xf32>
    %147 = arith.addf %142, %146 : vector<16x640xf32>
    %148 = vector.extract_strided_slice %138 {offsets = [0, 0], sizes = [16, 1], strides = [1, 1]} : vector<16x2xf32> to vector<16x1xf32>
    %149 = vector.broadcast %148 : vector<16x1xf32> to vector<16x640xf32>
    %150 = vector.broadcast %134 : vector<1x640xf32> to vector<16x640xf32>
    %151 = arith.mulf %149, %150 : vector<16x640xf32>
    %152 = vector.extract_strided_slice %138 {offsets = [0, 1], sizes = [16, 1], strides = [1, 1]} : vector<16x2xf32> to vector<16x1xf32>
    %153 = vector.broadcast %152 : vector<16x1xf32> to vector<16x640xf32>
    %154 = vector.broadcast %129 : vector<1x640xf32> to vector<16x640xf32>
    %155 = arith.mulf %153, %154 : vector<16x640xf32>
    %156 = arith.addf %151, %155 : vector<16x640xf32>
    %157 = math.tanh %147 : vector<16x640xf32>
    %158 = arith.negf %156 : vector<16x640xf32>
    %159 = math.exp %158 : vector<16x640xf32>
    %cst_46 = arith.constant 1.000000e+00 : f32
    %160 = vector.broadcast %cst_46 : f32 to vector<16x640xf32>
    %161 = arith.addf %160, %159 : vector<16x640xf32>
    %162 = arith.divf %160, %161 : vector<16x640xf32>
    %163 = arith.mulf %157, %162 : vector<16x640xf32>
    %c3_47 = arith.constant 3 : index
    %c0_48 = arith.constant 0 : index
    %c0_49 = arith.constant 0 : index
    %164 = vector.load %arg4[%c3_47, %c0_48, %c0_49] : memref<7x16x1xf32, #tpu.memory_space<vmem>>, vector<1x16x1xf32>
    %165 = vector.shape_cast %164 : vector<1x16x1xf32> to vector<16x1xf32>
    %166 = vector.broadcast %165 : vector<16x1xf32> to vector<16x640xf32>
    %167 = arith.mulf %166, %163 : vector<16x640xf32>
    %cst_50 = arith.constant dense<0.000000e+00> : vector<640xf32>
    %168 = vector.multi_reduction <add>, %167, %cst_50 [0] : vector<16x640xf32> to vector<640xf32>
    %169 = vector.shape_cast %168 : vector<640xf32> to vector<1x640xf32>
    %170 = arith.addf %128, %169 : vector<1x640xf32>
    %171 = arith.addf %129, %169 : vector<1x640xf32>
    %c16_i32 = arith.constant 16 : i32
    %172 = vector.broadcast %c16_i32 : i32 to vector<1x640xi32>
    %173 = arith.cmpi sge, %0, %172 : vector<1x640xi32>
    %c16_i32_51 = arith.constant 16 : i32
    %174 = tpu.dynamic_rotate %171 by %c16_i32_51 dim 1 : vector<1x640xf32>, i32 -> vector<1x640xf32>
    %cst_52 = arith.constant 0.000000e+00 : f32
    %175 = vector.broadcast %cst_52 : f32 to vector<1x640xf32>
    %176 = arith.select %173, %174, %175 : vector<1x640xi1>, vector<1x640xf32>
    %c4 = arith.constant 4 : index
    %c0_53 = arith.constant 0 : index
    %c0_54 = arith.constant 0 : index
    %177 = vector.load %arg2[%c4, %c0_53, %c0_54] : memref<7x16x2xf32, #tpu.memory_space<vmem>>, vector<1x16x2xf32>
    %178 = vector.shape_cast %177 : vector<1x16x2xf32> to vector<16x2xf32>
    %c4_55 = arith.constant 4 : index
    %c0_56 = arith.constant 0 : index
    %c0_57 = arith.constant 0 : index
    %179 = vector.load %arg3[%c4_55, %c0_56, %c0_57] : memref<7x16x2xf32, #tpu.memory_space<vmem>>, vector<1x16x2xf32>
    %180 = vector.shape_cast %179 : vector<1x16x2xf32> to vector<16x2xf32>
    %181 = vector.extract_strided_slice %178 {offsets = [0, 0], sizes = [16, 1], strides = [1, 1]} : vector<16x2xf32> to vector<16x1xf32>
    %182 = vector.broadcast %181 : vector<16x1xf32> to vector<16x640xf32>
    %183 = vector.broadcast %176 : vector<1x640xf32> to vector<16x640xf32>
    %184 = arith.mulf %182, %183 : vector<16x640xf32>
    %185 = vector.extract_strided_slice %178 {offsets = [0, 1], sizes = [16, 1], strides = [1, 1]} : vector<16x2xf32> to vector<16x1xf32>
    %186 = vector.broadcast %185 : vector<16x1xf32> to vector<16x640xf32>
    %187 = vector.broadcast %171 : vector<1x640xf32> to vector<16x640xf32>
    %188 = arith.mulf %186, %187 : vector<16x640xf32>
    %189 = arith.addf %184, %188 : vector<16x640xf32>
    %190 = vector.extract_strided_slice %180 {offsets = [0, 0], sizes = [16, 1], strides = [1, 1]} : vector<16x2xf32> to vector<16x1xf32>
    %191 = vector.broadcast %190 : vector<16x1xf32> to vector<16x640xf32>
    %192 = vector.broadcast %176 : vector<1x640xf32> to vector<16x640xf32>
    %193 = arith.mulf %191, %192 : vector<16x640xf32>
    %194 = vector.extract_strided_slice %180 {offsets = [0, 1], sizes = [16, 1], strides = [1, 1]} : vector<16x2xf32> to vector<16x1xf32>
    %195 = vector.broadcast %194 : vector<16x1xf32> to vector<16x640xf32>
    %196 = vector.broadcast %171 : vector<1x640xf32> to vector<16x640xf32>
    %197 = arith.mulf %195, %196 : vector<16x640xf32>
    %198 = arith.addf %193, %197 : vector<16x640xf32>
    %199 = math.tanh %189 : vector<16x640xf32>
    %200 = arith.negf %198 : vector<16x640xf32>
    %201 = math.exp %200 : vector<16x640xf32>
    %cst_58 = arith.constant 1.000000e+00 : f32
    %202 = vector.broadcast %cst_58 : f32 to vector<16x640xf32>
    %203 = arith.addf %202, %201 : vector<16x640xf32>
    %204 = arith.divf %202, %203 : vector<16x640xf32>
    %205 = arith.mulf %199, %204 : vector<16x640xf32>
    %c4_59 = arith.constant 4 : index
    %c0_60 = arith.constant 0 : index
    %c0_61 = arith.constant 0 : index
    %206 = vector.load %arg4[%c4_59, %c0_60, %c0_61] : memref<7x16x1xf32, #tpu.memory_space<vmem>>, vector<1x16x1xf32>
    %207 = vector.shape_cast %206 : vector<1x16x1xf32> to vector<16x1xf32>
    %208 = vector.broadcast %207 : vector<16x1xf32> to vector<16x640xf32>
    %209 = arith.mulf %208, %205 : vector<16x640xf32>
    %cst_62 = arith.constant dense<0.000000e+00> : vector<640xf32>
    %210 = vector.multi_reduction <add>, %209, %cst_62 [0] : vector<16x640xf32> to vector<640xf32>
    %211 = vector.shape_cast %210 : vector<640xf32> to vector<1x640xf32>
    %212 = arith.addf %170, %211 : vector<1x640xf32>
    %213 = arith.addf %171, %211 : vector<1x640xf32>
    %c32_i32 = arith.constant 32 : i32
    %214 = vector.broadcast %c32_i32 : i32 to vector<1x640xi32>
    %215 = arith.cmpi sge, %0, %214 : vector<1x640xi32>
    %c32_i32_63 = arith.constant 32 : i32
    %216 = tpu.dynamic_rotate %213 by %c32_i32_63 dim 1 : vector<1x640xf32>, i32 -> vector<1x640xf32>
    %cst_64 = arith.constant 0.000000e+00 : f32
    %217 = vector.broadcast %cst_64 : f32 to vector<1x640xf32>
    %218 = arith.select %215, %216, %217 : vector<1x640xi1>, vector<1x640xf32>
    %c5 = arith.constant 5 : index
    %c0_65 = arith.constant 0 : index
    %c0_66 = arith.constant 0 : index
    %219 = vector.load %arg2[%c5, %c0_65, %c0_66] : memref<7x16x2xf32, #tpu.memory_space<vmem>>, vector<1x16x2xf32>
    %220 = vector.shape_cast %219 : vector<1x16x2xf32> to vector<16x2xf32>
    %c5_67 = arith.constant 5 : index
    %c0_68 = arith.constant 0 : index
    %c0_69 = arith.constant 0 : index
    %221 = vector.load %arg3[%c5_67, %c0_68, %c0_69] : memref<7x16x2xf32, #tpu.memory_space<vmem>>, vector<1x16x2xf32>
    %222 = vector.shape_cast %221 : vector<1x16x2xf32> to vector<16x2xf32>
    %223 = vector.extract_strided_slice %220 {offsets = [0, 0], sizes = [16, 1], strides = [1, 1]} : vector<16x2xf32> to vector<16x1xf32>
    %224 = vector.broadcast %223 : vector<16x1xf32> to vector<16x640xf32>
    %225 = vector.broadcast %218 : vector<1x640xf32> to vector<16x640xf32>
    %226 = arith.mulf %224, %225 : vector<16x640xf32>
    %227 = vector.extract_strided_slice %220 {offsets = [0, 1], sizes = [16, 1], strides = [1, 1]} : vector<16x2xf32> to vector<16x1xf32>
    %228 = vector.broadcast %227 : vector<16x1xf32> to vector<16x640xf32>
    %229 = vector.broadcast %213 : vector<1x640xf32> to vector<16x640xf32>
    %230 = arith.mulf %228, %229 : vector<16x640xf32>
    %231 = arith.addf %226, %230 : vector<16x640xf32>
    %232 = vector.extract_strided_slice %222 {offsets = [0, 0], sizes = [16, 1], strides = [1, 1]} : vector<16x2xf32> to vector<16x1xf32>
    %233 = vector.broadcast %232 : vector<16x1xf32> to vector<16x640xf32>
    %234 = vector.broadcast %218 : vector<1x640xf32> to vector<16x640xf32>
    %235 = arith.mulf %233, %234 : vector<16x640xf32>
    %236 = vector.extract_strided_slice %222 {offsets = [0, 1], sizes = [16, 1], strides = [1, 1]} : vector<16x2xf32> to vector<16x1xf32>
    %237 = vector.broadcast %236 : vector<16x1xf32> to vector<16x640xf32>
    %238 = vector.broadcast %213 : vector<1x640xf32> to vector<16x640xf32>
    %239 = arith.mulf %237, %238 : vector<16x640xf32>
    %240 = arith.addf %235, %239 : vector<16x640xf32>
    %241 = math.tanh %231 : vector<16x640xf32>
    %242 = arith.negf %240 : vector<16x640xf32>
    %243 = math.exp %242 : vector<16x640xf32>
    %cst_70 = arith.constant 1.000000e+00 : f32
    %244 = vector.broadcast %cst_70 : f32 to vector<16x640xf32>
    %245 = arith.addf %244, %243 : vector<16x640xf32>
    %246 = arith.divf %244, %245 : vector<16x640xf32>
    %247 = arith.mulf %241, %246 : vector<16x640xf32>
    %c5_71 = arith.constant 5 : index
    %c0_72 = arith.constant 0 : index
    %c0_73 = arith.constant 0 : index
    %248 = vector.load %arg4[%c5_71, %c0_72, %c0_73] : memref<7x16x1xf32, #tpu.memory_space<vmem>>, vector<1x16x1xf32>
    %249 = vector.shape_cast %248 : vector<1x16x1xf32> to vector<16x1xf32>
    %250 = vector.broadcast %249 : vector<16x1xf32> to vector<16x640xf32>
    %251 = arith.mulf %250, %247 : vector<16x640xf32>
    %cst_74 = arith.constant dense<0.000000e+00> : vector<640xf32>
    %252 = vector.multi_reduction <add>, %251, %cst_74 [0] : vector<16x640xf32> to vector<640xf32>
    %253 = vector.shape_cast %252 : vector<640xf32> to vector<1x640xf32>
    %254 = arith.addf %212, %253 : vector<1x640xf32>
    %255 = arith.addf %213, %253 : vector<1x640xf32>
    %c64_i32 = arith.constant 64 : i32
    %256 = vector.broadcast %c64_i32 : i32 to vector<1x640xi32>
    %257 = arith.cmpi sge, %0, %256 : vector<1x640xi32>
    %c64_i32_75 = arith.constant 64 : i32
    %258 = tpu.dynamic_rotate %255 by %c64_i32_75 dim 1 : vector<1x640xf32>, i32 -> vector<1x640xf32>
    %cst_76 = arith.constant 0.000000e+00 : f32
    %259 = vector.broadcast %cst_76 : f32 to vector<1x640xf32>
    %260 = arith.select %257, %258, %259 : vector<1x640xi1>, vector<1x640xf32>
    %c6 = arith.constant 6 : index
    %c0_77 = arith.constant 0 : index
    %c0_78 = arith.constant 0 : index
    %261 = vector.load %arg2[%c6, %c0_77, %c0_78] : memref<7x16x2xf32, #tpu.memory_space<vmem>>, vector<1x16x2xf32>
    %262 = vector.shape_cast %261 : vector<1x16x2xf32> to vector<16x2xf32>
    %c6_79 = arith.constant 6 : index
    %c0_80 = arith.constant 0 : index
    %c0_81 = arith.constant 0 : index
    %263 = vector.load %arg3[%c6_79, %c0_80, %c0_81] : memref<7x16x2xf32, #tpu.memory_space<vmem>>, vector<1x16x2xf32>
    %264 = vector.shape_cast %263 : vector<1x16x2xf32> to vector<16x2xf32>
    %265 = vector.extract_strided_slice %262 {offsets = [0, 0], sizes = [16, 1], strides = [1, 1]} : vector<16x2xf32> to vector<16x1xf32>
    %266 = vector.broadcast %265 : vector<16x1xf32> to vector<16x640xf32>
    %267 = vector.broadcast %260 : vector<1x640xf32> to vector<16x640xf32>
    %268 = arith.mulf %266, %267 : vector<16x640xf32>
    %269 = vector.extract_strided_slice %262 {offsets = [0, 1], sizes = [16, 1], strides = [1, 1]} : vector<16x2xf32> to vector<16x1xf32>
    %270 = vector.broadcast %269 : vector<16x1xf32> to vector<16x640xf32>
    %271 = vector.broadcast %255 : vector<1x640xf32> to vector<16x640xf32>
    %272 = arith.mulf %270, %271 : vector<16x640xf32>
    %273 = arith.addf %268, %272 : vector<16x640xf32>
    %274 = vector.extract_strided_slice %264 {offsets = [0, 0], sizes = [16, 1], strides = [1, 1]} : vector<16x2xf32> to vector<16x1xf32>
    %275 = vector.broadcast %274 : vector<16x1xf32> to vector<16x640xf32>
    %276 = vector.broadcast %260 : vector<1x640xf32> to vector<16x640xf32>
    %277 = arith.mulf %275, %276 : vector<16x640xf32>
    %278 = vector.extract_strided_slice %264 {offsets = [0, 1], sizes = [16, 1], strides = [1, 1]} : vector<16x2xf32> to vector<16x1xf32>
    %279 = vector.broadcast %278 : vector<16x1xf32> to vector<16x640xf32>
    %280 = vector.broadcast %255 : vector<1x640xf32> to vector<16x640xf32>
    %281 = arith.mulf %279, %280 : vector<16x640xf32>
    %282 = arith.addf %277, %281 : vector<16x640xf32>
    %283 = math.tanh %273 : vector<16x640xf32>
    %284 = arith.negf %282 : vector<16x640xf32>
    %285 = math.exp %284 : vector<16x640xf32>
    %cst_82 = arith.constant 1.000000e+00 : f32
    %286 = vector.broadcast %cst_82 : f32 to vector<16x640xf32>
    %287 = arith.addf %286, %285 : vector<16x640xf32>
    %288 = arith.divf %286, %287 : vector<16x640xf32>
    %289 = arith.mulf %283, %288 : vector<16x640xf32>
    %c6_83 = arith.constant 6 : index
    %c0_84 = arith.constant 0 : index
    %c0_85 = arith.constant 0 : index
    %290 = vector.load %arg4[%c6_83, %c0_84, %c0_85] : memref<7x16x1xf32, #tpu.memory_space<vmem>>, vector<1x16x1xf32>
    %291 = vector.shape_cast %290 : vector<1x16x1xf32> to vector<16x1xf32>
    %292 = vector.broadcast %291 : vector<16x1xf32> to vector<16x640xf32>
    %293 = arith.mulf %292, %289 : vector<16x640xf32>
    %cst_86 = arith.constant dense<0.000000e+00> : vector<640xf32>
    %294 = vector.multi_reduction <add>, %293, %cst_86 [0] : vector<16x640xf32> to vector<640xf32>
    %295 = vector.shape_cast %294 : vector<640xf32> to vector<1x640xf32>
    %296 = arith.addf %254, %295 : vector<1x640xf32>
    %297 = tpu.concatenate %37, %79, %121, %163, %205, %247, %289 in 0 : vector<16x640xf32>, vector<16x640xf32>, vector<16x640xf32>, vector<16x640xf32>, vector<16x640xf32>, vector<16x640xf32>, vector<16x640xf32> -> vector<112x640xf32>
    %298 = tpu.iota {dimensions = array<i32: 0>} : vector<640x7xi32>
    %299 = tpu.iota {dimensions = array<i32: 1>} : vector<640x7xi32>
    %c80_i32 = arith.constant 80 : i32
    %300 = vector.broadcast %c80_i32 : i32 to vector<640x7xi32>
    %301 = arith.muli %299, %300 : vector<640x7xi32>
    %302 = arith.cmpi sge, %298, %301 : vector<640x7xi32>
    %c160_i32 = arith.constant 160 : i32
    %303 = vector.broadcast %c160_i32 : i32 to vector<640x7xi32>
    %304 = arith.addi %301, %303 : vector<640x7xi32>
    %305 = arith.cmpi slt, %298, %304 : vector<640x7xi32>
    %306 = arith.andi %302, %305 : vector<640x7xi1>
    %cst_87 = arith.constant 6.250000e-03 : f32
    %cst_88 = arith.constant 0.000000e+00 : f32
    %307 = vector.broadcast %cst_87 : f32 to vector<640x7xf32>
    %308 = vector.broadcast %cst_88 : f32 to vector<640x7xf32>
    %309 = arith.select %306, %307, %308 : vector<640x7xi1>, vector<640x7xf32>
    %cst_89 = arith.constant dense<0.000000e+00> : vector<112x7xf32>
    %310 = tpu.matmul %297, %309, %cst_89 {dimension_numbers = #tpu.dot_dimension_numbers<[1], [0], [0], [1], [0, 0, 1, 1], [], []>} : vector<112x640xf32>, vector<640x7xf32>, vector<112x7xf32> -> vector<112x7xf32>
    %c0_90 = arith.constant 0 : index
    %c0_91 = arith.constant 0 : index
    %311 = vector.load %arg5[%c0_90, %c0_91] : memref<128x112xf32, #tpu.memory_space<vmem>>, vector<128x112xf32>
    %cst_92 = arith.constant dense<0.000000e+00> : vector<128x7xf32>
    %312 = tpu.matmul %311, %310, %cst_92 {dimension_numbers = #tpu.dot_dimension_numbers<[1], [0], [0], [1], [0, 0, 1, 1], [], []>} : vector<128x112xf32>, vector<112x7xf32>, vector<128x7xf32> -> vector<128x7xf32>
    %cst_93 = arith.constant 0.000000e+00 : f32
    %313 = vector.broadcast %cst_93 : f32 to vector<1x640xf32>
    %314 = arith.maximumf %296, %313 : vector<1x640xf32>
    %c0_94 = arith.constant 0 : index
    %c0_95 = arith.constant 0 : index
    %315 = vector.load %arg6[%c0_94, %c0_95] : memref<2x1xf32, #tpu.memory_space<vmem>>, vector<2x1xf32>
    %316 = vector.broadcast %315 : vector<2x1xf32> to vector<2x640xf32>
    %317 = vector.broadcast %314 : vector<1x640xf32> to vector<2x640xf32>
    %318 = arith.mulf %316, %317 : vector<2x640xf32>
    %c0_96 = arith.constant 0 : index
    %c0_97 = arith.constant 0 : index
    %319 = vector.load %arg7[%c0_96, %c0_97] : memref<2x1xf32, #tpu.memory_space<vmem>>, vector<2x1xf32>
    %320 = vector.broadcast %319 : vector<2x1xf32> to vector<2x640xf32>
    %321 = arith.addf %318, %320 : vector<2x640xf32>
    %cst_98 = arith.constant 0.000000e+00 : f32
    %322 = vector.broadcast %cst_98 : f32 to vector<2x640xf32>
    %323 = arith.maximumf %321, %322 : vector<2x640xf32>
    %c0_99 = arith.constant 0 : index
    %c0_100 = arith.constant 0 : index
    %324 = vector.load %arg8[%c0_99, %c0_100] : memref<256x2xf32, #tpu.memory_space<vmem>>, vector<256x2xf32>
    %325 = vector.extract_strided_slice %324 {offsets = [0, 0], sizes = [256, 1], strides = [1, 1]} : vector<256x2xf32> to vector<256x1xf32>
    %326 = vector.extract_strided_slice %323 {offsets = [0, 0], sizes = [1, 640], strides = [1, 1]} : vector<2x640xf32> to vector<1x640xf32>
    %327 = vector.broadcast %325 : vector<256x1xf32> to vector<256x640xf32>
    %328 = vector.broadcast %326 : vector<1x640xf32> to vector<256x640xf32>
    %329 = arith.mulf %327, %328 : vector<256x640xf32>
    %330 = vector.extract_strided_slice %324 {offsets = [0, 1], sizes = [256, 1], strides = [1, 1]} : vector<256x2xf32> to vector<256x1xf32>
    %331 = vector.extract_strided_slice %323 {offsets = [1, 0], sizes = [1, 640], strides = [1, 1]} : vector<2x640xf32> to vector<1x640xf32>
    %332 = vector.broadcast %330 : vector<256x1xf32> to vector<256x640xf32>
    %333 = vector.broadcast %331 : vector<1x640xf32> to vector<256x640xf32>
    %334 = arith.mulf %332, %333 : vector<256x640xf32>
    %335 = arith.addf %329, %334 : vector<256x640xf32>
    %c0_101 = arith.constant 0 : index
    %c0_102 = arith.constant 0 : index
    %336 = vector.load %arg9[%c0_101, %c0_102] : memref<256x1xf32, #tpu.memory_space<vmem>>, vector<256x1xf32>
    %337 = vector.broadcast %336 : vector<256x1xf32> to vector<256x640xf32>
    %338 = arith.addf %335, %337 : vector<256x640xf32>
    %c0_103 = arith.constant 0 : index
    %c0_104 = arith.constant 0 : index
    %c0_105 = arith.constant 0 : index
    %339 = vector.load %arg16[%c0_103, %c0_104, %c0_105] : memref<1x256x640xf32, #tpu.memory_space<vmem>>, vector<1x256x640xf32>
    %340 = vector.shape_cast %339 : vector<1x256x640xf32> to vector<256x640xf32>
    %341 = vector.shape_cast %338 : vector<256x640xf32> to vector<1x256x640xf32>
    tpu.vector_store %arg16[%c0_103, %c0_104, %c0_105], %341 {strides = array<i32>} : memref<1x256x640xf32, #tpu.memory_space<vmem>>, vector<1x256x640xf32>,
    %cst_106 = arith.constant 0.000000e+00 : f32
    %342 = vector.broadcast %cst_106 : f32 to vector<128x7xf32>
    %343 = arith.maximumf %312, %342 : vector<128x7xf32>
    %c0_107 = arith.constant 0 : index
    %c0_108 = arith.constant 0 : index
    %344 = vector.load %arg10[%c0_107, %c0_108] : memref<128x128xf32, #tpu.memory_space<vmem>>, vector<128x128xf32>
    %cst_109 = arith.constant dense<0.000000e+00> : vector<128x7xf32>
    %345 = tpu.matmul %344, %343, %cst_109 {dimension_numbers = #tpu.dot_dimension_numbers<[1], [0], [0], [1], [0, 0, 1, 1], [], []>} : vector<128x128xf32>, vector<128x7xf32>, vector<128x7xf32> -> vector<128x7xf32>
    %c0_110 = arith.constant 0 : index
    %c0_111 = arith.constant 0 : index
    %346 = vector.load %arg11[%c0_110, %c0_111] : memref<128x1xf32, #tpu.memory_space<vmem>>, vector<128x1xf32>
    %347 = vector.broadcast %346 : vector<128x1xf32> to vector<128x7xf32>
    %348 = arith.addf %345, %347 : vector<128x7xf32>
    %cst_112 = arith.constant 0.000000e+00 : f32
    %349 = vector.broadcast %cst_112 : f32 to vector<128x7xf32>
    %350 = arith.maximumf %348, %349 : vector<128x7xf32>
    %c0_113 = arith.constant 0 : index
    %c0_114 = arith.constant 0 : index
    %351 = vector.load %arg12[%c0_113, %c0_114] : memref<1x128xf32, #tpu.memory_space<vmem>>, vector<1x128xf32>
    %cst_115 = arith.constant dense<0.000000e+00> : vector<1x7xf32>
    %352 = tpu.matmul %351, %350, %cst_115 {dimension_numbers = #tpu.dot_dimension_numbers<[1], [0], [0], [1], [0, 0, 1, 1], [], []>} : vector<1x128xf32>, vector<128x7xf32>, vector<1x7xf32> -> vector<1x7xf32>
    %c0_116 = arith.constant 0 : index
    %c0_117 = arith.constant 0 : index
    %353 = vector.load %arg13[%c0_116, %c0_117] : memref<1x1xf32, #tpu.memory_space<vmem>>, vector<1x1xf32>
    %354 = vector.broadcast %353 : vector<1x1xf32> to vector<1x7xf32>
    %355 = arith.addf %352, %354 : vector<1x7xf32>
    %cst_118 = arith.constant 0.000000e+00 : f32
    %356 = vector.broadcast %cst_118 : f32 to vector<1x7xf32>
    %357 = arith.maximumf %355, %356 : vector<1x7xf32>
    %c0_119 = arith.constant 0 : index
    %c0_120 = arith.constant 0 : index
    %358 = vector.load %arg14[%c0_119, %c0_120] : memref<7x8xf32, #tpu.memory_space<vmem>>, vector<7x8xf32>
    %cst_121 = arith.constant dense<0.000000e+00> : vector<1x8xf32>
    %359 = tpu.matmul %357, %358, %cst_121 {dimension_numbers = #tpu.dot_dimension_numbers<[1], [0], [0], [1], [0, 0, 1, 1], [], []>} : vector<1x7xf32>, vector<7x8xf32>, vector<1x8xf32> -> vector<1x8xf32>
    %c0_122 = arith.constant 0 : index
    %c0_123 = arith.constant 0 : index
    %360 = vector.load %arg15[%c0_122, %c0_123] : memref<1x8xf32, #tpu.memory_space<vmem>>, vector<1x8xf32>
    %361 = arith.addf %359, %360 : vector<1x8xf32>
    %cst_124 = arith.constant dense<0xFF800000> : vector<1xf32>
    %362 = vector.multi_reduction <maximumf>, %361, %cst_124 [1] : vector<1x8xf32> to vector<1xf32>
    %363 = vector.shape_cast %362 : vector<1xf32> to vector<1x1xf32>
    %364 = vector.broadcast %363 : vector<1x1xf32> to vector<1x8xf32>
    %365 = arith.subf %361, %364 : vector<1x8xf32>
    %366 = math.exp %365 : vector<1x8xf32>
    %cst_125 = arith.constant dense<0.000000e+00> : vector<1xf32>
    %367 = vector.multi_reduction <add>, %366, %cst_125 [1] : vector<1x8xf32> to vector<1xf32>
    %368 = vector.shape_cast %367 : vector<1xf32> to vector<1x1xf32>
    %369 = vector.broadcast %368 : vector<1x1xf32> to vector<1x8xf32>
    %370 = arith.divf %366, %369 : vector<1x8xf32>
    %c0_126 = arith.constant 0 : index
    %c0_127 = arith.constant 0 : index
    %c0_128 = arith.constant 0 : index
    %371 = vector.load %arg17[%c0_126, %c0_127, %c0_128] : memref<1x1x8xf32, #tpu.memory_space<vmem>>, vector<1x1x8xf32>
    %372 = vector.shape_cast %371 : vector<1x1x8xf32> to vector<1x8xf32>
    %373 = vector.shape_cast %370 : vector<1x8xf32> to vector<1x1x8xf32>
    tpu.vector_store %arg17[%c0_126, %c0_127, %c0_128], %373 {strides = array<i32>} : memref<1x1x8xf32, #tpu.memory_space<vmem>>, vector<1x1x8xf32>,
    return
  }
  func.func @transform_0(%arg0: i32) -> (i32, i32, i32) {
    %c0_i32 = arith.constant 0 : i32
    %c0_i32_0 = arith.constant 0 : i32
    %c0_i32_1 = arith.constant 0 : i32
    return %arg0, %c0_i32, %c0_i32_0 : i32, i32, i32
  }
  func.func @transform_1(%arg0: i32) -> (i32, i32, i32) {
    %c0_i32 = arith.constant 0 : i32
    %c0_i32_0 = arith.constant 0 : i32
    %c0_i32_1 = arith.constant 0 : i32
    %c0_i32_2 = arith.constant 0 : i32
    return %c0_i32, %c0_i32_0, %c0_i32_1 : i32, i32, i32
  }
  func.func @transform_2(%arg0: i32) -> (i32, i32, i32) {
    %c0_i32 = arith.constant 0 : i32
    %c0_i32_0 = arith.constant 0 : i32
    %c0_i32_1 = arith.constant 0 : i32
    %c0_i32_2 = arith.constant 0 : i32
    return %c0_i32, %c0_i32_0, %c0_i32_1 : i32, i32, i32
  }
  func.func @transform_3(%arg0: i32) -> (i32, i32, i32) {
    %c0_i32 = arith.constant 0 : i32
    %c0_i32_0 = arith.constant 0 : i32
    %c0_i32_1 = arith.constant 0 : i32
    %c0_i32_2 = arith.constant 0 : i32
    return %c0_i32, %c0_i32_0, %c0_i32_1 : i32, i32, i32
  }
  func.func @transform_4(%arg0: i32) -> (i32, i32) {
    %c0_i32 = arith.constant 0 : i32
    %c0_i32_0 = arith.constant 0 : i32
    %c0_i32_1 = arith.constant 0 : i32
    return %c0_i32, %c0_i32_0 : i32, i32
  }
  func.func @transform_5(%arg0: i32) -> (i32, i32) {
    %c0_i32 = arith.constant 0 : i32
    %c0_i32_0 = arith.constant 0 : i32
    %c0_i32_1 = arith.constant 0 : i32
    return %c0_i32, %c0_i32_0 : i32, i32
  }
  func.func @transform_6(%arg0: i32) -> (i32, i32) {
    %c0_i32 = arith.constant 0 : i32
    %c0_i32_0 = arith.constant 0 : i32
    %c0_i32_1 = arith.constant 0 : i32
    return %c0_i32, %c0_i32_0 : i32, i32
  }
  func.func @transform_7(%arg0: i32) -> (i32, i32) {
    %c0_i32 = arith.constant 0 : i32
    %c0_i32_0 = arith.constant 0 : i32
    %c0_i32_1 = arith.constant 0 : i32
    return %c0_i32, %c0_i32_0 : i32, i32
  }
  func.func @transform_8(%arg0: i32) -> (i32, i32) {
    %c0_i32 = arith.constant 0 : i32
    %c0_i32_0 = arith.constant 0 : i32
    %c0_i32_1 = arith.constant 0 : i32
    return %c0_i32, %c0_i32_0 : i32, i32
  }
  func.func @transform_9(%arg0: i32) -> (i32, i32) {
    %c0_i32 = arith.constant 0 : i32
    %c0_i32_0 = arith.constant 0 : i32
    %c0_i32_1 = arith.constant 0 : i32
    return %c0_i32, %c0_i32_0 : i32, i32
  }
  func.func @transform_10(%arg0: i32) -> (i32, i32) {
    %c0_i32 = arith.constant 0 : i32
    %c0_i32_0 = arith.constant 0 : i32
    %c0_i32_1 = arith.constant 0 : i32
    return %c0_i32, %c0_i32_0 : i32, i32
  }
  func.func @transform_11(%arg0: i32) -> (i32, i32) {
    %c0_i32 = arith.constant 0 : i32
    %c0_i32_0 = arith.constant 0 : i32
    %c0_i32_1 = arith.constant 0 : i32
    return %c0_i32, %c0_i32_0 : i32, i32
  }
  func.func @transform_12(%arg0: i32) -> (i32, i32) {
    %c0_i32 = arith.constant 0 : i32
    %c0_i32_0 = arith.constant 0 : i32
    %c0_i32_1 = arith.constant 0 : i32
    return %c0_i32, %c0_i32_0 : i32, i32
  }
  func.func @transform_13(%arg0: i32) -> (i32, i32) {
    %c0_i32 = arith.constant 0 : i32
    %c0_i32_0 = arith.constant 0 : i32
    %c0_i32_1 = arith.constant 0 : i32
    return %c0_i32, %c0_i32_0 : i32, i32
  }
  func.func @transform_14(%arg0: i32) -> (i32, i32) {
    %c0_i32 = arith.constant 0 : i32
    %c0_i32_0 = arith.constant 0 : i32
    %c0_i32_1 = arith.constant 0 : i32
    return %c0_i32, %c0_i32_0 : i32, i32
  }
  func.func @transform_15(%arg0: i32) -> (i32, i32, i32) {
    %c0_i32 = arith.constant 0 : i32
    %c0_i32_0 = arith.constant 0 : i32
    %c0_i32_1 = arith.constant 0 : i32
    return %arg0, %c0_i32, %c0_i32_0 : i32, i32, i32
  }
  func.func @transform_16(%arg0: i32) -> (i32, i32, i32) {
    %c0_i32 = arith.constant 0 : i32
    %c0_i32_0 = arith.constant 0 : i32
    %c0_i32_1 = arith.constant 0 : i32
    return %arg0, %c0_i32, %c0_i32_0 : i32, i32, i32
  }
}

</mosaic_0001>

<llo_original>
// kernel: wavenet_forward.1
$region0: #{wavenet_forward.1}
  #allocation0 [shape = 'u32[]', space=smem, size = 0x4, offset = 0x4, fixed_abs, tag = 'smem constant byte address 0x4 - core index']
  #allocation1 [shape = 'u32[144,128]{1,0:T(1,128)}', space=vmem, size = 0x12000, scoped, tag = 'internal scratch']
  #allocation2 [shape = 'f32[1,1]{1,0:T(1,128)S(1)}', space=vmem, size = 0x200, scoped, tag = 'scoped memory for wavenet_forward.1']
  %s0 = inlined_call_operand.hbm [shape: f32[2,1,640], index: 0, kind: input, shape index: {}]
  %s1 = inlined_call_operand.vmem [shape: f32[7,16,2], index: 1, kind: input, shape index: {}]
  %s2 = inlined_call_operand.vmem [shape: f32[7,16,2], index: 2, kind: input, shape index: {}]
  %s3 = inlined_call_operand.vmem [shape: f32[7,16,1], index: 3, kind: input, shape index: {}]
  %s4 = inlined_call_operand.vmem [shape: f32[128,112], index: 4, kind: input, shape index: {}]
  %s5 = inlined_call_operand.vmem [shape: f32[2,1], index: 5, kind: input, shape index: {}]
  %s6 = inlined_call_operand.vmem [shape: f32[2,1], index: 6, kind: input, shape index: {}]
  %s7 = inlined_call_operand.vmem [shape: f32[256,2], index: 7, kind: input, shape index: {}]
  %s8 = inlined_call_operand.vmem [shape: f32[256,1], index: 8, kind: input, shape index: {}]
  %s9 = inlined_call_operand.hbm [shape: f32[128,128], index: 9, kind: input, shape index: {}]
  %s10 = inlined_call_operand.vmem [shape: f32[128,1], index: 10, kind: input, shape index: {}]
  %s11 = inlined_call_operand.hbm [shape: f32[1,128], index: 11, kind: input, shape index: {}]
  %s12 = inlined_call_operand.<no memory space> [shape: f32[1,1], index: 12, kind: input, shape index: {}]
  %s13 = inlined_call_operand.hbm [shape: f32[7,8], index: 13, kind: input, shape index: {}]
  %s14 = inlined_call_operand.hbm [shape: f32[1,8], index: 14, kind: input, shape index: {}]
  %s15 = inlined_call_operand.hbm [shape: f32[2,256,640], index: 15, kind: output, shape index: {0}]
  %s16 = inlined_call_operand.hbm [shape: f32[2,1,8], index: 16, kind: output, shape index: {1}]
  %17 = xla_tuple %s15, %s16
  %s18 = sld [smem:[#allocation0]]
  $region121: #{wavenet_forward.1} parent=0
    _
  %s20 = ssub.s32 1, %s18
  %s21 = scalar_select 0, %s20, %s18
  %v22 = vstv %s12
  %23 = vst [vmem:[#allocation2] sm:$0x1] %v22
  $region1: #{wavenet_forward.1} parent=0
    #allocation3 [shape = 'u8[5120]{0}', space=vmem, size = 0x1400, scoped, tag = 'input window, operand 0']
    #allocation4 [shape = 's32[2]{0}', space=sflag, size = 0x8, scoped, tag = 'scoped memory for wavenet_forward.1']
    #allocation5 [shape = 's32[2]{0}', space=sflag, size = 0x8, scoped, tag = 'scoped memory for wavenet_forward.1']
    #allocation6 [shape = 'u8[65536]{0}', space=vmem, size = 0x10000, scoped, tag = 'input window, operand 9, single buffered']
    #allocation7 [shape = 's32[1]{0}', space=sflag, size = 0x4, scoped, tag = 'scoped memory for wavenet_forward.1']
    #allocation8 [shape = 'u8[512]{0}', space=vmem, size = 0x400, scoped, tag = 'input window, operand 11, single buffered']
    #allocation9 [shape = 'u8[4096]{0}', space=vmem, size = 0x1000, scoped, tag = 'input window, operand 13, single buffered']
    #allocation10 [shape = 's32[1]{0}', space=sflag, size = 0x4, scoped, tag = 'scoped memory for wavenet_forward.1']
    #allocation11 [shape = 'u8[512]{0}', space=vmem, size = 0x400, scoped, tag = 'input window, operand 14, single buffered']
    #allocation12 [shape = 'u8[1310720]{0}', space=vmem, size = 0x140000, scoped, tag = 'output window, operand 0']
    #allocation13 [shape = 'u8[1024]{0}', space=vmem, size = 0x400, scoped, tag = 'output window, operand 1']
    #allocation14 [shape = 's32[2]{0}', space=sflag, size = 0x8, scoped, tag = 'scoped memory for wavenet_forward.1']
    %24 = vsyncpa [#allocation4], 0
    %s25 = scalar_lea.sflag [#allocation4], 1
    %26 = vsyncpa %s25, 0
    %27 = vsyncpa [#allocation7], 0
    %28 = vsyncpa [#allocation10], 0
    %29 = vsyncpa [#allocation5], 0
    %s30 = scalar_lea.sflag [#allocation5], 1
    %31 = vsyncpa %s30, 0
    %32 = vsyncpa [#allocation14], 0
    %s33 = scalar_lea.sflag [#allocation14], 1
    %34 = vsyncpa %s33, 0
    loop: start=0, step=1, limit=4
    $region2: #{wavenet_forward.1} parent=1 // loop_pre_header
      _
    $region3: #{wavenet_forward.1} parent=1 // loop_header
      %s36 = sphi 0, %s40
      %p37 = scmp.ge.s32.totalorder %s36, 4
      %s46 = sphi 0, %s48
      %s49 = sphi 0, %s46
      %s50 = sphi 0, %s49
      %s66 = sphi 0, %s50
      %s70 = sphi 0, %s70
      %s72 = sphi 0, %s70
      %s73 = sphi 0, %s72
      %s87 = sphi 0, %s73
      %s91 = sphi 0, %s91
      %s93 = sphi 0, %s91
      %s94 = sphi 0, %s93
      %s108 = sphi 0, %s94
      %s112 = sphi 0, %s112
      %s114 = sphi 0, %s112
      %s115 = sphi 0, %s114
      %s129 = sphi 0, %s115
      %s133 = sphi 0, %s133
      %s135 = sphi 0, %s133
      %s136 = sphi 0, %s135
      %s150 = sphi 0, %s136
      %s154 = sphi 0, %s154
      %s156 = sphi 0, %s154
      %s157 = sphi 0, %s156
      %s171 = sphi 0, %s157
      %s175 = sphi 0, %s175
      %s177 = sphi 0, %s175
      %s178 = sphi 0, %s177
      %s192 = sphi 0, %s178
      %s196 = sphi 0, %s196
      %s198 = sphi 0, %s196
      %s199 = sphi 0, %s198
      %s213 = sphi 0, %s199
      %s217 = sphi 0, %s217
      %s219 = sphi 0, %s217
      %s220 = sphi 0, %s219
      %s234 = sphi 0, %s220
      %s238 = sphi 0, %s238
      %s240 = sphi 0, %s238
      %s241 = sphi 0, %s240
      %s255 = sphi 0, %s241
      %s259 = sphi 0, %s259
      %s261 = sphi 0, %s259
      %s262 = sphi 0, %s261
      %s276 = sphi 0, %s262
      %s280 = sphi 0, %s280
      %s282 = sphi 0, %s280
      %s283 = sphi 0, %s282
      %s297 = sphi 0, %s283
      %s301 = sphi 0, %s301
      %s303 = sphi 0, %s301
      %s304 = sphi 0, %s303
      %s318 = sphi 0, %s304
      %s322 = sphi 0, %s322
      %s324 = sphi 0, %s322
      %s325 = sphi 0, %s324
      %s339 = sphi 0, %s325
      %s343 = sphi 0, %s343
      %s345 = sphi 0, %s343
      %s346 = sphi 0, %s345
      %s360 = sphi 0, %s346
      %s366 = sphi 0, %s368
      %s369 = sphi 0, %s366
      %s370 = sphi 0, %s369
      %s386 = sphi 0, %s370
      %s392 = sphi 0, %s394
      %s395 = sphi 0, %s392
      %s396 = sphi 0, %s395
      %s412 = sphi 0, %s396
    $region4: #{wavenet_forward.1} parent=1 // loop_header_branch
      %39 = sbr.rel (%p37) target = $region8
    $region5: #{wavenet_forward.1} parent=1 // loop_body
      %s41 = ssub.s32 %s36, 1
      %s42 = ssub.s32 %s36, 2
      %s43 = sadd.s32 %s36, 1
      %s44 = ssub.s32 %s36, %s43
      %p45 = scmp.eq.s32.totalorder %s44, 0
      %s47 = sadd.s32 %s46, 1
      %s48 = scalar_select %p45, %s46, %s47
      %p51 = pneg %p45
      %p52 = scmp.eq.s32.totalorder %s36, 1
      %p53 = por %p51, %p52
      %p54 = scmp.ne.s32.totalorder %s46, %s49
      %p55 = scmp.eq.s32.totalorder %s36, 0
      %p56 = por %p54, %p55
      %p57 = scmp.ne.s32.totalorder %s46, %s49
      %p58 = scmp.eq.s32.totalorder %s41, 1
      %p59 = por %p57, %p58
      %p60 = scmp.ne.s32.totalorder %s49, %s50
      %p61 = scmp.eq.s32.totalorder %s41, 0
      %p62 = por %p60, %p61
      %p63 = scmp.ne.s32.totalorder %s49, %s50
      %p64 = scmp.eq.s32.totalorder %s42, 1
      %p65 = por %p63, %p64
      %p67 = scmp.ne.s32.totalorder %s50, %s66
      %p68 = scmp.eq.s32.totalorder %s42, 0
      %p69 = por %p67, %p68
      %s71 = sadd.s32 %s70, 1
      %p74 = scmp.eq.s32.totalorder %s36, 1
      %p75 = scmp.ne.s32.totalorder %s70, %s72
      %p76 = scmp.eq.s32.totalorder %s36, 0
      %p77 = por %p75, %p76
      %p78 = scmp.ne.s32.totalorder %s70, %s72
      %p79 = scmp.eq.s32.totalorder %s41, 1
      %p80 = por %p78, %p79
      %p81 = scmp.ne.s32.totalorder %s72, %s73
      %p82 = scmp.eq.s32.totalorder %s41, 0
      %p83 = por %p81, %p82
      %p84 = scmp.ne.s32.totalorder %s72, %s73
      %p85 = scmp.eq.s32.totalorder %s42, 1
      %p86 = por %p84, %p85
      %p88 = scmp.ne.s32.totalorder %s73, %s87
      %p89 = scmp.eq.s32.totalorder %s42, 0
      %p90 = por %p88, %p89
      %s92 = sadd.s32 %s91, 1
      %p95 = scmp.eq.s32.totalorder %s36, 1
      %p96 = scmp.ne.s32.totalorder %s91, %s93
      %p97 = scmp.eq.s32.totalorder %s36, 0
      %p98 = por %p96, %p97
      %p99 = scmp.ne.s32.totalorder %s91, %s93
      %p100 = scmp.eq.s32.totalorder %s41, 1
      %p101 = por %p99, %p100
      %p102 = scmp.ne.s32.totalorder %s93, %s94
      %p103 = scmp.eq.s32.totalorder %s41, 0
      %p104 = por %p102, %p103
      %p105 = scmp.ne.s32.totalorder %s93, %s94
      %p106 = scmp.eq.s32.totalorder %s42, 1
      %p107 = por %p105, %p106
      %p109 = scmp.ne.s32.totalorder %s94, %s108
      %p110 = scmp.eq.s32.totalorder %s42, 0
      %p111 = por %p109, %p110
      %s113 = sadd.s32 %s112, 1
      %p116 = scmp.eq.s32.totalorder %s36, 1
      %p117 = scmp.ne.s32.totalorder %s112, %s114
      %p118 = scmp.eq.s32.totalorder %s36, 0
      %p119 = por %p117, %p118
      %p120 = scmp.ne.s32.totalorder %s112, %s114
      %p121 = scmp.eq.s32.totalorder %s41, 1
      %p122 = por %p120, %p121
      %p123 = scmp.ne.s32.totalorder %s114, %s115
      %p124 = scmp.eq.s32.totalorder %s41, 0
      %p125 = por %p123, %p124
      %p126 = scmp.ne.s32.totalorder %s114, %s115
      %p127 = scmp.eq.s32.totalorder %s42, 1
      %p128 = por %p126, %p127
      %p130 = scmp.ne.s32.totalorder %s115, %s129
      %p131 = scmp.eq.s32.totalorder %s42, 0
      %p132 = por %p130, %p131
      %s134 = sadd.s32 %s133, 1
      %p137 = scmp.eq.s32.totalorder %s36, 1
      %p138 = scmp.ne.s32.totalorder %s133, %s135
      %p139 = scmp.eq.s32.totalorder %s36, 0
      %p140 = por %p138, %p139
      %p141 = scmp.ne.s32.totalorder %s133, %s135
      %p142 = scmp.eq.s32.totalorder %s41, 1
      %p143 = por %p141, %p142
      %p144 = scmp.ne.s32.totalorder %s135, %s136
      %p145 = scmp.eq.s32.totalorder %s41, 0
      %p146 = por %p144, %p145
      %p147 = scmp.ne.s32.totalorder %s135, %s136
      %p148 = scmp.eq.s32.totalorder %s42, 1
      %p149 = por %p147, %p148
      %p151 = scmp.ne.s32.totalorder %s136, %s150
      %p152 = scmp.eq.s32.totalorder %s42, 0
      %p153 = por %p151, %p152
      %s155 = sadd.s32 %s154, 1
      %p158 = scmp.eq.s32.totalorder %s36, 1
      %p159 = scmp.ne.s32.totalorder %s154, %s156
      %p160 = scmp.eq.s32.totalorder %s36, 0
      %p161 = por %p159, %p160
      %p162 = scmp.ne.s32.totalorder %s154, %s156
      %p163 = scmp.eq.s32.totalorder %s41, 1
      %p164 = por %p162, %p163
      %p165 = scmp.ne.s32.totalorder %s156, %s157
      %p166 = scmp.eq.s32.totalorder %s41, 0
      %p167 = por %p165, %p166
      %p168 = scmp.ne.s32.totalorder %s156, %s157
      %p169 = scmp.eq.s32.totalorder %s42, 1
      %p170 = por %p168, %p169
      %p172 = scmp.ne.s32.totalorder %s157, %s171
      %p173 = scmp.eq.s32.totalorder %s42, 0
      %p174 = por %p172, %p173
      %s176 = sadd.s32 %s175, 1
      %p179 = scmp.eq.s32.totalorder %s36, 1
      %p180 = scmp.ne.s32.totalorder %s175, %s177
      %p181 = scmp.eq.s32.totalorder %s36, 0
      %p182 = por %p180, %p181
      %p183 = scmp.ne.s32.totalorder %s175, %s177
      %p184 = scmp.eq.s32.totalorder %s41, 1
      %p185 = por %p183, %p184
      %p186 = scmp.ne.s32.totalorder %s177, %s178
      %p187 = scmp.eq.s32.totalorder %s41, 0
      %p188 = por %p186, %p187
      %p189 = scmp.ne.s32.totalorder %s177, %s178
      %p190 = scmp.eq.s32.totalorder %s42, 1
      %p191 = por %p189, %p190
      %p193 = scmp.ne.s32.totalorder %s178, %s192
      %p194 = scmp.eq.s32.totalorder %s42, 0
      %p195 = por %p193, %p194
      %s197 = sadd.s32 %s196, 1
      %p200 = scmp.eq.s32.totalorder %s36, 1
      %p201 = scmp.ne.s32.totalorder %s196, %s198
      %p202 = scmp.eq.s32.totalorder %s36, 0
      %p203 = por %p201, %p202
      %p204 = scmp.ne.s32.totalorder %s196, %s198
      %p205 = scmp.eq.s32.totalorder %s41, 1
      %p206 = por %p204, %p205
      %p207 = scmp.ne.s32.totalorder %s198, %s199
      %p208 = scmp.eq.s32.totalorder %s41, 0
      %p209 = por %p207, %p208
      %p210 = scmp.ne.s32.totalorder %s198, %s199
      %p211 = scmp.eq.s32.totalorder %s42, 1
      %p212 = por %p210, %p211
      %p214 = scmp.ne.s32.totalorder %s199, %s213
      %p215 = scmp.eq.s32.totalorder %s42, 0
      %p216 = por %p214, %p215
      %s218 = sadd.s32 %s217, 1
      %p221 = scmp.eq.s32.totalorder %s36, 1
      %p222 = scmp.ne.s32.totalorder %s217, %s219
      %p223 = scmp.eq.s32.totalorder %s36, 0
      %p224 = por %p222, %p223
      %p225 = scmp.ne.s32.totalorder %s217, %s219
      %p226 = scmp.eq.s32.totalorder %s41, 1
      %p227 = por %p225, %p226
      %p228 = scmp.ne.s32.totalorder %s219, %s220
      %p229 = scmp.eq.s32.totalorder %s41, 0
      %p230 = por %p228, %p229
      %p231 = scmp.ne.s32.totalorder %s219, %s220
      %p232 = scmp.eq.s32.totalorder %s42, 1
      %p233 = por %p231, %p232
      %p235 = scmp.ne.s32.totalorder %s220, %s234
      %p236 = scmp.eq.s32.totalorder %s42, 0
      %p237 = por %p235, %p236
      %s239 = sadd.s32 %s238, 1
      %p242 = scmp.eq.s32.totalorder %s36, 1
      %p243 = scmp.ne.s32.totalorder %s238, %s240
      %p244 = scmp.eq.s32.totalorder %s36, 0
      %p245 = por %p243, %p244
      %p246 = scmp.ne.s32.totalorder %s238, %s240
      %p247 = scmp.eq.s32.totalorder %s41, 1
      %p248 = por %p246, %p247
      %p249 = scmp.ne.s32.totalorder %s240, %s241
      %p250 = scmp.eq.s32.totalorder %s41, 0
      %p251 = por %p249, %p250
      %p252 = scmp.ne.s32.totalorder %s240, %s241
      %p253 = scmp.eq.s32.totalorder %s42, 1
      %p254 = por %p252, %p253
      %p256 = scmp.ne.s32.totalorder %s241, %s255
      %p257 = scmp.eq.s32.totalorder %s42, 0
      %p258 = por %p256, %p257
      %s260 = sadd.s32 %s259, 1
      %p263 = scmp.eq.s32.totalorder %s36, 1
      %p264 = scmp.ne.s32.totalorder %s259, %s261
      %p265 = scmp.eq.s32.totalorder %s36, 0
      %p266 = por %p264, %p265
      %p267 = scmp.ne.s32.totalorder %s259, %s261
      %p268 = scmp.eq.s32.totalorder %s41, 1
      %p269 = por %p267, %p268
      %p270 = scmp.ne.s32.totalorder %s261, %s262
      %p271 = scmp.eq.s32.totalorder %s41, 0
      %p272 = por %p270, %p271
      %p273 = scmp.ne.s32.totalorder %s261, %s262
      %p274 = scmp.eq.s32.totalorder %s42, 1
      %p275 = por %p273, %p274
      %p277 = scmp.ne.s32.totalorder %s262, %s276
      %p278 = scmp.eq.s32.totalorder %s42, 0
      %p279 = por %p277, %p278
      %s281 = sadd.s32 %s280, 1
      %p284 = scmp.eq.s32.totalorder %s36, 1
      %p285 = scmp.ne.s32.totalorder %s280, %s282
      %p286 = scmp.eq.s32.totalorder %s36, 0
      %p287 = por %p285, %p286
      %p288 = scmp.ne.s32.totalorder %s280, %s282
      %p289 = scmp.eq.s32.totalorder %s41, 1
      %p290 = por %p288, %p289
      %p291 = scmp.ne.s32.totalorder %s282, %s283
      %p292 = scmp.eq.s32.totalorder %s41, 0
      %p293 = por %p291, %p292
      %p294 = scmp.ne.s32.totalorder %s282, %s283
      %p295 = scmp.eq.s32.totalorder %s42, 1
      %p296 = por %p294, %p295
      %p298 = scmp.ne.s32.totalorder %s283, %s297
      %p299 = scmp.eq.s32.totalorder %s42, 0
      %p300 = por %p298, %p299
      %s302 = sadd.s32 %s301, 1
      %p305 = scmp.eq.s32.totalorder %s36, 1
      %p306 = scmp.ne.s32.totalorder %s301, %s303
      %p307 = scmp.eq.s32.totalorder %s36, 0
      %p308 = por %p306, %p307
      %p309 = scmp.ne.s32.totalorder %s301, %s303
      %p310 = scmp.eq.s32.totalorder %s41, 1
      %p311 = por %p309, %p310
      %p312 = scmp.ne.s32.totalorder %s303, %s304
      %p313 = scmp.eq.s32.totalorder %s41, 0
      %p314 = por %p312, %p313
      %p315 = scmp.ne.s32.totalorder %s303, %s304
      %p316 = scmp.eq.s32.totalorder %s42, 1
      %p317 = por %p315, %p316
      %p319 = scmp.ne.s32.totalorder %s304, %s318
      %p320 = scmp.eq.s32.totalorder %s42, 0
      %p321 = por %p319, %p320
      %s323 = sadd.s32 %s322, 1
      %p326 = scmp.eq.s32.totalorder %s36, 1
      %p327 = scmp.ne.s32.totalorder %s322, %s324
      %p328 = scmp.eq.s32.totalorder %s36, 0
      %p329 = por %p327, %p328
      %p330 = scmp.ne.s32.totalorder %s322, %s324
      %p331 = scmp.eq.s32.totalorder %s41, 1
      %p332 = por %p330, %p331
      %p333 = scmp.ne.s32.totalorder %s324, %s325
      %p334 = scmp.eq.s32.totalorder %s41, 0
      %p335 = por %p333, %p334
      %p336 = scmp.ne.s32.totalorder %s324, %s325
      %p337 = scmp.eq.s32.totalorder %s42, 1
      %p338 = por %p336, %p337
      %p340 = scmp.ne.s32.totalorder %s325, %s339
      %p341 = scmp.eq.s32.totalorder %s42, 0
      %p342 = por %p340, %p341
      %s344 = sadd.s32 %s343, 1
      %p347 = scmp.eq.s32.totalorder %s36, 1
      %p348 = scmp.ne.s32.totalorder %s343, %s345
      %p349 = scmp.eq.s32.totalorder %s36, 0
      %p350 = por %p348, %p349
      %p351 = scmp.ne.s32.totalorder %s343, %s345
      %p352 = scmp.eq.s32.totalorder %s41, 1
      %p353 = por %p351, %p352
      %p354 = scmp.ne.s32.totalorder %s345, %s346
      %p355 = scmp.eq.s32.totalorder %s41, 0
      %p356 = por %p354, %p355
      %p357 = scmp.ne.s32.totalorder %s345, %s346
      %p358 = scmp.eq.s32.totalorder %s42, 1
      %p359 = por %p357, %p358
      %p361 = scmp.ne.s32.totalorder %s346, %s360
      %p362 = scmp.eq.s32.totalorder %s42, 0
      %p363 = por %p361, %p362
      %s364 = ssub.s32 %s36, %s43
      %p365 = scmp.eq.s32.totalorder %s364, 0
      %s367 = sadd.s32 %s366, 1
      %s368 = scalar_select %p365, %s366, %s367
      %p371 = pneg %p365
      %p372 = scmp.eq.s32.totalorder %s36, 1
      %p373 = por %p371, %p372
      %p374 = scmp.ne.s32.totalorder %s366, %s369
      %p375 = scmp.eq.s32.totalorder %s36, 0
      %p376 = por %p374, %p375
      %p377 = scmp.ne.s32.totalorder %s366, %s369
      %p378 = scmp.eq.s32.totalorder %s41, 1
      %p379 = por %p377, %p378
      %p380 = scmp.ne.s32.totalorder %s369, %s370
      %p381 = scmp.eq.s32.totalorder %s41, 0
      %p382 = por %p380, %p381
      %p383 = scmp.ne.s32.totalorder %s369, %s370
      %p384 = scmp.eq.s32.totalorder %s42, 1
      %p385 = por %p383, %p384
      %p387 = scmp.ne.s32.totalorder %s370, %s386
      %p388 = scmp.eq.s32.totalorder %s42, 0
      %p389 = por %p387, %p388
      %s390 = ssub.s32 %s36, %s43
      %p391 = scmp.eq.s32.totalorder %s390, 0
      %s393 = sadd.s32 %s392, 1
      %s394 = scalar_select %p391, %s392, %s393
      %p397 = pneg %p391
      %p398 = scmp.eq.s32.totalorder %s36, 1
      %p399 = por %p397, %p398
      %p400 = scmp.ne.s32.totalorder %s392, %s395
      %p401 = scmp.eq.s32.totalorder %s36, 0
      %p402 = por %p400, %p401
      %p403 = scmp.ne.s32.totalorder %s392, %s395
      %p404 = scmp.eq.s32.totalorder %s41, 1
      %p405 = por %p403, %p404
      %p406 = scmp.ne.s32.totalorder %s395, %s396
      %p407 = scmp.eq.s32.totalorder %s41, 0
      %p408 = por %p406, %p407
      %p409 = scmp.ne.s32.totalorder %s395, %s396
      %p410 = scmp.eq.s32.totalorder %s42, 1
      %p411 = por %p409, %p410
      %p413 = scmp.ne.s32.totalorder %s396, %s412
      %p414 = scmp.eq.s32.totalorder %s42, 0
      %p415 = por %p413, %p414
      %p416 = scmp.le.s32.totalorder 1, %s36
      %p417 = scmp.lt.s32.totalorder %s36, 3
      %p418 = pnand %p416, %p417
      %p419 = pneg %p418
      // Predicated region
      $region9: #{wavenet_forward.1} parent=5 // pred_check
        _
      $region10: #{wavenet_forward.1} parent=5 // pred_check_branch
        %421 = sbr.rel (%p418) target = $region12
      $region11: #{wavenet_forward.1} parent=5 // pred_region
        %s422 = ssub.s32 %s36, 1
        // Predicated region
        $region13: #{wavenet_forward.1} parent=11 // pred_check
          %p423 = pneg %p83
        $region14: #{wavenet_forward.1} parent=11 // pred_check_branch
          %425 = sbr.rel (%p423) target = $region16
        $region15: #{wavenet_forward.1} parent=11 // pred_region
          _
        $region16: #{wavenet_forward.1} parent=11 // pred_fallthru
          _
        // Predicated region
        $region17: #{wavenet_forward.1} parent=11 // pred_check
          %p426 = pneg %p104
        $region18: #{wavenet_forward.1} parent=11 // pred_check_branch
          %428 = sbr.rel (%p426) target = $region20
        $region19: #{wavenet_forward.1} parent=11 // pred_region
          _
        $region20: #{wavenet_forward.1} parent=11 // pred_fallthru
          _
        // Predicated region
        $region21: #{wavenet_forward.1} parent=11 // pred_check
          %p429 = pneg %p125
        $region22: #{wavenet_forward.1} parent=11 // pred_check_branch
          %431 = sbr.rel (%p429) target = $region24
        $region23: #{wavenet_forward.1} parent=11 // pred_region
          _
        $region24: #{wavenet_forward.1} parent=11 // pred_fallthru
          _
        // Predicated region
        $region25: #{wavenet_forward.1} parent=11 // pred_check
          %p432 = pneg %p146
        $region26: #{wavenet_forward.1} parent=11 // pred_check_branch
          %434 = sbr.rel (%p432) target = $region28
        $region27: #{wavenet_forward.1} parent=11 // pred_region
          _
        $region28: #{wavenet_forward.1} parent=11 // pred_fallthru
          _
        // Predicated region
        $region29: #{wavenet_forward.1} parent=11 // pred_check
          %p435 = pneg %p167
        $region30: #{wavenet_forward.1} parent=11 // pred_check_branch
          %437 = sbr.rel (%p435) target = $region32
        $region31: #{wavenet_forward.1} parent=11 // pred_region
          _
        $region32: #{wavenet_forward.1} parent=11 // pred_fallthru
          _
        // Predicated region
        $region33: #{wavenet_forward.1} parent=11 // pred_check
          %p438 = pneg %p188
        $region34: #{wavenet_forward.1} parent=11 // pred_check_branch
          %440 = sbr.rel (%p438) target = $region36
        $region35: #{wavenet_forward.1} parent=11 // pred_region
          _
        $region36: #{wavenet_forward.1} parent=11 // pred_fallthru
          _
        // Predicated region
        $region37: #{wavenet_forward.1} parent=11 // pred_check
          %p441 = pneg %p209
        $region38: #{wavenet_forward.1} parent=11 // pred_check_branch
          %443 = sbr.rel (%p441) target = $region40
        $region39: #{wavenet_forward.1} parent=11 // pred_region
          _
        $region40: #{wavenet_forward.1} parent=11 // pred_fallthru
          _
        // Predicated region
        $region41: #{wavenet_forward.1} parent=11 // pred_check
          %p444 = pneg %p230
        $region42: #{wavenet_forward.1} parent=11 // pred_check_branch
          %446 = sbr.rel (%p444) target = $region44
        $region43: #{wavenet_forward.1} parent=11 // pred_region
          _
        $region44: #{wavenet_forward.1} parent=11 // pred_fallthru
          _
        // Predicated region
        $region45: #{wavenet_forward.1} parent=11 // pred_check
          %p447 = pneg %p251
        $region46: #{wavenet_forward.1} parent=11 // pred_check_branch
          %449 = sbr.rel (%p447) target = $region48
        $region47: #{wavenet_forward.1} parent=11 // pred_region
          %s451 = ssub.s32 2048, 2048
          %452 = vsyncadd [#allocation7], %s451
          %s453 = sshll.u32 [#allocation6], 4
          %s454 = int_to_ptr.vmem [resolvable:$true] %s453
          %459 = dma.hbm_to_vmem [thread:$0]  %s9, 2048, %s454, [#allocation7], 128, 128, 8
        $region48: #{wavenet_forward.1} parent=11 // pred_fallthru
          _
        // Predicated region
        $region49: #{wavenet_forward.1} parent=11 // pred_check
          %p460 = pneg %p272
        $region50: #{wavenet_forward.1} parent=11 // pred_check_branch
          %462 = sbr.rel (%p460) target = $region52
        $region51: #{wavenet_forward.1} parent=11 // pred_region
          _
        $region52: #{wavenet_forward.1} parent=11 // pred_fallthru
          _
        // Predicated region
        $region53: #{wavenet_forward.1} parent=11 // pred_check
          %p463 = pneg %p293
        $region54: #{wavenet_forward.1} parent=11 // pred_check_branch
          %465 = sbr.rel (%p463) target = $region56
        $region55: #{wavenet_forward.1} parent=11 // pred_region
          %s467 = ssub.s32 16, 16
          %468 = vsyncadd [#allocation7], %s467
          %s470 = sshll.u32 [#allocation8], 4
          %s471 = int_to_ptr.vmem [resolvable:$true] %s470
          %473 = dma.hbm_to_vmem [thread:$0]  %s11, 16, %s471, [#allocation7]
        $region56: #{wavenet_forward.1} parent=11 // pred_fallthru
          _
        // Predicated region
        $region57: #{wavenet_forward.1} parent=11 // pred_check
          %p474 = pneg %p314
        $region58: #{wavenet_forward.1} parent=11 // pred_check_branch
          %476 = sbr.rel (%p474) target = $region60
        $region59: #{wavenet_forward.1} parent=11 // pred_region
          _
        $region60: #{wavenet_forward.1} parent=11 // pred_fallthru
          _
        // Predicated region
        $region61: #{wavenet_forward.1} parent=11 // pred_check
          %p477 = pneg %p335
        $region62: #{wavenet_forward.1} parent=11 // pred_check_branch
          %479 = sbr.rel (%p477) target = $region64
        $region63: #{wavenet_forward.1} parent=11 // pred_region
          %s481 = ssub.s32 128, 128
          %482 = vsyncadd [#allocation10], %s481
          %s484 = sshll.u32 [#allocation9], 4
          %s485 = int_to_ptr.vmem [resolvable:$true] %s484
          %487 = dma.hbm_to_vmem [thread:$0]  %s13, 128, %s485, [#allocation10]
        $region64: #{wavenet_forward.1} parent=11 // pred_fallthru
          _
        // Predicated region
        $region65: #{wavenet_forward.1} parent=11 // pred_check
          %p488 = pneg %p356
        $region66: #{wavenet_forward.1} parent=11 // pred_check_branch
          %490 = sbr.rel (%p488) target = $region68
        $region67: #{wavenet_forward.1} parent=11 // pred_region
          %s492 = ssub.s32 16, 16
          %493 = vsyncadd [#allocation10], %s492
          %s495 = sshll.u32 [#allocation11], 4
          %s496 = int_to_ptr.vmem [resolvable:$true] %s495
          %498 = dma.hbm_to_vmem [thread:$0]  %s14, 16, %s496, [#allocation10]
        $region68: #{wavenet_forward.1} parent=11 // pred_fallthru
          _
      $region12: #{wavenet_forward.1} parent=5 // pred_fallthru
        _
      %p499 = scmp.lt.s32.totalorder %s36, 2
      // Predicated region
      $region69: #{wavenet_forward.1} parent=5 // pred_check
        %p500 = pneg %p499
      $region70: #{wavenet_forward.1} parent=5 // pred_check_branch
        %502 = sbr.rel (%p500) target = $region72
      $region71: #{wavenet_forward.1} parent=5 // pred_region
        // Predicated region
        $region73: #{wavenet_forward.1} parent=71 // pred_check
          %p503 = pneg %p56
        $region74: #{wavenet_forward.1} parent=71 // pred_check_branch
          %505 = sbr.rel (%p503) target = $region76
        $region75: #{wavenet_forward.1} parent=71 // pred_region
          %s506 = sand.u32 %s46, 1
          %s507 = scalar_lea.sflag [#allocation4], %s506
          %s508 = sand.u32 %s46, 1
          %s509 = smul.addr %s508, 5
          %s510 = scalar_lea.vmem [#allocation3], %s509
          %s512 = ssub.s32 80, 80
          %513 = vsyncadd %s507, %s512
          %s514 = smul.addr %s36, 5
          %s515 = smul.addr %s514, 16
          %s516 = scalar_lea.hbm %s0, %s515
          %s518 = sshll.u32 %s510, 4
          %s519 = int_to_ptr.vmem [resolvable:$true] %s518
          %521 = dma.hbm_to_vmem [thread:$0]  %s516, 80, %s519, %s507
        $region76: #{wavenet_forward.1} parent=71 // pred_fallthru
          _
      $region72: #{wavenet_forward.1} parent=5 // pred_fallthru
        _
      %p522 = scmp.le.s32.totalorder 1, %s36
      %p523 = scmp.lt.s32.totalorder %s36, 3
      %p524 = pnand %p522, %p523
      %p525 = pneg %p524
      // Predicated region
      $region77: #{wavenet_forward.1} parent=5 // pred_check
        _
      $region78: #{wavenet_forward.1} parent=5 // pred_check_branch
        %527 = sbr.rel (%p524) target = $region80
      $region79: #{wavenet_forward.1} parent=5 // pred_region
        %s528 = ssub.s32 %s36, 1
        %s529 = sand.u32 %s49, 1
        %s530 = scalar_lea.sflag [#allocation4], %s529
        %s531 = sand.u32 %s49, 1
        %s532 = smul.addr %s531, 5
        %s533 = scalar_lea.vmem [#allocation3], %s532
        // Predicated region
        $region81: #{wavenet_forward.1} parent=79 // pred_check
          %p534 = pneg %p62
        $region82: #{wavenet_forward.1} parent=79 // pred_check_branch
          %536 = sbr.rel (%p534) target = $region84
        $region83: #{wavenet_forward.1} parent=79 // pred_region
          %537 = dma.done %s530, 80
        $region84: #{wavenet_forward.1} parent=79 // pred_fallthru
          _
        // Predicated region
        $region85: #{wavenet_forward.1} parent=79 // pred_check
          %p538 = pneg %p251
        $region86: #{wavenet_forward.1} parent=79 // pred_check_branch
          %540 = sbr.rel (%p538) target = $region88
        $region87: #{wavenet_forward.1} parent=79 // pred_region
          %541 = dma.done [#allocation7], 2048
        $region88: #{wavenet_forward.1} parent=79 // pred_fallthru
          _
        // Predicated region
        $region89: #{wavenet_forward.1} parent=79 // pred_check
          %p542 = pneg %p293
        $region90: #{wavenet_forward.1} parent=79 // pred_check_branch
          %544 = sbr.rel (%p542) target = $region92
        $region91: #{wavenet_forward.1} parent=79 // pred_region
          %545 = dma.done [#allocation7], 16
        $region92: #{wavenet_forward.1} parent=79 // pred_fallthru
          _
        // Predicated region
        $region93: #{wavenet_forward.1} parent=79 // pred_check
          %p546 = pneg %p335
        $region94: #{wavenet_forward.1} parent=79 // pred_check_branch
          %548 = sbr.rel (%p546) target = $region96
        $region95: #{wavenet_forward.1} parent=79 // pred_region
          %549 = dma.done [#allocation10], 128
        $region96: #{wavenet_forward.1} parent=79 // pred_fallthru
          _
        // Predicated region
        $region97: #{wavenet_forward.1} parent=79 // pred_check
          %p550 = pneg %p356
        $region98: #{wavenet_forward.1} parent=79 // pred_check_branch
          %552 = sbr.rel (%p550) target = $region100
        $region99: #{wavenet_forward.1} parent=79 // pred_region
          %553 = dma.done [#allocation10], 16
        $region100: #{wavenet_forward.1} parent=79 // pred_fallthru
          _
        %s554 = sand.u32 %s49, 1
        %s555 = scalar_lea.sflag [#allocation4], %s554
        %s556 = sand.u32 %s49, 1
        %s557 = smul.addr %s556, 5
        %s558 = scalar_lea.vmem [#allocation3], %s557
        %p559 = pneg %p62
        %p560 = pneg %p59
        %p561 = pneg %p83
        %p562 = pneg %p80
        %p563 = pneg %p104
        %p564 = pneg %p101
        %p565 = pneg %p125
        %p566 = pneg %p122
        %p567 = pneg %p146
        %p568 = pneg %p143
        %p569 = pneg %p167
        %p570 = pneg %p164
        %p571 = pneg %p188
        %p572 = pneg %p185
        %p573 = pneg %p209
        %p574 = pneg %p206
        %p575 = pneg %p230
        %p576 = pneg %p227
        %p577 = pneg %p251
        %p578 = pneg %p248
        %p579 = pneg %p272
        %p580 = pneg %p269
        %p581 = pneg %p293
        %p582 = pneg %p290
        %p583 = pneg %p314
        %p584 = pneg %p311
        %p585 = pneg %p335
        %p586 = pneg %p332
        %p587 = pneg %p356
        %p588 = pneg %p353
        %p589 = pneg %p382
        %p590 = pneg %p379
        %s591 = sand.u32 %s369, 1
        %s592 = scalar_lea.sflag [#allocation5], %s591
        %s593 = sand.u32 %s369, 1
        %s594 = smul.addr %s593, 1280
        %s595 = scalar_lea.vmem [#allocation12], %s594
        %p596 = pneg %p408
        %p597 = pneg %p405
        %s598 = sand.u32 %s395, 1
        %s599 = scalar_lea.sflag [#allocation14], %s598
        %s600 = sand.u32 %s395, 1
        %s601 = scalar_lea.vmem [#allocation13], %s600
        %v602 = vlaneseq
        %v603 = vand.u32 %v602, 127
        %v604 = vadd.s32 %v603, 128
        %v605 = vadd.s32 %v603, 256
        %v606 = vadd.s32 %v603, 384
        %v607 = vadd.s32 %v603, 512
        %v608 = vld [vmem:[%s533] sm:$0x1f]
        %vm609 = vcmp.ge.s32.totalorder %v603, 1
        %vm610 = vcmp.ge.s32.totalorder %v604, 1
        %vm611 = vcmp.ge.s32.totalorder %v605, 1
        %vm612 = vcmp.ge.s32.totalorder %v606, 1
        %vm613 = vcmp.ge.s32.totalorder %v607, 1
        %v615 = vlaneseq
        %v616 = vshrl.u32 %v615, 7
        %v617 = vsub.s32 0, %v616
        %v618 = vrot.slane %v608, %v617
        %v619 = vlaneseq
        %v620 = vshrl.u32 %v619, 7
        %v621 = vsub.s32 1, %v620
        %v622 = vrot.slane %v608, %v621
        %v623 = vlaneseq
        %v624 = vshrl.u32 %v623, 7
        %v625 = vsub.s32 2, %v624
        %v626 = vrot.slane %v608, %v625
        %v627 = vlaneseq
        %v628 = vshrl.u32 %v627, 7
        %v629 = vsub.s32 3, %v628
        %v630 = vrot.slane %v608, %v629
        %v631 = vlaneseq
        %v632 = vshrl.u32 %v631, 7
        %v633 = vsub.s32 4, %v632
        %v634 = vrot.slane %v608, %v633
        %640 = vrot.lane.b32.xlu0 %v618, 1
        %v641 = vpop.permute.xlu0 %640
        %642 = vrot.lane.b32.xlu0 %v622, 1
        %v643 = vpop.permute.xlu0 %642
        %644 = vrot.lane.b32.xlu0 %v626, 1
        %v645 = vpop.permute.xlu0 %644
        %646 = vrot.lane.b32.xlu0 %v630, 1
        %v647 = vpop.permute.xlu0 %646
        %648 = vrot.lane.b32.xlu0 %v634, 1
        %v649 = vpop.permute.xlu0 %648
        %vm650 = vcmp.lt.s32.totalorder %v603, 1
        %v651 = vsel %vm650, %v647, %v649
        %v652 = vsel %vm650, %v645, %v647
        %v653 = vsel %vm650, %v643, %v645
        %v654 = vsel %vm650, %v641, %v643
        %v655 = vsel %vm650, %v649, %v641
        %v656 = vsel %vm609, %v655, 0.0
        %v657 = vsel %vm610, %v654, 0.0
        %v658 = vsel %vm611, %v653, 0.0
        %v659 = vsel %vm612, %v652, 0.0
        %v660 = vsel %vm613, %v651, 0.0
        %v661 = vld [vmem:[%s1] sm:$0xff]
        %v662 = vld [vmem:[%s1 + $0x8] sm:$0xff]
        %v663 = vld [vmem:[%s2] sm:$0xff]
        %v664 = vld [vmem:[%s2 + $0x8] sm:$0xff]
        %666 = vset.pattern.permute.xlu0 0
        %667 = vperm.xlu0 %666, %v661
        %v668 = vpop.permute.xlu0 %667
        %671 = vset.pattern.permute.xlu0 0
        %672 = vperm.xlu0 %671, %v662
        %v673 = vpop.permute.xlu0 %672
        %v675 = vlaneseq
        %v676 = vshrl.u32 %v675, 7
        %v677 = vsub.s32 0, %v676
        %v678 = vrot.slane %v656, %v677
        %v679 = vlaneseq
        %v680 = vshrl.u32 %v679, 7
        %v681 = vsub.s32 0, %v680
        %v682 = vrot.slane %v657, %v681
        %v683 = vlaneseq
        %v684 = vshrl.u32 %v683, 7
        %v685 = vsub.s32 0, %v684
        %v686 = vrot.slane %v658, %v685
        %v687 = vlaneseq
        %v688 = vshrl.u32 %v687, 7
        %v689 = vsub.s32 0, %v688
        %v690 = vrot.slane %v659, %v689
        %v691 = vlaneseq
        %v692 = vshrl.u32 %v691, 7
        %v693 = vsub.s32 0, %v692
        %v694 = vrot.slane %v660, %v693
        %v695 = vmul.f32 %v668, %v678
        %v696 = vmul.f32 %v668, %v682
        %v697 = vmul.f32 %v668, %v686
        %v698 = vmul.f32 %v668, %v690
        %v699 = vmul.f32 %v668, %v694
        %v700 = vmul.f32 %v673, %v678
        %v701 = vmul.f32 %v673, %v682
        %v702 = vmul.f32 %v673, %v686
        %v703 = vmul.f32 %v673, %v690
        %v704 = vmul.f32 %v673, %v694
        %705 = vset.pattern.permute.xlu0 1
        %706 = vperm.xlu0 %705, %v661
        %v707 = vpop.permute.xlu0 %706
        %709 = vset.pattern.permute.xlu0 1
        %710 = vperm.xlu0 %709, %v662
        %v711 = vpop.permute.xlu0 %710
        %v713 = vmul.f32 %v707, %v618
        %v714 = vmul.f32 %v707, %v622
        %v715 = vmul.f32 %v707, %v626
        %v716 = vmul.f32 %v707, %v630
        %v717 = vmul.f32 %v707, %v634
        %v718 = vmul.f32 %v711, %v618
        %v719 = vmul.f32 %v711, %v622
        %v720 = vmul.f32 %v711, %v626
        %v721 = vmul.f32 %v711, %v630
        %v722 = vmul.f32 %v711, %v634
        %v723 = vadd.f32 %v695, %v713
        %v724 = vadd.f32 %v696, %v714
        %v725 = vadd.f32 %v697, %v715
        %v726 = vadd.f32 %v698, %v716
        %v727 = vadd.f32 %v699, %v717
        %v728 = vadd.f32 %v700, %v718
        %v729 = vadd.f32 %v701, %v719
        %v730 = vadd.f32 %v702, %v720
        %v731 = vadd.f32 %v703, %v721
        %v732 = vadd.f32 %v704, %v722
        %734 = vset.pattern.permute.xlu0 0
        %735 = vperm.xlu0 %734, %v663
        %v736 = vpop.permute.xlu0 %735
        %739 = vset.pattern.permute.xlu0 0
        %740 = vperm.xlu0 %739, %v664
        %v741 = vpop.permute.xlu0 %740
        %v743 = vmul.f32 %v736, %v678
        %v744 = vmul.f32 %v736, %v682
        %v745 = vmul.f32 %v736, %v686
        %v746 = vmul.f32 %v736, %v690
        %v747 = vmul.f32 %v736, %v694
        %v748 = vmul.f32 %v741, %v678
        %v749 = vmul.f32 %v741, %v682
        %v750 = vmul.f32 %v741, %v686
        %v751 = vmul.f32 %v741, %v690
        %v752 = vmul.f32 %v741, %v694
        %753 = vset.pattern.permute.xlu0 1
        %754 = vperm.xlu0 %753, %v663
        %v755 = vpop.permute.xlu0 %754
        %757 = vset.pattern.permute.xlu0 1
        %758 = vperm.xlu0 %757, %v664
        %v759 = vpop.permute.xlu0 %758
        %v761 = vmul.f32 %v755, %v618
        %v762 = vmul.f32 %v755, %v622
        %v763 = vmul.f32 %v755, %v626
        %v764 = vmul.f32 %v755, %v630
        %v765 = vmul.f32 %v755, %v634
        %v766 = vmul.f32 %v759, %v618
        %v767 = vmul.f32 %v759, %v622
        %v768 = vmul.f32 %v759, %v626
        %v769 = vmul.f32 %v759, %v630
        %v770 = vmul.f32 %v759, %v634
        %v771 = vadd.f32 %v743, %v761
        %v772 = vadd.f32 %v744, %v762
        %v773 = vadd.f32 %v745, %v763
        %v774 = vadd.f32 %v746, %v764
        %v775 = vadd.f32 %v747, %v765
        %v776 = vadd.f32 %v748, %v766
        %v777 = vadd.f32 %v749, %v767
        %v778 = vadd.f32 %v750, %v768
        %v779 = vadd.f32 %v751, %v769
        %v780 = vadd.f32 %v752, %v770
        %v781 = vtanh.pop %v723
        %v782 = vtanh.pop %v724
        %v783 = vtanh.pop %v725
        %v784 = vtanh.pop %v726
        %v785 = vtanh.pop %v727
        %v786 = vtanh.pop %v728
        %v787 = vtanh.pop %v729
        %v788 = vtanh.pop %v730
        %v789 = vtanh.pop %v731
        %v790 = vtanh.pop %v732
        %v791 = vxor.u32 %v771, 2147483648
        %v792 = vxor.u32 %v772, 2147483648
        %v793 = vxor.u32 %v773, 2147483648
        %v794 = vxor.u32 %v774, 2147483648
        %v795 = vxor.u32 %v775, 2147483648
        %v796 = vxor.u32 %v776, 2147483648
        %v797 = vxor.u32 %v777, 2147483648
        %v798 = vxor.u32 %v778, 2147483648
        %v799 = vxor.u32 %v779, 2147483648
        %v800 = vxor.u32 %v780, 2147483648
        %v801 = vmul.f32 %v791, 1.442695
        %v802 = vpow.pop %v801
        %v803 = vmul.f32 %v792, 1.442695
        %v804 = vpow.pop %v803
        %v805 = vmul.f32 %v793, 1.442695
        %v806 = vpow.pop %v805
        %v807 = vmul.f32 %v794, 1.442695
        %v808 = vpow.pop %v807
        %v809 = vmul.f32 %v795, 1.442695
        %v810 = vpow.pop %v809
        %v811 = vmul.f32 %v796, 1.442695
        %v812 = vpow.pop %v811
        %v813 = vmul.f32 %v797, 1.442695
        %v814 = vpow.pop %v813
        %v815 = vmul.f32 %v798, 1.442695
        %v816 = vpow.pop %v815
        %v817 = vmul.f32 %v799, 1.442695
        %v818 = vpow.pop %v817
        %v819 = vmul.f32 %v800, 1.442695
        %v820 = vpow.pop %v819
        %v821 = vadd.f32 %v802, 1.0
        %v822 = vadd.f32 %v804, 1.0
        %v823 = vadd.f32 %v806, 1.0
        %v824 = vadd.f32 %v808, 1.0
        %v825 = vadd.f32 %v810, 1.0
        %v826 = vadd.f32 %v812, 1.0
        %v827 = vadd.f32 %v814, 1.0
        %v828 = vadd.f32 %v816, 1.0
        %v829 = vadd.f32 %v818, 1.0
        %v830 = vadd.f32 %v820, 1.0
        %v831 = vrcp.pop %v821
        %v832 = vmul.f32 1.0, %v831
        %v833 = vrcp.pop %v822
        %v834 = vmul.f32 1.0, %v833
        %v835 = vrcp.pop %v823
        %v836 = vmul.f32 1.0, %v835
        %v837 = vrcp.pop %v824
        %v838 = vmul.f32 1.0, %v837
        %v839 = vrcp.pop %v825
        %v840 = vmul.f32 1.0, %v839
        %v841 = vrcp.pop %v826
        %v842 = vmul.f32 1.0, %v841
        %v843 = vrcp.pop %v827
        %v844 = vmul.f32 1.0, %v843
        %v845 = vrcp.pop %v828
        %v846 = vmul.f32 1.0, %v845
        %v847 = vrcp.pop %v829
        %v848 = vmul.f32 1.0, %v847
        %v849 = vrcp.pop %v830
        %v850 = vmul.f32 1.0, %v849
        %v851 = vmul.f32 %v781, %v832
        %v852 = vmul.f32 %v782, %v834
        %v853 = vmul.f32 %v783, %v836
        %v854 = vmul.f32 %v784, %v838
        %v855 = vmul.f32 %v785, %v840
        %v856 = vmul.f32 %v786, %v842
        %v857 = vmul.f32 %v787, %v844
        %v858 = vmul.f32 %v788, %v846
        %v859 = vmul.f32 %v789, %v848
        %v860 = vmul.f32 %v790, %v850
        %v861 = vld [vmem:[%s3] sm:$0xff]
        %v862 = vld [vmem:[%s3 + $0x8] sm:$0xff]
        %864 = vset.pattern.permute.xlu0 0
        %865 = vperm.xlu0 %864, %v861
        %v866 = vpop.permute.xlu0 %865
        %869 = vset.pattern.permute.xlu0 0
        %870 = vperm.xlu0 %869, %v862
        %v871 = vpop.permute.xlu0 %870
        %v873 = vmul.f32 %v866, %v851
        %v874 = vmul.f32 %v866, %v852
        %v875 = vmul.f32 %v866, %v853
        %v876 = vmul.f32 %v866, %v854
        %v877 = vmul.f32 %v866, %v855
        %v878 = vmul.f32 %v871, %v856
        %v879 = vmul.f32 %v871, %v857
        %v880 = vmul.f32 %v871, %v858
        %v881 = vmul.f32 %v871, %v859
        %v882 = vmul.f32 %v871, %v860
        %v883 = vadd.f32 %v873, %v878
        %v884 = vrot.slane %v883, 4
        %v885 = vadd.f32 %v883, %v884
        %v886 = vrot.slane %v885, 2
        %v887 = vadd.f32 %v885, %v886
        %v888 = vrot.slane %v887, 1
        %v889 = vadd.f32 %v887, %v888
        %v890 = vadd.f32 %v874, %v879
        %v891 = vrot.slane %v890, 4
        %v892 = vadd.f32 %v890, %v891
        %v893 = vrot.slane %v892, 2
        %v894 = vadd.f32 %v892, %v893
        %v895 = vrot.slane %v894, 1
        %v896 = vadd.f32 %v894, %v895
        %v897 = vadd.f32 %v875, %v880
        %v898 = vrot.slane %v897, 4
        %v899 = vadd.f32 %v897, %v898
        %v900 = vrot.slane %v899, 2
        %v901 = vadd.f32 %v899, %v900
        %v902 = vrot.slane %v901, 1
        %v903 = vadd.f32 %v901, %v902
        %v904 = vadd.f32 %v876, %v881
        %v905 = vrot.slane %v904, 4
        %v906 = vadd.f32 %v904, %v905
        %v907 = vrot.slane %v906, 2
        %v908 = vadd.f32 %v906, %v907
        %v909 = vrot.slane %v908, 1
        %v910 = vadd.f32 %v908, %v909
        %v911 = vadd.f32 %v877, %v882
        %v912 = vrot.slane %v911, 4
        %v913 = vadd.f32 %v911, %v912
        %v914 = vrot.slane %v913, 2
        %v915 = vadd.f32 %v913, %v914
        %v916 = vrot.slane %v915, 1
        %v917 = vadd.f32 %v915, %v916
        %v918 = vadd.f32 %v889, 0.0
        %v919 = vadd.f32 %v896, 0.0
        %v920 = vadd.f32 %v903, 0.0
        %v921 = vadd.f32 %v910, 0.0
        %v922 = vadd.f32 %v917, 0.0
        %v928 = vcombine.low %v889, %v896
        %v929 = vcombine.low %v903, %v910
        %v931 = vunpack.c.l.s4 1966171168
        %v932 = vunpack.c.0.s8 %v931
        %v933 = vlaneseq
        %v934 = vshrl.u32 %v933, 7
        %v935 = vsub.s32 %v932, %v934
        %v936 = vrot.slane %v928, %v935
        %v938 = vunpack.c.l.s4 1966171168
        %v939 = vunpack.c.0.s8 %v938
        %v940 = vlaneseq
        %v941 = vshrl.u32 %v940, 7
        %v942 = vsub.s32 %v939, %v941
        %v943 = vrot.slane %v929, %v942
        %v945 = vunpack.c.l.s4 1966171168
        %v946 = vunpack.c.0.s8 %v945
        %v947 = vlaneseq
        %v948 = vshrl.u32 %v947, 7
        %v949 = vsub.s32 %v946, %v948
        %v950 = vrot.slane %v917, %v949
        %v951 = vcombine.low %v936, %v943
        %v953 = vunpack.c.l.s4 1966171168
        %v954 = vunpack.c.0.s8 %v953
        %v955 = vlaneseq
        %v956 = vshrl.u32 %v955, 7
        %v957 = vsub.s32 %v954, %v956
        %v958 = vrot.slane %v951, %v957
        %v960 = vunpack.c.l.s4 1966171168
        %v961 = vunpack.c.0.s8 %v960
        %v962 = vlaneseq
        %v963 = vshrl.u32 %v962, 7
        %v964 = vsub.s32 %v961, %v963
        %v965 = vrot.slane %v950, %v964
        %v966 = vcombine.low %v958, %v965
        %v968 = vadd.f32 %v608, %v966
        %vm969 = vcmp.ge.s32.totalorder %v603, 2
        %vm970 = vcmp.ge.s32.totalorder %v604, 2
        %vm971 = vcmp.ge.s32.totalorder %v605, 2
        %vm972 = vcmp.ge.s32.totalorder %v606, 2
        %vm973 = vcmp.ge.s32.totalorder %v607, 2
        %v975 = vlaneseq
        %v976 = vshrl.u32 %v975, 7
        %v977 = vsub.s32 0, %v976
        %v978 = vrot.slane %v968, %v977
        %v979 = vlaneseq
        %v980 = vshrl.u32 %v979, 7
        %v981 = vsub.s32 1, %v980
        %v982 = vrot.slane %v968, %v981
        %v983 = vlaneseq
        %v984 = vshrl.u32 %v983, 7
        %v985 = vsub.s32 2, %v984
        %v986 = vrot.slane %v968, %v985
        %v987 = vlaneseq
        %v988 = vshrl.u32 %v987, 7
        %v989 = vsub.s32 3, %v988
        %v990 = vrot.slane %v968, %v989
        %v991 = vlaneseq
        %v992 = vshrl.u32 %v991, 7
        %v993 = vsub.s32 4, %v992
        %v994 = vrot.slane %v968, %v993
        %1000 = vrot.lane.b32.xlu0 %v978, 2
        %v1001 = vpop.permute.xlu0 %1000
        %1002 = vrot.lane.b32.xlu0 %v982, 2
        %v1003 = vpop.permute.xlu0 %1002
        %1004 = vrot.lane.b32.xlu0 %v986, 2
        %v1005 = vpop.permute.xlu0 %1004
        %1006 = vrot.lane.b32.xlu0 %v990, 2
        %v1007 = vpop.permute.xlu0 %1006
        %1008 = vrot.lane.b32.xlu0 %v994, 2
        %v1009 = vpop.permute.xlu0 %1008
        %vm1010 = vcmp.lt.s32.totalorder %v603, 2
        %v1011 = vsel %vm1010, %v1007, %v1009
        %v1012 = vsel %vm1010, %v1005, %v1007
        %v1013 = vsel %vm1010, %v1003, %v1005
        %v1014 = vsel %vm1010, %v1001, %v1003
        %v1015 = vsel %vm1010, %v1009, %v1001
        %v1016 = vsel %vm969, %v1015, 0.0
        %v1017 = vsel %vm970, %v1014, 0.0
        %v1018 = vsel %vm971, %v1013, 0.0
        %v1019 = vsel %vm972, %v1012, 0.0
        %v1020 = vsel %vm973, %v1011, 0.0
        %s1021 = scalar_lea.vmem %s1, 16
        %v1022 = vld [vmem:[%s1021] sm:$0xff]
        %v1023 = vld [vmem:[%s1021 + $0x8] sm:$0xff]
        %s1024 = scalar_lea.vmem %s2, 16
        %v1025 = vld [vmem:[%s1024] sm:$0xff]
        %v1026 = vld [vmem:[%s1024 + $0x8] sm:$0xff]
        %1028 = vset.pattern.permute.xlu0 0
        %1029 = vperm.xlu0 %1028, %v1022
        %v1030 = vpop.permute.xlu0 %1029
        %1033 = vset.pattern.permute.xlu0 0
        %1034 = vperm.xlu0 %1033, %v1023
        %v1035 = vpop.permute.xlu0 %1034
        %v1037 = vlaneseq
        %v1038 = vshrl.u32 %v1037, 7
        %v1039 = vsub.s32 0, %v1038
        %v1040 = vrot.slane %v1016, %v1039
        %v1041 = vlaneseq
        %v1042 = vshrl.u32 %v1041, 7
        %v1043 = vsub.s32 0, %v1042
        %v1044 = vrot.slane %v1017, %v1043
        %v1045 = vlaneseq
        %v1046 = vshrl.u32 %v1045, 7
        %v1047 = vsub.s32 0, %v1046
        %v1048 = vrot.slane %v1018, %v1047
        %v1049 = vlaneseq
        %v1050 = vshrl.u32 %v1049, 7
        %v1051 = vsub.s32 0, %v1050
        %v1052 = vrot.slane %v1019, %v1051
        %v1053 = vlaneseq
        %v1054 = vshrl.u32 %v1053, 7
        %v1055 = vsub.s32 0, %v1054
        %v1056 = vrot.slane %v1020, %v1055
        %v1057 = vmul.f32 %v1030, %v1040
        %v1058 = vmul.f32 %v1030, %v1044
        %v1059 = vmul.f32 %v1030, %v1048
        %v1060 = vmul.f32 %v1030, %v1052
        %v1061 = vmul.f32 %v1030, %v1056
        %v1062 = vmul.f32 %v1035, %v1040
        %v1063 = vmul.f32 %v1035, %v1044
        %v1064 = vmul.f32 %v1035, %v1048
        %v1065 = vmul.f32 %v1035, %v1052
        %v1066 = vmul.f32 %v1035, %v1056
        %1067 = vset.pattern.permute.xlu0 1
        %1068 = vperm.xlu0 %1067, %v1022
        %v1069 = vpop.permute.xlu0 %1068
        %1071 = vset.pattern.permute.xlu0 1
        %1072 = vperm.xlu0 %1071, %v1023
        %v1073 = vpop.permute.xlu0 %1072
        %v1075 = vmul.f32 %v1069, %v978
        %v1076 = vmul.f32 %v1069, %v982
        %v1077 = vmul.f32 %v1069, %v986
        %v1078 = vmul.f32 %v1069, %v990
        %v1079 = vmul.f32 %v1069, %v994
        %v1080 = vmul.f32 %v1073, %v978
        %v1081 = vmul.f32 %v1073, %v982
        %v1082 = vmul.f32 %v1073, %v986
        %v1083 = vmul.f32 %v1073, %v990
        %v1084 = vmul.f32 %v1073, %v994
        %v1085 = vadd.f32 %v1057, %v1075
        %v1086 = vadd.f32 %v1058, %v1076
        %v1087 = vadd.f32 %v1059, %v1077
        %v1088 = vadd.f32 %v1060, %v1078
        %v1089 = vadd.f32 %v1061, %v1079
        %v1090 = vadd.f32 %v1062, %v1080
        %v1091 = vadd.f32 %v1063, %v1081
        %v1092 = vadd.f32 %v1064, %v1082
        %v1093 = vadd.f32 %v1065, %v1083
        %v1094 = vadd.f32 %v1066, %v1084
        %1096 = vset.pattern.permute.xlu0 0
        %1097 = vperm.xlu0 %1096, %v1025
        %v1098 = vpop.permute.xlu0 %1097
        %1101 = vset.pattern.permute.xlu0 0
        %1102 = vperm.xlu0 %1101, %v1026
        %v1103 = vpop.permute.xlu0 %1102
        %v1105 = vmul.f32 %v1098, %v1040
        %v1106 = vmul.f32 %v1098, %v1044
        %v1107 = vmul.f32 %v1098, %v1048
        %v1108 = vmul.f32 %v1098, %v1052
        %v1109 = vmul.f32 %v1098, %v1056
        %v1110 = vmul.f32 %v1103, %v1040
        %v1111 = vmul.f32 %v1103, %v1044
        %v1112 = vmul.f32 %v1103, %v1048
        %v1113 = vmul.f32 %v1103, %v1052
        %v1114 = vmul.f32 %v1103, %v1056
        %1115 = vset.pattern.permute.xlu0 1
        %1116 = vperm.xlu0 %1115, %v1025
        %v1117 = vpop.permute.xlu0 %1116
        %1119 = vset.pattern.permute.xlu0 1
        %1120 = vperm.xlu0 %1119, %v1026
        %v1121 = vpop.permute.xlu0 %1120
        %v1123 = vmul.f32 %v1117, %v978
        %v1124 = vmul.f32 %v1117, %v982
        %v1125 = vmul.f32 %v1117, %v986
        %v1126 = vmul.f32 %v1117, %v990
        %v1127 = vmul.f32 %v1117, %v994
        %v1128 = vmul.f32 %v1121, %v978
        %v1129 = vmul.f32 %v1121, %v982
        %v1130 = vmul.f32 %v1121, %v986
        %v1131 = vmul.f32 %v1121, %v990
        %v1132 = vmul.f32 %v1121, %v994
        %v1133 = vadd.f32 %v1105, %v1123
        %v1134 = vadd.f32 %v1106, %v1124
        %v1135 = vadd.f32 %v1107, %v1125
        %v1136 = vadd.f32 %v1108, %v1126
        %v1137 = vadd.f32 %v1109, %v1127
        %v1138 = vadd.f32 %v1110, %v1128
        %v1139 = vadd.f32 %v1111, %v1129
        %v1140 = vadd.f32 %v1112, %v1130
        %v1141 = vadd.f32 %v1113, %v1131
        %v1142 = vadd.f32 %v1114, %v1132
        %v1143 = vtanh.pop %v1085
        %v1144 = vtanh.pop %v1086
        %v1145 = vtanh.pop %v1087
        %v1146 = vtanh.pop %v1088
        %v1147 = vtanh.pop %v1089
        %v1148 = vtanh.pop %v1090
        %v1149 = vtanh.pop %v1091
        %v1150 = vtanh.pop %v1092
        %v1151 = vtanh.pop %v1093
        %v1152 = vtanh.pop %v1094
        %v1153 = vxor.u32 %v1133, 2147483648
        %v1154 = vxor.u32 %v1134, 2147483648
        %v1155 = vxor.u32 %v1135, 2147483648
        %v1156 = vxor.u32 %v1136, 2147483648
        %v1157 = vxor.u32 %v1137, 2147483648
        %v1158 = vxor.u32 %v1138, 2147483648
        %v1159 = vxor.u32 %v1139, 2147483648
        %v1160 = vxor.u32 %v1140, 2147483648
        %v1161 = vxor.u32 %v1141, 2147483648
        %v1162 = vxor.u32 %v1142, 2147483648
        %v1163 = vmul.f32 %v1153, 1.442695
        %v1164 = vpow.pop %v1163
        %v1165 = vmul.f32 %v1154, 1.442695
        %v1166 = vpow.pop %v1165
        %v1167 = vmul.f32 %v1155, 1.442695
        %v1168 = vpow.pop %v1167
        %v1169 = vmul.f32 %v1156, 1.442695
        %v1170 = vpow.pop %v1169
        %v1171 = vmul.f32 %v1157, 1.442695
        %v1172 = vpow.pop %v1171
        %v1173 = vmul.f32 %v1158, 1.442695
        %v1174 = vpow.pop %v1173
        %v1175 = vmul.f32 %v1159, 1.442695
        %v1176 = vpow.pop %v1175
        %v1177 = vmul.f32 %v1160, 1.442695
        %v1178 = vpow.pop %v1177
        %v1179 = vmul.f32 %v1161, 1.442695
        %v1180 = vpow.pop %v1179
        %v1181 = vmul.f32 %v1162, 1.442695
        %v1182 = vpow.pop %v1181
        %v1183 = vadd.f32 %v1164, 1.0
        %v1184 = vadd.f32 %v1166, 1.0
        %v1185 = vadd.f32 %v1168, 1.0
        %v1186 = vadd.f32 %v1170, 1.0
        %v1187 = vadd.f32 %v1172, 1.0
        %v1188 = vadd.f32 %v1174, 1.0
        %v1189 = vadd.f32 %v1176, 1.0
        %v1190 = vadd.f32 %v1178, 1.0
        %v1191 = vadd.f32 %v1180, 1.0
        %v1192 = vadd.f32 %v1182, 1.0
        %v1193 = vrcp.pop %v1183
        %v1194 = vmul.f32 1.0, %v1193
        %v1195 = vrcp.pop %v1184
        %v1196 = vmul.f32 1.0, %v1195
        %v1197 = vrcp.pop %v1185
        %v1198 = vmul.f32 1.0, %v1197
        %v1199 = vrcp.pop %v1186
        %v1200 = vmul.f32 1.0, %v1199
        %v1201 = vrcp.pop %v1187
        %v1202 = vmul.f32 1.0, %v1201
        %v1203 = vrcp.pop %v1188
        %v1204 = vmul.f32 1.0, %v1203
        %v1205 = vrcp.pop %v1189
        %v1206 = vmul.f32 1.0, %v1205
        %v1207 = vrcp.pop %v1190
        %v1208 = vmul.f32 1.0, %v1207
        %v1209 = vrcp.pop %v1191
        %v1210 = vmul.f32 1.0, %v1209
        %v1211 = vrcp.pop %v1192
        %v1212 = vmul.f32 1.0, %v1211
        %v1213 = vmul.f32 %v1143, %v1194
        %v1214 = vmul.f32 %v1144, %v1196
        %v1215 = vmul.f32 %v1145, %v1198
        %v1216 = vmul.f32 %v1146, %v1200
        %v1217 = vmul.f32 %v1147, %v1202
        %v1218 = vmul.f32 %v1148, %v1204
        %v1219 = vmul.f32 %v1149, %v1206
        %v1220 = vmul.f32 %v1150, %v1208
        %v1221 = vmul.f32 %v1151, %v1210
        %v1222 = vmul.f32 %v1152, %v1212
        %s1223 = scalar_lea.vmem %s3, 16
        %v1224 = vld [vmem:[%s1223] sm:$0xff]
        %v1225 = vld [vmem:[%s1223 + $0x8] sm:$0xff]
        %1227 = vset.pattern.permute.xlu0 0
        %1228 = vperm.xlu0 %1227, %v1224
        %v1229 = vpop.permute.xlu0 %1228
        %1232 = vset.pattern.permute.xlu0 0
        %1233 = vperm.xlu0 %1232, %v1225
        %v1234 = vpop.permute.xlu0 %1233
        %v1236 = vmul.f32 %v1229, %v1213
        %v1237 = vmul.f32 %v1229, %v1214
        %v1238 = vmul.f32 %v1229, %v1215
        %v1239 = vmul.f32 %v1229, %v1216
        %v1240 = vmul.f32 %v1229, %v1217
        %v1241 = vmul.f32 %v1234, %v1218
        %v1242 = vmul.f32 %v1234, %v1219
        %v1243 = vmul.f32 %v1234, %v1220
        %v1244 = vmul.f32 %v1234, %v1221
        %v1245 = vmul.f32 %v1234, %v1222
        %v1246 = vadd.f32 %v1236, %v1241
        %v1247 = vrot.slane %v1246, 4
        %v1248 = vadd.f32 %v1246, %v1247
        %v1249 = vrot.slane %v1248, 2
        %v1250 = vadd.f32 %v1248, %v1249
        %v1251 = vrot.slane %v1250, 1
        %v1252 = vadd.f32 %v1250, %v1251
        %v1253 = vadd.f32 %v1237, %v1242
        %v1254 = vrot.slane %v1253, 4
        %v1255 = vadd.f32 %v1253, %v1254
        %v1256 = vrot.slane %v1255, 2
        %v1257 = vadd.f32 %v1255, %v1256
        %v1258 = vrot.slane %v1257, 1
        %v1259 = vadd.f32 %v1257, %v1258
        %v1260 = vadd.f32 %v1238, %v1243
        %v1261 = vrot.slane %v1260, 4
        %v1262 = vadd.f32 %v1260, %v1261
        %v1263 = vrot.slane %v1262, 2
        %v1264 = vadd.f32 %v1262, %v1263
        %v1265 = vrot.slane %v1264, 1
        %v1266 = vadd.f32 %v1264, %v1265
        %v1267 = vadd.f32 %v1239, %v1244
        %v1268 = vrot.slane %v1267, 4
        %v1269 = vadd.f32 %v1267, %v1268
        %v1270 = vrot.slane %v1269, 2
        %v1271 = vadd.f32 %v1269, %v1270
        %v1272 = vrot.slane %v1271, 1
        %v1273 = vadd.f32 %v1271, %v1272
        %v1274 = vadd.f32 %v1240, %v1245
        %v1275 = vrot.slane %v1274, 4
        %v1276 = vadd.f32 %v1274, %v1275
        %v1277 = vrot.slane %v1276, 2
        %v1278 = vadd.f32 %v1276, %v1277
        %v1279 = vrot.slane %v1278, 1
        %v1280 = vadd.f32 %v1278, %v1279
        %v1281 = vadd.f32 %v918, %v1252
        %v1282 = vadd.f32 %v919, %v1259
        %v1283 = vadd.f32 %v920, %v1266
        %v1284 = vadd.f32 %v921, %v1273
        %v1285 = vadd.f32 %v922, %v1280
        %v1291 = vcombine.low %v1252, %v1259
        %v1292 = vcombine.low %v1266, %v1273
        %v1294 = vunpack.c.l.s4 1966171168
        %v1295 = vunpack.c.0.s8 %v1294
        %v1296 = vlaneseq
        %v1297 = vshrl.u32 %v1296, 7
        %v1298 = vsub.s32 %v1295, %v1297
        %v1299 = vrot.slane %v1291, %v1298
        %v1301 = vunpack.c.l.s4 1966171168
        %v1302 = vunpack.c.0.s8 %v1301
        %v1303 = vlaneseq
        %v1304 = vshrl.u32 %v1303, 7
        %v1305 = vsub.s32 %v1302, %v1304
        %v1306 = vrot.slane %v1292, %v1305
        %v1308 = vunpack.c.l.s4 1966171168
        %v1309 = vunpack.c.0.s8 %v1308
        %v1310 = vlaneseq
        %v1311 = vshrl.u32 %v1310, 7
        %v1312 = vsub.s32 %v1309, %v1311
        %v1313 = vrot.slane %v1280, %v1312
        %v1314 = vcombine.low %v1299, %v1306
        %v1316 = vunpack.c.l.s4 1966171168
        %v1317 = vunpack.c.0.s8 %v1316
        %v1318 = vlaneseq
        %v1319 = vshrl.u32 %v1318, 7
        %v1320 = vsub.s32 %v1317, %v1319
        %v1321 = vrot.slane %v1314, %v1320
        %v1323 = vunpack.c.l.s4 1966171168
        %v1324 = vunpack.c.0.s8 %v1323
        %v1325 = vlaneseq
        %v1326 = vshrl.u32 %v1325, 7
        %v1327 = vsub.s32 %v1324, %v1326
        %v1328 = vrot.slane %v1313, %v1327
        %v1329 = vcombine.low %v1321, %v1328
        %v1331 = vadd.f32 %v968, %v1329
        %vm1332 = vcmp.ge.s32.totalorder %v603, 4
        %vm1333 = vcmp.ge.s32.totalorder %v604, 4
        %vm1334 = vcmp.ge.s32.totalorder %v605, 4
        %vm1335 = vcmp.ge.s32.totalorder %v606, 4
        %vm1336 = vcmp.ge.s32.totalorder %v607, 4
        %v1338 = vlaneseq
        %v1339 = vshrl.u32 %v1338, 7
        %v1340 = vsub.s32 0, %v1339
        %v1341 = vrot.slane %v1331, %v1340
        %v1342 = vlaneseq
        %v1343 = vshrl.u32 %v1342, 7
        %v1344 = vsub.s32 1, %v1343
        %v1345 = vrot.slane %v1331, %v1344
        %v1346 = vlaneseq
        %v1347 = vshrl.u32 %v1346, 7
        %v1348 = vsub.s32 2, %v1347
        %v1349 = vrot.slane %v1331, %v1348
        %v1350 = vlaneseq
        %v1351 = vshrl.u32 %v1350, 7
        %v1352 = vsub.s32 3, %v1351
        %v1353 = vrot.slane %v1331, %v1352
        %v1354 = vlaneseq
        %v1355 = vshrl.u32 %v1354, 7
        %v1356 = vsub.s32 4, %v1355
        %v1357 = vrot.slane %v1331, %v1356
        %1363 = vrot.lane.b32.xlu0 %v1341, 4
        %v1364 = vpop.permute.xlu0 %1363
        %1365 = vrot.lane.b32.xlu0 %v1345, 4
        %v1366 = vpop.permute.xlu0 %1365
        %1367 = vrot.lane.b32.xlu0 %v1349, 4
        %v1368 = vpop.permute.xlu0 %1367
        %1369 = vrot.lane.b32.xlu0 %v1353, 4
        %v1370 = vpop.permute.xlu0 %1369
        %1371 = vrot.lane.b32.xlu0 %v1357, 4
        %v1372 = vpop.permute.xlu0 %1371
        %vm1373 = vcmp.lt.s32.totalorder %v603, 4
        %v1374 = vsel %vm1373, %v1370, %v1372
        %v1375 = vsel %vm1373, %v1368, %v1370
        %v1376 = vsel %vm1373, %v1366, %v1368
        %v1377 = vsel %vm1373, %v1364, %v1366
        %v1378 = vsel %vm1373, %v1372, %v1364
        %v1379 = vsel %vm1332, %v1378, 0.0
        %v1380 = vsel %vm1333, %v1377, 0.0
        %v1381 = vsel %vm1334, %v1376, 0.0
        %v1382 = vsel %vm1335, %v1375, 0.0
        %v1383 = vsel %vm1336, %v1374, 0.0
        %s1384 = scalar_lea.vmem %s1, 32
        %v1385 = vld [vmem:[%s1384] sm:$0xff]
        %v1386 = vld [vmem:[%s1384 + $0x8] sm:$0xff]
        %s1387 = scalar_lea.vmem %s2, 32
        %v1388 = vld [vmem:[%s1387] sm:$0xff]
        %v1389 = vld [vmem:[%s1387 + $0x8] sm:$0xff]
        %1391 = vset.pattern.permute.xlu0 0
        %1392 = vperm.xlu0 %1391, %v1385
        %v1393 = vpop.permute.xlu0 %1392
        %1396 = vset.pattern.permute.xlu0 0
        %1397 = vperm.xlu0 %1396, %v1386
        %v1398 = vpop.permute.xlu0 %1397
        %v1400 = vlaneseq
        %v1401 = vshrl.u32 %v1400, 7
        %v1402 = vsub.s32 0, %v1401
        %v1403 = vrot.slane %v1379, %v1402
        %v1404 = vlaneseq
        %v1405 = vshrl.u32 %v1404, 7
        %v1406 = vsub.s32 0, %v1405
        %v1407 = vrot.slane %v1380, %v1406
        %v1408 = vlaneseq
        %v1409 = vshrl.u32 %v1408, 7
        %v1410 = vsub.s32 0, %v1409
        %v1411 = vrot.slane %v1381, %v1410
        %v1412 = vlaneseq
        %v1413 = vshrl.u32 %v1412, 7
        %v1414 = vsub.s32 0, %v1413
        %v1415 = vrot.slane %v1382, %v1414
        %v1416 = vlaneseq
        %v1417 = vshrl.u32 %v1416, 7
        %v1418 = vsub.s32 0, %v1417
        %v1419 = vrot.slane %v1383, %v1418
        %v1420 = vmul.f32 %v1393, %v1403
        %v1421 = vmul.f32 %v1393, %v1407
        %v1422 = vmul.f32 %v1393, %v1411
        %v1423 = vmul.f32 %v1393, %v1415
        %v1424 = vmul.f32 %v1393, %v1419
        %v1425 = vmul.f32 %v1398, %v1403
        %v1426 = vmul.f32 %v1398, %v1407
        %v1427 = vmul.f32 %v1398, %v1411
        %v1428 = vmul.f32 %v1398, %v1415
        %v1429 = vmul.f32 %v1398, %v1419
        %1430 = vset.pattern.permute.xlu0 1
        %1431 = vperm.xlu0 %1430, %v1385
        %v1432 = vpop.permute.xlu0 %1431
        %1434 = vset.pattern.permute.xlu0 1
        %1435 = vperm.xlu0 %1434, %v1386
        %v1436 = vpop.permute.xlu0 %1435
        %v1438 = vmul.f32 %v1432, %v1341
        %v1439 = vmul.f32 %v1432, %v1345
        %v1440 = vmul.f32 %v1432, %v1349
        %v1441 = vmul.f32 %v1432, %v1353
        %v1442 = vmul.f32 %v1432, %v1357
        %v1443 = vmul.f32 %v1436, %v1341
        %v1444 = vmul.f32 %v1436, %v1345
        %v1445 = vmul.f32 %v1436, %v1349
        %v1446 = vmul.f32 %v1436, %v1353
        %v1447 = vmul.f32 %v1436, %v1357
        %v1448 = vadd.f32 %v1420, %v1438
        %v1449 = vadd.f32 %v1421, %v1439
        %v1450 = vadd.f32 %v1422, %v1440
        %v1451 = vadd.f32 %v1423, %v1441
        %v1452 = vadd.f32 %v1424, %v1442
        %v1453 = vadd.f32 %v1425, %v1443
        %v1454 = vadd.f32 %v1426, %v1444
        %v1455 = vadd.f32 %v1427, %v1445
        %v1456 = vadd.f32 %v1428, %v1446
        %v1457 = vadd.f32 %v1429, %v1447
        %1459 = vset.pattern.permute.xlu0 0
        %1460 = vperm.xlu0 %1459, %v1388
        %v1461 = vpop.permute.xlu0 %1460
        %1464 = vset.pattern.permute.xlu0 0
        %1465 = vperm.xlu0 %1464, %v1389
        %v1466 = vpop.permute.xlu0 %1465
        %v1468 = vmul.f32 %v1461, %v1403
        %v1469 = vmul.f32 %v1461, %v1407
        %v1470 = vmul.f32 %v1461, %v1411
        %v1471 = vmul.f32 %v1461, %v1415
        %v1472 = vmul.f32 %v1461, %v1419
        %v1473 = vmul.f32 %v1466, %v1403
        %v1474 = vmul.f32 %v1466, %v1407
        %v1475 = vmul.f32 %v1466, %v1411
        %v1476 = vmul.f32 %v1466, %v1415
        %v1477 = vmul.f32 %v1466, %v1419
        %1478 = vset.pattern.permute.xlu0 1
        %1479 = vperm.xlu0 %1478, %v1388
        %v1480 = vpop.permute.xlu0 %1479
        %1482 = vset.pattern.permute.xlu0 1
        %1483 = vperm.xlu0 %1482, %v1389
        %v1484 = vpop.permute.xlu0 %1483
        %v1486 = vmul.f32 %v1480, %v1341
        %v1487 = vmul.f32 %v1480, %v1345
        %v1488 = vmul.f32 %v1480, %v1349
        %v1489 = vmul.f32 %v1480, %v1353
        %v1490 = vmul.f32 %v1480, %v1357
        %v1491 = vmul.f32 %v1484, %v1341
        %v1492 = vmul.f32 %v1484, %v1345
        %v1493 = vmul.f32 %v1484, %v1349
        %v1494 = vmul.f32 %v1484, %v1353
        %v1495 = vmul.f32 %v1484, %v1357
        %v1496 = vadd.f32 %v1468, %v1486
        %v1497 = vadd.f32 %v1469, %v1487
        %v1498 = vadd.f32 %v1470, %v1488
        %v1499 = vadd.f32 %v1471, %v1489
        %v1500 = vadd.f32 %v1472, %v1490
        %v1501 = vadd.f32 %v1473, %v1491
        %v1502 = vadd.f32 %v1474, %v1492
        %v1503 = vadd.f32 %v1475, %v1493
        %v1504 = vadd.f32 %v1476, %v1494
        %v1505 = vadd.f32 %v1477, %v1495
        %v1506 = vtanh.pop %v1448
        %v1507 = vtanh.pop %v1449
        %v1508 = vtanh.pop %v1450
        %v1509 = vtanh.pop %v1451
        %v1510 = vtanh.pop %v1452
        %v1511 = vtanh.pop %v1453
        %v1512 = vtanh.pop %v1454
        %v1513 = vtanh.pop %v1455
        %v1514 = vtanh.pop %v1456
        %v1515 = vtanh.pop %v1457
        %v1516 = vxor.u32 %v1496, 2147483648
        %v1517 = vxor.u32 %v1497, 2147483648
        %v1518 = vxor.u32 %v1498, 2147483648
        %v1519 = vxor.u32 %v1499, 2147483648
        %v1520 = vxor.u32 %v1500, 2147483648
        %v1521 = vxor.u32 %v1501, 2147483648
        %v1522 = vxor.u32 %v1502, 2147483648
        %v1523 = vxor.u32 %v1503, 2147483648
        %v1524 = vxor.u32 %v1504, 2147483648
        %v1525 = vxor.u32 %v1505, 2147483648
        %v1526 = vmul.f32 %v1516, 1.442695
        %v1527 = vpow.pop %v1526
        %v1528 = vmul.f32 %v1517, 1.442695
        %v1529 = vpow.pop %v1528
        %v1530 = vmul.f32 %v1518, 1.442695
        %v1531 = vpow.pop %v1530
        %v1532 = vmul.f32 %v1519, 1.442695
        %v1533 = vpow.pop %v1532
        %v1534 = vmul.f32 %v1520, 1.442695
        %v1535 = vpow.pop %v1534
        %v1536 = vmul.f32 %v1521, 1.442695
        %v1537 = vpow.pop %v1536
        %v1538 = vmul.f32 %v1522, 1.442695
        %v1539 = vpow.pop %v1538
        %v1540 = vmul.f32 %v1523, 1.442695
        %v1541 = vpow.pop %v1540
        %v1542 = vmul.f32 %v1524, 1.442695
        %v1543 = vpow.pop %v1542
        %v1544 = vmul.f32 %v1525, 1.442695
        %v1545 = vpow.pop %v1544
        %v1546 = vadd.f32 %v1527, 1.0
        %v1547 = vadd.f32 %v1529, 1.0
        %v1548 = vadd.f32 %v1531, 1.0
        %v1549 = vadd.f32 %v1533, 1.0
        %v1550 = vadd.f32 %v1535, 1.0
        %v1551 = vadd.f32 %v1537, 1.0
        %v1552 = vadd.f32 %v1539, 1.0
        %v1553 = vadd.f32 %v1541, 1.0
        %v1554 = vadd.f32 %v1543, 1.0
        %v1555 = vadd.f32 %v1545, 1.0
        %v1556 = vrcp.pop %v1546
        %v1557 = vmul.f32 1.0, %v1556
        %v1558 = vrcp.pop %v1547
        %v1559 = vmul.f32 1.0, %v1558
        %v1560 = vrcp.pop %v1548
        %v1561 = vmul.f32 1.0, %v1560
        %v1562 = vrcp.pop %v1549
        %v1563 = vmul.f32 1.0, %v1562
        %v1564 = vrcp.pop %v1550
        %v1565 = vmul.f32 1.0, %v1564
        %v1566 = vrcp.pop %v1551
        %v1567 = vmul.f32 1.0, %v1566
        %v1568 = vrcp.pop %v1552
        %v1569 = vmul.f32 1.0, %v1568
        %v1570 = vrcp.pop %v1553
        %v1571 = vmul.f32 1.0, %v1570
        %v1572 = vrcp.pop %v1554
        %v1573 = vmul.f32 1.0, %v1572
        %v1574 = vrcp.pop %v1555
        %v1575 = vmul.f32 1.0, %v1574
        %v1576 = vmul.f32 %v1506, %v1557
        %v1577 = vmul.f32 %v1507, %v1559
        %v1578 = vmul.f32 %v1508, %v1561
        %v1579 = vmul.f32 %v1509, %v1563
        %v1580 = vmul.f32 %v1510, %v1565
        %v1581 = vmul.f32 %v1511, %v1567
        %v1582 = vmul.f32 %v1512, %v1569
        %v1583 = vmul.f32 %v1513, %v1571
        %v1584 = vmul.f32 %v1514, %v1573
        %v1585 = vmul.f32 %v1515, %v1575
        %s1586 = scalar_lea.vmem %s3, 32
        %v1587 = vld [vmem:[%s1586] sm:$0xff]
        %v1588 = vld [vmem:[%s1586 + $0x8] sm:$0xff]
        %1590 = vset.pattern.permute.xlu0 0
        %1591 = vperm.xlu0 %1590, %v1587
        %v1592 = vpop.permute.xlu0 %1591
        %1595 = vset.pattern.permute.xlu0 0
        %1596 = vperm.xlu0 %1595, %v1588
        %v1597 = vpop.permute.xlu0 %1596
        %v1599 = vmul.f32 %v1592, %v1576
        %v1600 = vmul.f32 %v1592, %v1577
        %v1601 = vmul.f32 %v1592, %v1578
        %v1602 = vmul.f32 %v1592, %v1579
        %v1603 = vmul.f32 %v1592, %v1580
        %v1604 = vmul.f32 %v1597, %v1581
        %v1605 = vmul.f32 %v1597, %v1582
        %v1606 = vmul.f32 %v1597, %v1583
        %v1607 = vmul.f32 %v1597, %v1584
        %v1608 = vmul.f32 %v1597, %v1585
        %v1609 = vadd.f32 %v1599, %v1604
        %v1610 = vrot.slane %v1609, 4
        %v1611 = vadd.f32 %v1609, %v1610
        %v1612 = vrot.slane %v1611, 2
        %v1613 = vadd.f32 %v1611, %v1612
        %v1614 = vrot.slane %v1613, 1
        %v1615 = vadd.f32 %v1613, %v1614
        %v1616 = vadd.f32 %v1600, %v1605
        %v1617 = vrot.slane %v1616, 4
        %v1618 = vadd.f32 %v1616, %v1617
        %v1619 = vrot.slane %v1618, 2
        %v1620 = vadd.f32 %v1618, %v1619
        %v1621 = vrot.slane %v1620, 1
        %v1622 = vadd.f32 %v1620, %v1621
        %v1623 = vadd.f32 %v1601, %v1606
        %v1624 = vrot.slane %v1623, 4
        %v1625 = vadd.f32 %v1623, %v1624
        %v1626 = vrot.slane %v1625, 2
        %v1627 = vadd.f32 %v1625, %v1626
        %v1628 = vrot.slane %v1627, 1
        %v1629 = vadd.f32 %v1627, %v1628
        %v1630 = vadd.f32 %v1602, %v1607
        %v1631 = vrot.slane %v1630, 4
        %v1632 = vadd.f32 %v1630, %v1631
        %v1633 = vrot.slane %v1632, 2
        %v1634 = vadd.f32 %v1632, %v1633
        %v1635 = vrot.slane %v1634, 1
        %v1636 = vadd.f32 %v1634, %v1635
        %v1637 = vadd.f32 %v1603, %v1608
        %v1638 = vrot.slane %v1637, 4
        %v1639 = vadd.f32 %v1637, %v1638
        %v1640 = vrot.slane %v1639, 2
        %v1641 = vadd.f32 %v1639, %v1640
        %v1642 = vrot.slane %v1641, 1
        %v1643 = vadd.f32 %v1641, %v1642
        %v1644 = vadd.f32 %v1281, %v1615
        %v1645 = vadd.f32 %v1282, %v1622
        %v1646 = vadd.f32 %v1283, %v1629
        %v1647 = vadd.f32 %v1284, %v1636
        %v1648 = vadd.f32 %v1285, %v1643
        %v1654 = vcombine.low %v1615, %v1622
        %v1655 = vcombine.low %v1629, %v1636
        %v1657 = vunpack.c.l.s4 1966171168
        %v1658 = vunpack.c.0.s8 %v1657
        %v1659 = vlaneseq
        %v1660 = vshrl.u32 %v1659, 7
        %v1661 = vsub.s32 %v1658, %v1660
        %v1662 = vrot.slane %v1654, %v1661
        %v1664 = vunpack.c.l.s4 1966171168
        %v1665 = vunpack.c.0.s8 %v1664
        %v1666 = vlaneseq
        %v1667 = vshrl.u32 %v1666, 7
        %v1668 = vsub.s32 %v1665, %v1667
        %v1669 = vrot.slane %v1655, %v1668
        %v1671 = vunpack.c.l.s4 1966171168
        %v1672 = vunpack.c.0.s8 %v1671
        %v1673 = vlaneseq
        %v1674 = vshrl.u32 %v1673, 7
        %v1675 = vsub.s32 %v1672, %v1674
        %v1676 = vrot.slane %v1643, %v1675
        %v1677 = vcombine.low %v1662, %v1669
        %v1679 = vunpack.c.l.s4 1966171168
        %v1680 = vunpack.c.0.s8 %v1679
        %v1681 = vlaneseq
        %v1682 = vshrl.u32 %v1681, 7
        %v1683 = vsub.s32 %v1680, %v1682
        %v1684 = vrot.slane %v1677, %v1683
        %v1686 = vunpack.c.l.s4 1966171168
        %v1687 = vunpack.c.0.s8 %v1686
        %v1688 = vlaneseq
        %v1689 = vshrl.u32 %v1688, 7
        %v1690 = vsub.s32 %v1687, %v1689
        %v1691 = vrot.slane %v1676, %v1690
        %v1692 = vcombine.low %v1684, %v1691
        %v1694 = vadd.f32 %v1331, %v1692
        %vm1695 = vcmp.ge.s32.totalorder %v603, 8
        %vm1696 = vcmp.ge.s32.totalorder %v604, 8
        %vm1697 = vcmp.ge.s32.totalorder %v605, 8
        %vm1698 = vcmp.ge.s32.totalorder %v606, 8
        %vm1699 = vcmp.ge.s32.totalorder %v607, 8
        %v1701 = vlaneseq
        %v1702 = vshrl.u32 %v1701, 7
        %v1703 = vsub.s32 0, %v1702
        %v1704 = vrot.slane %v1694, %v1703
        %v1705 = vlaneseq
        %v1706 = vshrl.u32 %v1705, 7
        %v1707 = vsub.s32 1, %v1706
        %v1708 = vrot.slane %v1694, %v1707
        %v1709 = vlaneseq
        %v1710 = vshrl.u32 %v1709, 7
        %v1711 = vsub.s32 2, %v1710
        %v1712 = vrot.slane %v1694, %v1711
        %v1713 = vlaneseq
        %v1714 = vshrl.u32 %v1713, 7
        %v1715 = vsub.s32 3, %v1714
        %v1716 = vrot.slane %v1694, %v1715
        %v1717 = vlaneseq
        %v1718 = vshrl.u32 %v1717, 7
        %v1719 = vsub.s32 4, %v1718
        %v1720 = vrot.slane %v1694, %v1719
        %1726 = vrot.lane.b32.xlu0 %v1704, 8
        %v1727 = vpop.permute.xlu0 %1726
        %1728 = vrot.lane.b32.xlu0 %v1708, 8
        %v1729 = vpop.permute.xlu0 %1728
        %1730 = vrot.lane.b32.xlu0 %v1712, 8
        %v1731 = vpop.permute.xlu0 %1730
        %1732 = vrot.lane.b32.xlu0 %v1716, 8
        %v1733 = vpop.permute.xlu0 %1732
        %1734 = vrot.lane.b32.xlu0 %v1720, 8
        %v1735 = vpop.permute.xlu0 %1734
        %vm1736 = vcmp.lt.s32.totalorder %v603, 8
        %v1737 = vsel %vm1736, %v1733, %v1735
        %v1738 = vsel %vm1736, %v1731, %v1733
        %v1739 = vsel %vm1736, %v1729, %v1731
        %v1740 = vsel %vm1736, %v1727, %v1729
        %v1741 = vsel %vm1736, %v1735, %v1727
        %v1742 = vsel %vm1695, %v1741, 0.0
        %v1743 = vsel %vm1696, %v1740, 0.0
        %v1744 = vsel %vm1697, %v1739, 0.0
        %v1745 = vsel %vm1698, %v1738, 0.0
        %v1746 = vsel %vm1699, %v1737, 0.0
        %s1747 = scalar_lea.vmem %s1, 48
        %v1748 = vld [vmem:[%s1747] sm:$0xff]
        %v1749 = vld [vmem:[%s1747 + $0x8] sm:$0xff]
        %s1750 = scalar_lea.vmem %s2, 48
        %v1751 = vld [vmem:[%s1750] sm:$0xff]
        %v1752 = vld [vmem:[%s1750 + $0x8] sm:$0xff]
        %1754 = vset.pattern.permute.xlu0 0
        %1755 = vperm.xlu0 %1754, %v1748
        %v1756 = vpop.permute.xlu0 %1755
        %1759 = vset.pattern.permute.xlu0 0
        %1760 = vperm.xlu0 %1759, %v1749
        %v1761 = vpop.permute.xlu0 %1760
        %v1763 = vlaneseq
        %v1764 = vshrl.u32 %v1763, 7
        %v1765 = vsub.s32 0, %v1764
        %v1766 = vrot.slane %v1742, %v1765
        %v1767 = vlaneseq
        %v1768 = vshrl.u32 %v1767, 7
        %v1769 = vsub.s32 0, %v1768
        %v1770 = vrot.slane %v1743, %v1769
        %v1771 = vlaneseq
        %v1772 = vshrl.u32 %v1771, 7
        %v1773 = vsub.s32 0, %v1772
        %v1774 = vrot.slane %v1744, %v1773
        %v1775 = vlaneseq
        %v1776 = vshrl.u32 %v1775, 7
        %v1777 = vsub.s32 0, %v1776
        %v1778 = vrot.slane %v1745, %v1777
        %v1779 = vlaneseq
        %v1780 = vshrl.u32 %v1779, 7
        %v1781 = vsub.s32 0, %v1780
        %v1782 = vrot.slane %v1746, %v1781
        %v1783 = vmul.f32 %v1756, %v1766
        %v1784 = vmul.f32 %v1756, %v1770
        %v1785 = vmul.f32 %v1756, %v1774
        %v1786 = vmul.f32 %v1756, %v1778
        %v1787 = vmul.f32 %v1756, %v1782
        %v1788 = vmul.f32 %v1761, %v1766
        %v1789 = vmul.f32 %v1761, %v1770
        %v1790 = vmul.f32 %v1761, %v1774
        %v1791 = vmul.f32 %v1761, %v1778
        %v1792 = vmul.f32 %v1761, %v1782
        %1793 = vset.pattern.permute.xlu0 1
        %1794 = vperm.xlu0 %1793, %v1748
        %v1795 = vpop.permute.xlu0 %1794
        %1797 = vset.pattern.permute.xlu0 1
        %1798 = vperm.xlu0 %1797, %v1749
        %v1799 = vpop.permute.xlu0 %1798
        %v1801 = vmul.f32 %v1795, %v1704
        %v1802 = vmul.f32 %v1795, %v1708
        %v1803 = vmul.f32 %v1795, %v1712
        %v1804 = vmul.f32 %v1795, %v1716
        %v1805 = vmul.f32 %v1795, %v1720
        %v1806 = vmul.f32 %v1799, %v1704
        %v1807 = vmul.f32 %v1799, %v1708
        %v1808 = vmul.f32 %v1799, %v1712
        %v1809 = vmul.f32 %v1799, %v1716
        %v1810 = vmul.f32 %v1799, %v1720
        %v1811 = vadd.f32 %v1783, %v1801
        %v1812 = vadd.f32 %v1784, %v1802
        %v1813 = vadd.f32 %v1785, %v1803
        %v1814 = vadd.f32 %v1786, %v1804
        %v1815 = vadd.f32 %v1787, %v1805
        %v1816 = vadd.f32 %v1788, %v1806
        %v1817 = vadd.f32 %v1789, %v1807
        %v1818 = vadd.f32 %v1790, %v1808
        %v1819 = vadd.f32 %v1791, %v1809
        %v1820 = vadd.f32 %v1792, %v1810
        %1822 = vset.pattern.permute.xlu0 0
        %1823 = vperm.xlu0 %1822, %v1751
        %v1824 = vpop.permute.xlu0 %1823
        %1827 = vset.pattern.permute.xlu0 0
        %1828 = vperm.xlu0 %1827, %v1752
        %v1829 = vpop.permute.xlu0 %1828
        %v1831 = vmul.f32 %v1824, %v1766
        %v1832 = vmul.f32 %v1824, %v1770
        %v1833 = vmul.f32 %v1824, %v1774
        %v1834 = vmul.f32 %v1824, %v1778
        %v1835 = vmul.f32 %v1824, %v1782
        %v1836 = vmul.f32 %v1829, %v1766
        %v1837 = vmul.f32 %v1829, %v1770
        %v1838 = vmul.f32 %v1829, %v1774
        %v1839 = vmul.f32 %v1829, %v1778
        %v1840 = vmul.f32 %v1829, %v1782
        %1841 = vset.pattern.permute.xlu0 1
        %1842 = vperm.xlu0 %1841, %v1751
        %v1843 = vpop.permute.xlu0 %1842
        %1845 = vset.pattern.permute.xlu0 1
        %1846 = vperm.xlu0 %1845, %v1752
        %v1847 = vpop.permute.xlu0 %1846
        %v1849 = vmul.f32 %v1843, %v1704
        %v1850 = vmul.f32 %v1843, %v1708
        %v1851 = vmul.f32 %v1843, %v1712
        %v1852 = vmul.f32 %v1843, %v1716
        %v1853 = vmul.f32 %v1843, %v1720
        %v1854 = vmul.f32 %v1847, %v1704
        %v1855 = vmul.f32 %v1847, %v1708
        %v1856 = vmul.f32 %v1847, %v1712
        %v1857 = vmul.f32 %v1847, %v1716
        %v1858 = vmul.f32 %v1847, %v1720
        %v1859 = vadd.f32 %v1831, %v1849
        %v1860 = vadd.f32 %v1832, %v1850
        %v1861 = vadd.f32 %v1833, %v1851
        %v1862 = vadd.f32 %v1834, %v1852
        %v1863 = vadd.f32 %v1835, %v1853
        %v1864 = vadd.f32 %v1836, %v1854
        %v1865 = vadd.f32 %v1837, %v1855
        %v1866 = vadd.f32 %v1838, %v1856
        %v1867 = vadd.f32 %v1839, %v1857
        %v1868 = vadd.f32 %v1840, %v1858
        %v1869 = vtanh.pop %v1811
        %v1870 = vtanh.pop %v1812
        %v1871 = vtanh.pop %v1813
        %v1872 = vtanh.pop %v1814
        %v1873 = vtanh.pop %v1815
        %v1874 = vtanh.pop %v1816
        %v1875 = vtanh.pop %v1817
        %v1876 = vtanh.pop %v1818
        %v1877 = vtanh.pop %v1819
        %v1878 = vtanh.pop %v1820
        %v1879 = vxor.u32 %v1859, 2147483648
        %v1880 = vxor.u32 %v1860, 2147483648
        %v1881 = vxor.u32 %v1861, 2147483648
        %v1882 = vxor.u32 %v1862, 2147483648
        %v1883 = vxor.u32 %v1863, 2147483648
        %v1884 = vxor.u32 %v1864, 2147483648
        %v1885 = vxor.u32 %v1865, 2147483648
        %v1886 = vxor.u32 %v1866, 2147483648
        %v1887 = vxor.u32 %v1867, 2147483648
        %v1888 = vxor.u32 %v1868, 2147483648
        %v1889 = vmul.f32 %v1879, 1.442695
        %v1890 = vpow.pop %v1889
        %v1891 = vmul.f32 %v1880, 1.442695
        %v1892 = vpow.pop %v1891
        %v1893 = vmul.f32 %v1881, 1.442695
        %v1894 = vpow.pop %v1893
        %v1895 = vmul.f32 %v1882, 1.442695
        %v1896 = vpow.pop %v1895
        %v1897 = vmul.f32 %v1883, 1.442695
        %v1898 = vpow.pop %v1897
        %v1899 = vmul.f32 %v1884, 1.442695
        %v1900 = vpow.pop %v1899
        %v1901 = vmul.f32 %v1885, 1.442695
        %v1902 = vpow.pop %v1901
        %v1903 = vmul.f32 %v1886, 1.442695
        %v1904 = vpow.pop %v1903
        %v1905 = vmul.f32 %v1887, 1.442695
        %v1906 = vpow.pop %v1905
        %v1907 = vmul.f32 %v1888, 1.442695
        %v1908 = vpow.pop %v1907
        %v1909 = vadd.f32 %v1890, 1.0
        %v1910 = vadd.f32 %v1892, 1.0
        %v1911 = vadd.f32 %v1894, 1.0
        %v1912 = vadd.f32 %v1896, 1.0
        %v1913 = vadd.f32 %v1898, 1.0
        %v1914 = vadd.f32 %v1900, 1.0
        %v1915 = vadd.f32 %v1902, 1.0
        %v1916 = vadd.f32 %v1904, 1.0
        %v1917 = vadd.f32 %v1906, 1.0
        %v1918 = vadd.f32 %v1908, 1.0
        %v1919 = vrcp.pop %v1909
        %v1920 = vmul.f32 1.0, %v1919
        %v1921 = vrcp.pop %v1910
        %v1922 = vmul.f32 1.0, %v1921
        %v1923 = vrcp.pop %v1911
        %v1924 = vmul.f32 1.0, %v1923
        %v1925 = vrcp.pop %v1912
        %v1926 = vmul.f32 1.0, %v1925
        %v1927 = vrcp.pop %v1913
        %v1928 = vmul.f32 1.0, %v1927
        %v1929 = vrcp.pop %v1914
        %v1930 = vmul.f32 1.0, %v1929
        %v1931 = vrcp.pop %v1915
        %v1932 = vmul.f32 1.0, %v1931
        %v1933 = vrcp.pop %v1916
        %v1934 = vmul.f32 1.0, %v1933
        %v1935 = vrcp.pop %v1917
        %v1936 = vmul.f32 1.0, %v1935
        %v1937 = vrcp.pop %v1918
        %v1938 = vmul.f32 1.0, %v1937
        %v1939 = vmul.f32 %v1869, %v1920
        %v1940 = vmul.f32 %v1870, %v1922
        %v1941 = vmul.f32 %v1871, %v1924
        %v1942 = vmul.f32 %v1872, %v1926
        %v1943 = vmul.f32 %v1873, %v1928
        %v1944 = vmul.f32 %v1874, %v1930
        %v1945 = vmul.f32 %v1875, %v1932
        %v1946 = vmul.f32 %v1876, %v1934
        %v1947 = vmul.f32 %v1877, %v1936
        %v1948 = vmul.f32 %v1878, %v1938
        %s1949 = scalar_lea.vmem %s3, 48
        %v1950 = vld [vmem:[%s1949] sm:$0xff]
        %v1951 = vld [vmem:[%s1949 + $0x8] sm:$0xff]
        %1953 = vset.pattern.permute.xlu0 0
        %1954 = vperm.xlu0 %1953, %v1950
        %v1955 = vpop.permute.xlu0 %1954
        %1958 = vset.pattern.permute.xlu0 0
        %1959 = vperm.xlu0 %1958, %v1951
        %v1960 = vpop.permute.xlu0 %1959
        %v1962 = vmul.f32 %v1955, %v1939
        %v1963 = vmul.f32 %v1955, %v1940
        %v1964 = vmul.f32 %v1955, %v1941
        %v1965 = vmul.f32 %v1955, %v1942
        %v1966 = vmul.f32 %v1955, %v1943
        %v1967 = vmul.f32 %v1960, %v1944
        %v1968 = vmul.f32 %v1960, %v1945
        %v1969 = vmul.f32 %v1960, %v1946
        %v1970 = vmul.f32 %v1960, %v1947
        %v1971 = vmul.f32 %v1960, %v1948
        %v1972 = vadd.f32 %v1962, %v1967
        %v1973 = vrot.slane %v1972, 4
        %v1974 = vadd.f32 %v1972, %v1973
        %v1975 = vrot.slane %v1974, 2
        %v1976 = vadd.f32 %v1974, %v1975
        %v1977 = vrot.slane %v1976, 1
        %v1978 = vadd.f32 %v1976, %v1977
        %v1979 = vadd.f32 %v1963, %v1968
        %v1980 = vrot.slane %v1979, 4
        %v1981 = vadd.f32 %v1979, %v1980
        %v1982 = vrot.slane %v1981, 2
        %v1983 = vadd.f32 %v1981, %v1982
        %v1984 = vrot.slane %v1983, 1
        %v1985 = vadd.f32 %v1983, %v1984
        %v1986 = vadd.f32 %v1964, %v1969
        %v1987 = vrot.slane %v1986, 4
        %v1988 = vadd.f32 %v1986, %v1987
        %v1989 = vrot.slane %v1988, 2
        %v1990 = vadd.f32 %v1988, %v1989
        %v1991 = vrot.slane %v1990, 1
        %v1992 = vadd.f32 %v1990, %v1991
        %v1993 = vadd.f32 %v1965, %v1970
        %v1994 = vrot.slane %v1993, 4
        %v1995 = vadd.f32 %v1993, %v1994
        %v1996 = vrot.slane %v1995, 2
        %v1997 = vadd.f32 %v1995, %v1996
        %v1998 = vrot.slane %v1997, 1
        %v1999 = vadd.f32 %v1997, %v1998
        %v2000 = vadd.f32 %v1966, %v1971
        %v2001 = vrot.slane %v2000, 4
        %v2002 = vadd.f32 %v2000, %v2001
        %v2003 = vrot.slane %v2002, 2
        %v2004 = vadd.f32 %v2002, %v2003
        %v2005 = vrot.slane %v2004, 1
        %v2006 = vadd.f32 %v2004, %v2005
        %v2007 = vadd.f32 %v1644, %v1978
        %v2008 = vadd.f32 %v1645, %v1985
        %v2009 = vadd.f32 %v1646, %v1992
        %v2010 = vadd.f32 %v1647, %v1999
        %v2011 = vadd.f32 %v1648, %v2006
        %v2017 = vcombine.low %v1978, %v1985
        %v2018 = vcombine.low %v1992, %v1999
        %v2020 = vunpack.c.l.s4 1966171168
        %v2021 = vunpack.c.0.s8 %v2020
        %v2022 = vlaneseq
        %v2023 = vshrl.u32 %v2022, 7
        %v2024 = vsub.s32 %v2021, %v2023
        %v2025 = vrot.slane %v2017, %v2024
        %v2027 = vunpack.c.l.s4 1966171168
        %v2028 = vunpack.c.0.s8 %v2027
        %v2029 = vlaneseq
        %v2030 = vshrl.u32 %v2029, 7
        %v2031 = vsub.s32 %v2028, %v2030
        %v2032 = vrot.slane %v2018, %v2031
        %v2034 = vunpack.c.l.s4 1966171168
        %v2035 = vunpack.c.0.s8 %v2034
        %v2036 = vlaneseq
        %v2037 = vshrl.u32 %v2036, 7
        %v2038 = vsub.s32 %v2035, %v2037
        %v2039 = vrot.slane %v2006, %v2038
        %v2040 = vcombine.low %v2025, %v2032
        %v2042 = vunpack.c.l.s4 1966171168
        %v2043 = vunpack.c.0.s8 %v2042
        %v2044 = vlaneseq
        %v2045 = vshrl.u32 %v2044, 7
        %v2046 = vsub.s32 %v2043, %v2045
        %v2047 = vrot.slane %v2040, %v2046
        %v2049 = vunpack.c.l.s4 1966171168
        %v2050 = vunpack.c.0.s8 %v2049
        %v2051 = vlaneseq
        %v2052 = vshrl.u32 %v2051, 7
        %v2053 = vsub.s32 %v2050, %v2052
        %v2054 = vrot.slane %v2039, %v2053
        %v2055 = vcombine.low %v2047, %v2054
        %v2057 = vadd.f32 %v1694, %v2055
        %vm2058 = vcmp.ge.s32.totalorder %v603, 16
        %vm2059 = vcmp.ge.s32.totalorder %v604, 16
        %vm2060 = vcmp.ge.s32.totalorder %v605, 16
        %vm2061 = vcmp.ge.s32.totalorder %v606, 16
        %vm2062 = vcmp.ge.s32.totalorder %v607, 16
        %v2064 = vlaneseq
        %v2065 = vshrl.u32 %v2064, 7
        %v2066 = vsub.s32 0, %v2065
        %v2067 = vrot.slane %v2057, %v2066
        %v2068 = vlaneseq
        %v2069 = vshrl.u32 %v2068, 7
        %v2070 = vsub.s32 1, %v2069
        %v2071 = vrot.slane %v2057, %v2070
        %v2072 = vlaneseq
        %v2073 = vshrl.u32 %v2072, 7
        %v2074 = vsub.s32 2, %v2073
        %v2075 = vrot.slane %v2057, %v2074
        %v2076 = vlaneseq
        %v2077 = vshrl.u32 %v2076, 7
        %v2078 = vsub.s32 3, %v2077
        %v2079 = vrot.slane %v2057, %v2078
        %v2080 = vlaneseq
        %v2081 = vshrl.u32 %v2080, 7
        %v2082 = vsub.s32 4, %v2081
        %v2083 = vrot.slane %v2057, %v2082
        %2089 = vrot.lane.b32.xlu0 %v2067, 16
        %v2090 = vpop.permute.xlu0 %2089
        %2091 = vrot.lane.b32.xlu0 %v2071, 16
        %v2092 = vpop.permute.xlu0 %2091
        %2093 = vrot.lane.b32.xlu0 %v2075, 16
        %v2094 = vpop.permute.xlu0 %2093
        %2095 = vrot.lane.b32.xlu0 %v2079, 16
        %v2096 = vpop.permute.xlu0 %2095
        %2097 = vrot.lane.b32.xlu0 %v2083, 16
        %v2098 = vpop.permute.xlu0 %2097
        %vm2099 = vcmp.lt.s32.totalorder %v603, 16
        %v2100 = vsel %vm2099, %v2096, %v2098
        %v2101 = vsel %vm2099, %v2094, %v2096
        %v2102 = vsel %vm2099, %v2092, %v2094
        %v2103 = vsel %vm2099, %v2090, %v2092
        %v2104 = vsel %vm2099, %v2098, %v2090
        %v2105 = vsel %vm2058, %v2104, 0.0
        %v2106 = vsel %vm2059, %v2103, 0.0
        %v2107 = vsel %vm2060, %v2102, 0.0
        %v2108 = vsel %vm2061, %v2101, 0.0
        %v2109 = vsel %vm2062, %v2100, 0.0
        %s2110 = scalar_lea.vmem %s1, 64
        %v2111 = vld [vmem:[%s2110] sm:$0xff]
        %v2112 = vld [vmem:[%s2110 + $0x8] sm:$0xff]
        %s2113 = scalar_lea.vmem %s2, 64
        %v2114 = vld [vmem:[%s2113] sm:$0xff]
        %v2115 = vld [vmem:[%s2113 + $0x8] sm:$0xff]
        %2117 = vset.pattern.permute.xlu0 0
        %2118 = vperm.xlu0 %2117, %v2111
        %v2119 = vpop.permute.xlu0 %2118
        %2122 = vset.pattern.permute.xlu0 0
        %2123 = vperm.xlu0 %2122, %v2112
        %v2124 = vpop.permute.xlu0 %2123
        %v2126 = vlaneseq
        %v2127 = vshrl.u32 %v2126, 7
        %v2128 = vsub.s32 0, %v2127
        %v2129 = vrot.slane %v2105, %v2128
        %v2130 = vlaneseq
        %v2131 = vshrl.u32 %v2130, 7
        %v2132 = vsub.s32 0, %v2131
        %v2133 = vrot.slane %v2106, %v2132
        %v2134 = vlaneseq
        %v2135 = vshrl.u32 %v2134, 7
        %v2136 = vsub.s32 0, %v2135
        %v2137 = vrot.slane %v2107, %v2136
        %v2138 = vlaneseq
        %v2139 = vshrl.u32 %v2138, 7
        %v2140 = vsub.s32 0, %v2139
        %v2141 = vrot.slane %v2108, %v2140
        %v2142 = vlaneseq
        %v2143 = vshrl.u32 %v2142, 7
        %v2144 = vsub.s32 0, %v2143
        %v2145 = vrot.slane %v2109, %v2144
        %v2146 = vmul.f32 %v2119, %v2129
        %v2147 = vmul.f32 %v2119, %v2133
        %v2148 = vmul.f32 %v2119, %v2137
        %v2149 = vmul.f32 %v2119, %v2141
        %v2150 = vmul.f32 %v2119, %v2145
        %v2151 = vmul.f32 %v2124, %v2129
        %v2152 = vmul.f32 %v2124, %v2133
        %v2153 = vmul.f32 %v2124, %v2137
        %v2154 = vmul.f32 %v2124, %v2141
        %v2155 = vmul.f32 %v2124, %v2145
        %2156 = vset.pattern.permute.xlu0 1
        %2157 = vperm.xlu0 %2156, %v2111
        %v2158 = vpop.permute.xlu0 %2157
        %2160 = vset.pattern.permute.xlu0 1
        %2161 = vperm.xlu0 %2160, %v2112
        %v2162 = vpop.permute.xlu0 %2161
        %v2164 = vmul.f32 %v2158, %v2067
        %v2165 = vmul.f32 %v2158, %v2071
        %v2166 = vmul.f32 %v2158, %v2075
        %v2167 = vmul.f32 %v2158, %v2079
        %v2168 = vmul.f32 %v2158, %v2083
        %v2169 = vmul.f32 %v2162, %v2067
        %v2170 = vmul.f32 %v2162, %v2071
        %v2171 = vmul.f32 %v2162, %v2075
        %v2172 = vmul.f32 %v2162, %v2079
        %v2173 = vmul.f32 %v2162, %v2083
        %v2174 = vadd.f32 %v2146, %v2164
        %v2175 = vadd.f32 %v2147, %v2165
        %v2176 = vadd.f32 %v2148, %v2166
        %v2177 = vadd.f32 %v2149, %v2167
        %v2178 = vadd.f32 %v2150, %v2168
        %v2179 = vadd.f32 %v2151, %v2169
        %v2180 = vadd.f32 %v2152, %v2170
        %v2181 = vadd.f32 %v2153, %v2171
        %v2182 = vadd.f32 %v2154, %v2172
        %v2183 = vadd.f32 %v2155, %v2173
        %2185 = vset.pattern.permute.xlu0 0
        %2186 = vperm.xlu0 %2185, %v2114
        %v2187 = vpop.permute.xlu0 %2186
        %2190 = vset.pattern.permute.xlu0 0
        %2191 = vperm.xlu0 %2190, %v2115
        %v2192 = vpop.permute.xlu0 %2191
        %v2194 = vmul.f32 %v2187, %v2129
        %v2195 = vmul.f32 %v2187, %v2133
        %v2196 = vmul.f32 %v2187, %v2137
        %v2197 = vmul.f32 %v2187, %v2141
        %v2198 = vmul.f32 %v2187, %v2145
        %v2199 = vmul.f32 %v2192, %v2129
        %v2200 = vmul.f32 %v2192, %v2133
        %v2201 = vmul.f32 %v2192, %v2137
        %v2202 = vmul.f32 %v2192, %v2141
        %v2203 = vmul.f32 %v2192, %v2145
        %2204 = vset.pattern.permute.xlu0 1
        %2205 = vperm.xlu0 %2204, %v2114
        %v2206 = vpop.permute.xlu0 %2205
        %2208 = vset.pattern.permute.xlu0 1
        %2209 = vperm.xlu0 %2208, %v2115
        %v2210 = vpop.permute.xlu0 %2209
        %v2212 = vmul.f32 %v2206, %v2067
        %v2213 = vmul.f32 %v2206, %v2071
        %v2214 = vmul.f32 %v2206, %v2075
        %v2215 = vmul.f32 %v2206, %v2079
        %v2216 = vmul.f32 %v2206, %v2083
        %v2217 = vmul.f32 %v2210, %v2067
        %v2218 = vmul.f32 %v2210, %v2071
        %v2219 = vmul.f32 %v2210, %v2075
        %v2220 = vmul.f32 %v2210, %v2079
        %v2221 = vmul.f32 %v2210, %v2083
        %v2222 = vadd.f32 %v2194, %v2212
        %v2223 = vadd.f32 %v2195, %v2213
        %v2224 = vadd.f32 %v2196, %v2214
        %v2225 = vadd.f32 %v2197, %v2215
        %v2226 = vadd.f32 %v2198, %v2216
        %v2227 = vadd.f32 %v2199, %v2217
        %v2228 = vadd.f32 %v2200, %v2218
        %v2229 = vadd.f32 %v2201, %v2219
        %v2230 = vadd.f32 %v2202, %v2220
        %v2231 = vadd.f32 %v2203, %v2221
        %v2232 = vtanh.pop %v2174
        %v2233 = vtanh.pop %v2175
        %v2234 = vtanh.pop %v2176
        %v2235 = vtanh.pop %v2177
        %v2236 = vtanh.pop %v2178
        %v2237 = vtanh.pop %v2179
        %v2238 = vtanh.pop %v2180
        %v2239 = vtanh.pop %v2181
        %v2240 = vtanh.pop %v2182
        %v2241 = vtanh.pop %v2183
        %v2242 = vxor.u32 %v2222, 2147483648
        %v2243 = vxor.u32 %v2223, 2147483648
        %v2244 = vxor.u32 %v2224, 2147483648
        %v2245 = vxor.u32 %v2225, 2147483648
        %v2246 = vxor.u32 %v2226, 2147483648
        %v2247 = vxor.u32 %v2227, 2147483648
        %v2248 = vxor.u32 %v2228, 2147483648
        %v2249 = vxor.u32 %v2229, 2147483648
        %v2250 = vxor.u32 %v2230, 2147483648
        %v2251 = vxor.u32 %v2231, 2147483648
        %v2252 = vmul.f32 %v2242, 1.442695
        %v2253 = vpow.pop %v2252
        %v2254 = vmul.f32 %v2243, 1.442695
        %v2255 = vpow.pop %v2254
        %v2256 = vmul.f32 %v2244, 1.442695
        %v2257 = vpow.pop %v2256
        %v2258 = vmul.f32 %v2245, 1.442695
        %v2259 = vpow.pop %v2258
        %v2260 = vmul.f32 %v2246, 1.442695
        %v2261 = vpow.pop %v2260
        %v2262 = vmul.f32 %v2247, 1.442695
        %v2263 = vpow.pop %v2262
        %v2264 = vmul.f32 %v2248, 1.442695
        %v2265 = vpow.pop %v2264
        %v2266 = vmul.f32 %v2249, 1.442695
        %v2267 = vpow.pop %v2266
        %v2268 = vmul.f32 %v2250, 1.442695
        %v2269 = vpow.pop %v2268
        %v2270 = vmul.f32 %v2251, 1.442695
        %v2271 = vpow.pop %v2270
        %v2272 = vadd.f32 %v2253, 1.0
        %v2273 = vadd.f32 %v2255, 1.0
        %v2274 = vadd.f32 %v2257, 1.0
        %v2275 = vadd.f32 %v2259, 1.0
        %v2276 = vadd.f32 %v2261, 1.0
        %v2277 = vadd.f32 %v2263, 1.0
        %v2278 = vadd.f32 %v2265, 1.0
        %v2279 = vadd.f32 %v2267, 1.0
        %v2280 = vadd.f32 %v2269, 1.0
        %v2281 = vadd.f32 %v2271, 1.0
        %v2282 = vrcp.pop %v2272
        %v2283 = vmul.f32 1.0, %v2282
        %v2284 = vrcp.pop %v2273
        %v2285 = vmul.f32 1.0, %v2284
        %v2286 = vrcp.pop %v2274
        %v2287 = vmul.f32 1.0, %v2286
        %v2288 = vrcp.pop %v2275
        %v2289 = vmul.f32 1.0, %v2288
        %v2290 = vrcp.pop %v2276
        %v2291 = vmul.f32 1.0, %v2290
        %v2292 = vrcp.pop %v2277
        %v2293 = vmul.f32 1.0, %v2292
        %v2294 = vrcp.pop %v2278
        %v2295 = vmul.f32 1.0, %v2294
        %v2296 = vrcp.pop %v2279
        %v2297 = vmul.f32 1.0, %v2296
        %v2298 = vrcp.pop %v2280
        %v2299 = vmul.f32 1.0, %v2298
        %v2300 = vrcp.pop %v2281
        %v2301 = vmul.f32 1.0, %v2300
        %v2302 = vmul.f32 %v2232, %v2283
        %v2303 = vmul.f32 %v2233, %v2285
        %v2304 = vmul.f32 %v2234, %v2287
        %v2305 = vmul.f32 %v2235, %v2289
        %v2306 = vmul.f32 %v2236, %v2291
        %v2307 = vmul.f32 %v2237, %v2293
        %v2308 = vmul.f32 %v2238, %v2295
        %v2309 = vmul.f32 %v2239, %v2297
        %v2310 = vmul.f32 %v2240, %v2299
        %v2311 = vmul.f32 %v2241, %v2301
        %s2312 = scalar_lea.vmem %s3, 64
        %v2313 = vld [vmem:[%s2312] sm:$0xff]
        %v2314 = vld [vmem:[%s2312 + $0x8] sm:$0xff]
        %2316 = vset.pattern.permute.xlu0 0
        %2317 = vperm.xlu0 %2316, %v2313
        %v2318 = vpop.permute.xlu0 %2317
        %2321 = vset.pattern.permute.xlu0 0
        %2322 = vperm.xlu0 %2321, %v2314
        %v2323 = vpop.permute.xlu0 %2322
        %v2325 = vmul.f32 %v2318, %v2302
        %v2326 = vmul.f32 %v2318, %v2303
        %v2327 = vmul.f32 %v2318, %v2304
        %v2328 = vmul.f32 %v2318, %v2305
        %v2329 = vmul.f32 %v2318, %v2306
        %v2330 = vmul.f32 %v2323, %v2307
        %v2331 = vmul.f32 %v2323, %v2308
        %v2332 = vmul.f32 %v2323, %v2309
        %v2333 = vmul.f32 %v2323, %v2310
        %v2334 = vmul.f32 %v2323, %v2311
        %v2335 = vadd.f32 %v2325, %v2330
        %v2336 = vrot.slane %v2335, 4
        %v2337 = vadd.f32 %v2335, %v2336
        %v2338 = vrot.slane %v2337, 2
        %v2339 = vadd.f32 %v2337, %v2338
        %v2340 = vrot.slane %v2339, 1
        %v2341 = vadd.f32 %v2339, %v2340
        %v2342 = vadd.f32 %v2326, %v2331
        %v2343 = vrot.slane %v2342, 4
        %v2344 = vadd.f32 %v2342, %v2343
        %v2345 = vrot.slane %v2344, 2
        %v2346 = vadd.f32 %v2344, %v2345
        %v2347 = vrot.slane %v2346, 1
        %v2348 = vadd.f32 %v2346, %v2347
        %v2349 = vadd.f32 %v2327, %v2332
        %v2350 = vrot.slane %v2349, 4
        %v2351 = vadd.f32 %v2349, %v2350
        %v2352 = vrot.slane %v2351, 2
        %v2353 = vadd.f32 %v2351, %v2352
        %v2354 = vrot.slane %v2353, 1
        %v2355 = vadd.f32 %v2353, %v2354
        %v2356 = vadd.f32 %v2328, %v2333
        %v2357 = vrot.slane %v2356, 4
        %v2358 = vadd.f32 %v2356, %v2357
        %v2359 = vrot.slane %v2358, 2
        %v2360 = vadd.f32 %v2358, %v2359
        %v2361 = vrot.slane %v2360, 1
        %v2362 = vadd.f32 %v2360, %v2361
        %v2363 = vadd.f32 %v2329, %v2334
        %v2364 = vrot.slane %v2363, 4
        %v2365 = vadd.f32 %v2363, %v2364
        %v2366 = vrot.slane %v2365, 2
        %v2367 = vadd.f32 %v2365, %v2366
        %v2368 = vrot.slane %v2367, 1
        %v2369 = vadd.f32 %v2367, %v2368
        %v2370 = vadd.f32 %v2007, %v2341
        %v2371 = vadd.f32 %v2008, %v2348
        %v2372 = vadd.f32 %v2009, %v2355
        %v2373 = vadd.f32 %v2010, %v2362
        %v2374 = vadd.f32 %v2011, %v2369
        %v2380 = vcombine.low %v2341, %v2348
        %v2381 = vcombine.low %v2355, %v2362
        %v2383 = vunpack.c.l.s4 1966171168
        %v2384 = vunpack.c.0.s8 %v2383
        %v2385 = vlaneseq
        %v2386 = vshrl.u32 %v2385, 7
        %v2387 = vsub.s32 %v2384, %v2386
        %v2388 = vrot.slane %v2380, %v2387
        %v2390 = vunpack.c.l.s4 1966171168
        %v2391 = vunpack.c.0.s8 %v2390
        %v2392 = vlaneseq
        %v2393 = vshrl.u32 %v2392, 7
        %v2394 = vsub.s32 %v2391, %v2393
        %v2395 = vrot.slane %v2381, %v2394
        %v2397 = vunpack.c.l.s4 1966171168
        %v2398 = vunpack.c.0.s8 %v2397
        %v2399 = vlaneseq
        %v2400 = vshrl.u32 %v2399, 7
        %v2401 = vsub.s32 %v2398, %v2400
        %v2402 = vrot.slane %v2369, %v2401
        %v2403 = vcombine.low %v2388, %v2395
        %v2405 = vunpack.c.l.s4 1966171168
        %v2406 = vunpack.c.0.s8 %v2405
        %v2407 = vlaneseq
        %v2408 = vshrl.u32 %v2407, 7
        %v2409 = vsub.s32 %v2406, %v2408
        %v2410 = vrot.slane %v2403, %v2409
        %v2412 = vunpack.c.l.s4 1966171168
        %v2413 = vunpack.c.0.s8 %v2412
        %v2414 = vlaneseq
        %v2415 = vshrl.u32 %v2414, 7
        %v2416 = vsub.s32 %v2413, %v2415
        %v2417 = vrot.slane %v2402, %v2416
        %v2418 = vcombine.low %v2410, %v2417
        %v2420 = vadd.f32 %v2057, %v2418
        %vm2421 = vcmp.ge.s32.totalorder %v603, 32
        %vm2422 = vcmp.ge.s32.totalorder %v604, 32
        %vm2423 = vcmp.ge.s32.totalorder %v605, 32
        %vm2424 = vcmp.ge.s32.totalorder %v606, 32
        %vm2425 = vcmp.ge.s32.totalorder %v607, 32
        %v2427 = vlaneseq
        %v2428 = vshrl.u32 %v2427, 7
        %v2429 = vsub.s32 0, %v2428
        %v2430 = vrot.slane %v2420, %v2429
        %v2431 = vlaneseq
        %v2432 = vshrl.u32 %v2431, 7
        %v2433 = vsub.s32 1, %v2432
        %v2434 = vrot.slane %v2420, %v2433
        %v2435 = vlaneseq
        %v2436 = vshrl.u32 %v2435, 7
        %v2437 = vsub.s32 2, %v2436
        %v2438 = vrot.slane %v2420, %v2437
        %v2439 = vlaneseq
        %v2440 = vshrl.u32 %v2439, 7
        %v2441 = vsub.s32 3, %v2440
        %v2442 = vrot.slane %v2420, %v2441
        %v2443 = vlaneseq
        %v2444 = vshrl.u32 %v2443, 7
        %v2445 = vsub.s32 4, %v2444
        %v2446 = vrot.slane %v2420, %v2445
        %2452 = vrot.lane.b32.xlu0 %v2430, 32
        %v2453 = vpop.permute.xlu0 %2452
        %2454 = vrot.lane.b32.xlu0 %v2434, 32
        %v2455 = vpop.permute.xlu0 %2454
        %2456 = vrot.lane.b32.xlu0 %v2438, 32
        %v2457 = vpop.permute.xlu0 %2456
        %2458 = vrot.lane.b32.xlu0 %v2442, 32
        %v2459 = vpop.permute.xlu0 %2458
        %2460 = vrot.lane.b32.xlu0 %v2446, 32
        %v2461 = vpop.permute.xlu0 %2460
        %vm2462 = vcmp.lt.s32.totalorder %v603, 32
        %v2463 = vsel %vm2462, %v2459, %v2461
        %v2464 = vsel %vm2462, %v2457, %v2459
        %v2465 = vsel %vm2462, %v2455, %v2457
        %v2466 = vsel %vm2462, %v2453, %v2455
        %v2467 = vsel %vm2462, %v2461, %v2453
        %v2468 = vsel %vm2421, %v2467, 0.0
        %v2469 = vsel %vm2422, %v2466, 0.0
        %v2470 = vsel %vm2423, %v2465, 0.0
        %v2471 = vsel %vm2424, %v2464, 0.0
        %v2472 = vsel %vm2425, %v2463, 0.0
        %s2473 = scalar_lea.vmem %s1, 80
        %v2474 = vld [vmem:[%s2473] sm:$0xff]
        %v2475 = vld [vmem:[%s2473 + $0x8] sm:$0xff]
        %s2476 = scalar_lea.vmem %s2, 80
        %v2477 = vld [vmem:[%s2476] sm:$0xff]
        %v2478 = vld [vmem:[%s2476 + $0x8] sm:$0xff]
        %2480 = vset.pattern.permute.xlu0 0
        %2481 = vperm.xlu0 %2480, %v2474
        %v2482 = vpop.permute.xlu0 %2481
        %2485 = vset.pattern.permute.xlu0 0
        %2486 = vperm.xlu0 %2485, %v2475
        %v2487 = vpop.permute.xlu0 %2486
        %v2489 = vlaneseq
        %v2490 = vshrl.u32 %v2489, 7
        %v2491 = vsub.s32 0, %v2490
        %v2492 = vrot.slane %v2468, %v2491
        %v2493 = vlaneseq
        %v2494 = vshrl.u32 %v2493, 7
        %v2495 = vsub.s32 0, %v2494
        %v2496 = vrot.slane %v2469, %v2495
        %v2497 = vlaneseq
        %v2498 = vshrl.u32 %v2497, 7
        %v2499 = vsub.s32 0, %v2498
        %v2500 = vrot.slane %v2470, %v2499
        %v2501 = vlaneseq
        %v2502 = vshrl.u32 %v2501, 7
        %v2503 = vsub.s32 0, %v2502
        %v2504 = vrot.slane %v2471, %v2503
        %v2505 = vlaneseq
        %v2506 = vshrl.u32 %v2505, 7
        %v2507 = vsub.s32 0, %v2506
        %v2508 = vrot.slane %v2472, %v2507
        %v2509 = vmul.f32 %v2482, %v2492
        %v2510 = vmul.f32 %v2482, %v2496
        %v2511 = vmul.f32 %v2482, %v2500
        %v2512 = vmul.f32 %v2482, %v2504
        %v2513 = vmul.f32 %v2482, %v2508
        %v2514 = vmul.f32 %v2487, %v2492
        %v2515 = vmul.f32 %v2487, %v2496
        %v2516 = vmul.f32 %v2487, %v2500
        %v2517 = vmul.f32 %v2487, %v2504
        %v2518 = vmul.f32 %v2487, %v2508
        %2519 = vset.pattern.permute.xlu0 1
        %2520 = vperm.xlu0 %2519, %v2474
        %v2521 = vpop.permute.xlu0 %2520
        %2523 = vset.pattern.permute.xlu0 1
        %2524 = vperm.xlu0 %2523, %v2475
        %v2525 = vpop.permute.xlu0 %2524
        %v2527 = vmul.f32 %v2521, %v2430
        %v2528 = vmul.f32 %v2521, %v2434
        %v2529 = vmul.f32 %v2521, %v2438
        %v2530 = vmul.f32 %v2521, %v2442
        %v2531 = vmul.f32 %v2521, %v2446
        %v2532 = vmul.f32 %v2525, %v2430
        %v2533 = vmul.f32 %v2525, %v2434
        %v2534 = vmul.f32 %v2525, %v2438
        %v2535 = vmul.f32 %v2525, %v2442
        %v2536 = vmul.f32 %v2525, %v2446
        %v2537 = vadd.f32 %v2509, %v2527
        %v2538 = vadd.f32 %v2510, %v2528
        %v2539 = vadd.f32 %v2511, %v2529
        %v2540 = vadd.f32 %v2512, %v2530
        %v2541 = vadd.f32 %v2513, %v2531
        %v2542 = vadd.f32 %v2514, %v2532
        %v2543 = vadd.f32 %v2515, %v2533
        %v2544 = vadd.f32 %v2516, %v2534
        %v2545 = vadd.f32 %v2517, %v2535
        %v2546 = vadd.f32 %v2518, %v2536
        %2548 = vset.pattern.permute.xlu0 0
        %2549 = vperm.xlu0 %2548, %v2477
        %v2550 = vpop.permute.xlu0 %2549
        %2553 = vset.pattern.permute.xlu0 0
        %2554 = vperm.xlu0 %2553, %v2478
        %v2555 = vpop.permute.xlu0 %2554
        %v2557 = vmul.f32 %v2550, %v2492
        %v2558 = vmul.f32 %v2550, %v2496
        %v2559 = vmul.f32 %v2550, %v2500
        %v2560 = vmul.f32 %v2550, %v2504
        %v2561 = vmul.f32 %v2550, %v2508
        %v2562 = vmul.f32 %v2555, %v2492
        %v2563 = vmul.f32 %v2555, %v2496
        %v2564 = vmul.f32 %v2555, %v2500
        %v2565 = vmul.f32 %v2555, %v2504
        %v2566 = vmul.f32 %v2555, %v2508
        %2567 = vset.pattern.permute.xlu0 1
        %2568 = vperm.xlu0 %2567, %v2477
        %v2569 = vpop.permute.xlu0 %2568
        %2571 = vset.pattern.permute.xlu0 1
        %2572 = vperm.xlu0 %2571, %v2478
        %v2573 = vpop.permute.xlu0 %2572
        %v2575 = vmul.f32 %v2569, %v2430
        %v2576 = vmul.f32 %v2569, %v2434
        %v2577 = vmul.f32 %v2569, %v2438
        %v2578 = vmul.f32 %v2569, %v2442
        %v2579 = vmul.f32 %v2569, %v2446
        %v2580 = vmul.f32 %v2573, %v2430
        %v2581 = vmul.f32 %v2573, %v2434
        %v2582 = vmul.f32 %v2573, %v2438
        %v2583 = vmul.f32 %v2573, %v2442
        %v2584 = vmul.f32 %v2573, %v2446
        %v2585 = vadd.f32 %v2557, %v2575
        %v2586 = vadd.f32 %v2558, %v2576
        %v2587 = vadd.f32 %v2559, %v2577
        %v2588 = vadd.f32 %v2560, %v2578
        %v2589 = vadd.f32 %v2561, %v2579
        %v2590 = vadd.f32 %v2562, %v2580
        %v2591 = vadd.f32 %v2563, %v2581
        %v2592 = vadd.f32 %v2564, %v2582
        %v2593 = vadd.f32 %v2565, %v2583
        %v2594 = vadd.f32 %v2566, %v2584
        %v2595 = vtanh.pop %v2537
        %v2596 = vtanh.pop %v2538
        %v2597 = vtanh.pop %v2539
        %v2598 = vtanh.pop %v2540
        %v2599 = vtanh.pop %v2541
        %v2600 = vtanh.pop %v2542
        %v2601 = vtanh.pop %v2543
        %v2602 = vtanh.pop %v2544
        %v2603 = vtanh.pop %v2545
        %v2604 = vtanh.pop %v2546
        %v2605 = vxor.u32 %v2585, 2147483648
        %v2606 = vxor.u32 %v2586, 2147483648
        %v2607 = vxor.u32 %v2587, 2147483648
        %v2608 = vxor.u32 %v2588, 2147483648
        %v2609 = vxor.u32 %v2589, 2147483648
        %v2610 = vxor.u32 %v2590, 2147483648
        %v2611 = vxor.u32 %v2591, 2147483648
        %v2612 = vxor.u32 %v2592, 2147483648
        %v2613 = vxor.u32 %v2593, 2147483648
        %v2614 = vxor.u32 %v2594, 2147483648
        %v2615 = vmul.f32 %v2605, 1.442695
        %v2616 = vpow.pop %v2615
        %v2617 = vmul.f32 %v2606, 1.442695
        %v2618 = vpow.pop %v2617
        %v2619 = vmul.f32 %v2607, 1.442695
        %v2620 = vpow.pop %v2619
        %v2621 = vmul.f32 %v2608, 1.442695
        %v2622 = vpow.pop %v2621
        %v2623 = vmul.f32 %v2609, 1.442695
        %v2624 = vpow.pop %v2623
        %v2625 = vmul.f32 %v2610, 1.442695
        %v2626 = vpow.pop %v2625
        %v2627 = vmul.f32 %v2611, 1.442695
        %v2628 = vpow.pop %v2627
        %v2629 = vmul.f32 %v2612, 1.442695
        %v2630 = vpow.pop %v2629
        %v2631 = vmul.f32 %v2613, 1.442695
        %v2632 = vpow.pop %v2631
        %v2633 = vmul.f32 %v2614, 1.442695
        %v2634 = vpow.pop %v2633
        %v2635 = vadd.f32 %v2616, 1.0
        %v2636 = vadd.f32 %v2618, 1.0
        %v2637 = vadd.f32 %v2620, 1.0
        %v2638 = vadd.f32 %v2622, 1.0
        %v2639 = vadd.f32 %v2624, 1.0
        %v2640 = vadd.f32 %v2626, 1.0
        %v2641 = vadd.f32 %v2628, 1.0
        %v2642 = vadd.f32 %v2630, 1.0
        %v2643 = vadd.f32 %v2632, 1.0
        %v2644 = vadd.f32 %v2634, 1.0
        %v2645 = vrcp.pop %v2635
        %v2646 = vmul.f32 1.0, %v2645
        %v2647 = vrcp.pop %v2636
        %v2648 = vmul.f32 1.0, %v2647
        %v2649 = vrcp.pop %v2637
        %v2650 = vmul.f32 1.0, %v2649
        %v2651 = vrcp.pop %v2638
        %v2652 = vmul.f32 1.0, %v2651
        %v2653 = vrcp.pop %v2639
        %v2654 = vmul.f32 1.0, %v2653
        %v2655 = vrcp.pop %v2640
        %v2656 = vmul.f32 1.0, %v2655
        %v2657 = vrcp.pop %v2641
        %v2658 = vmul.f32 1.0, %v2657
        %v2659 = vrcp.pop %v2642
        %v2660 = vmul.f32 1.0, %v2659
        %v2661 = vrcp.pop %v2643
        %v2662 = vmul.f32 1.0, %v2661
        %v2663 = vrcp.pop %v2644
        %v2664 = vmul.f32 1.0, %v2663
        %v2665 = vmul.f32 %v2595, %v2646
        %v2666 = vmul.f32 %v2596, %v2648
        %v2667 = vmul.f32 %v2597, %v2650
        %v2668 = vmul.f32 %v2598, %v2652
        %v2669 = vmul.f32 %v2599, %v2654
        %v2670 = vmul.f32 %v2600, %v2656
        %v2671 = vmul.f32 %v2601, %v2658
        %v2672 = vmul.f32 %v2602, %v2660
        %v2673 = vmul.f32 %v2603, %v2662
        %v2674 = vmul.f32 %v2604, %v2664
        %s2675 = scalar_lea.vmem %s3, 80
        %v2676 = vld [vmem:[%s2675] sm:$0xff]
        %v2677 = vld [vmem:[%s2675 + $0x8] sm:$0xff]
        %2679 = vset.pattern.permute.xlu0 0
        %2680 = vperm.xlu0 %2679, %v2676
        %v2681 = vpop.permute.xlu0 %2680
        %2684 = vset.pattern.permute.xlu0 0
        %2685 = vperm.xlu0 %2684, %v2677
        %v2686 = vpop.permute.xlu0 %2685
        %v2688 = vmul.f32 %v2681, %v2665
        %v2689 = vmul.f32 %v2681, %v2666
        %v2690 = vmul.f32 %v2681, %v2667
        %v2691 = vmul.f32 %v2681, %v2668
        %v2692 = vmul.f32 %v2681, %v2669
        %v2693 = vmul.f32 %v2686, %v2670
        %v2694 = vmul.f32 %v2686, %v2671
        %v2695 = vmul.f32 %v2686, %v2672
        %v2696 = vmul.f32 %v2686, %v2673
        %v2697 = vmul.f32 %v2686, %v2674
        %v2698 = vadd.f32 %v2688, %v2693
        %v2699 = vrot.slane %v2698, 4
        %v2700 = vadd.f32 %v2698, %v2699
        %v2701 = vrot.slane %v2700, 2
        %v2702 = vadd.f32 %v2700, %v2701
        %v2703 = vrot.slane %v2702, 1
        %v2704 = vadd.f32 %v2702, %v2703
        %v2705 = vadd.f32 %v2689, %v2694
        %v2706 = vrot.slane %v2705, 4
        %v2707 = vadd.f32 %v2705, %v2706
        %v2708 = vrot.slane %v2707, 2
        %v2709 = vadd.f32 %v2707, %v2708
        %v2710 = vrot.slane %v2709, 1
        %v2711 = vadd.f32 %v2709, %v2710
        %v2712 = vadd.f32 %v2690, %v2695
        %v2713 = vrot.slane %v2712, 4
        %v2714 = vadd.f32 %v2712, %v2713
        %v2715 = vrot.slane %v2714, 2
        %v2716 = vadd.f32 %v2714, %v2715
        %v2717 = vrot.slane %v2716, 1
        %v2718 = vadd.f32 %v2716, %v2717
        %v2719 = vadd.f32 %v2691, %v2696
        %v2720 = vrot.slane %v2719, 4
        %v2721 = vadd.f32 %v2719, %v2720
        %v2722 = vrot.slane %v2721, 2
        %v2723 = vadd.f32 %v2721, %v2722
        %v2724 = vrot.slane %v2723, 1
        %v2725 = vadd.f32 %v2723, %v2724
        %v2726 = vadd.f32 %v2692, %v2697
        %v2727 = vrot.slane %v2726, 4
        %v2728 = vadd.f32 %v2726, %v2727
        %v2729 = vrot.slane %v2728, 2
        %v2730 = vadd.f32 %v2728, %v2729
        %v2731 = vrot.slane %v2730, 1
        %v2732 = vadd.f32 %v2730, %v2731
        %v2733 = vadd.f32 %v2370, %v2704
        %v2734 = vadd.f32 %v2371, %v2711
        %v2735 = vadd.f32 %v2372, %v2718
        %v2736 = vadd.f32 %v2373, %v2725
        %v2737 = vadd.f32 %v2374, %v2732
        %v2743 = vcombine.low %v2704, %v2711
        %v2744 = vcombine.low %v2718, %v2725
        %v2746 = vunpack.c.l.s4 1966171168
        %v2747 = vunpack.c.0.s8 %v2746
        %v2748 = vlaneseq
        %v2749 = vshrl.u32 %v2748, 7
        %v2750 = vsub.s32 %v2747, %v2749
        %v2751 = vrot.slane %v2743, %v2750
        %v2753 = vunpack.c.l.s4 1966171168
        %v2754 = vunpack.c.0.s8 %v2753
        %v2755 = vlaneseq
        %v2756 = vshrl.u32 %v2755, 7
        %v2757 = vsub.s32 %v2754, %v2756
        %v2758 = vrot.slane %v2744, %v2757
        %v2760 = vunpack.c.l.s4 1966171168
        %v2761 = vunpack.c.0.s8 %v2760
        %v2762 = vlaneseq
        %v2763 = vshrl.u32 %v2762, 7
        %v2764 = vsub.s32 %v2761, %v2763
        %v2765 = vrot.slane %v2732, %v2764
        %v2766 = vcombine.low %v2751, %v2758
        %v2768 = vunpack.c.l.s4 1966171168
        %v2769 = vunpack.c.0.s8 %v2768
        %v2770 = vlaneseq
        %v2771 = vshrl.u32 %v2770, 7
        %v2772 = vsub.s32 %v2769, %v2771
        %v2773 = vrot.slane %v2766, %v2772
        %v2775 = vunpack.c.l.s4 1966171168
        %v2776 = vunpack.c.0.s8 %v2775
        %v2777 = vlaneseq
        %v2778 = vshrl.u32 %v2777, 7
        %v2779 = vsub.s32 %v2776, %v2778
        %v2780 = vrot.slane %v2765, %v2779
        %v2781 = vcombine.low %v2773, %v2780
        %v2783 = vadd.f32 %v2420, %v2781
        %vm2784 = vcmp.ge.s32.totalorder %v603, 64
        %vm2785 = vcmp.ge.s32.totalorder %v604, 64
        %vm2786 = vcmp.ge.s32.totalorder %v605, 64
        %vm2787 = vcmp.ge.s32.totalorder %v606, 64
        %vm2788 = vcmp.ge.s32.totalorder %v607, 64
        %v2790 = vlaneseq
        %v2791 = vshrl.u32 %v2790, 7
        %v2792 = vsub.s32 0, %v2791
        %v2793 = vrot.slane %v2783, %v2792
        %v2794 = vlaneseq
        %v2795 = vshrl.u32 %v2794, 7
        %v2796 = vsub.s32 1, %v2795
        %v2797 = vrot.slane %v2783, %v2796
        %v2798 = vlaneseq
        %v2799 = vshrl.u32 %v2798, 7
        %v2800 = vsub.s32 2, %v2799
        %v2801 = vrot.slane %v2783, %v2800
        %v2802 = vlaneseq
        %v2803 = vshrl.u32 %v2802, 7
        %v2804 = vsub.s32 3, %v2803
        %v2805 = vrot.slane %v2783, %v2804
        %v2806 = vlaneseq
        %v2807 = vshrl.u32 %v2806, 7
        %v2808 = vsub.s32 4, %v2807
        %v2809 = vrot.slane %v2783, %v2808
        %2815 = vrot.lane.b32.xlu0 %v2793, 64
        %v2816 = vpop.permute.xlu0 %2815
        %2817 = vrot.lane.b32.xlu0 %v2797, 64
        %v2818 = vpop.permute.xlu0 %2817
        %2819 = vrot.lane.b32.xlu0 %v2801, 64
        %v2820 = vpop.permute.xlu0 %2819
        %2821 = vrot.lane.b32.xlu0 %v2805, 64
        %v2822 = vpop.permute.xlu0 %2821
        %2823 = vrot.lane.b32.xlu0 %v2809, 64
        %v2824 = vpop.permute.xlu0 %2823
        %vm2825 = vcmp.lt.s32.totalorder %v603, 64
        %v2826 = vsel %vm2825, %v2822, %v2824
        %v2827 = vsel %vm2825, %v2820, %v2822
        %v2828 = vsel %vm2825, %v2818, %v2820
        %v2829 = vsel %vm2825, %v2816, %v2818
        %v2830 = vsel %vm2825, %v2824, %v2816
        %v2831 = vsel %vm2784, %v2830, 0.0
        %v2832 = vsel %vm2785, %v2829, 0.0
        %v2833 = vsel %vm2786, %v2828, 0.0
        %v2834 = vsel %vm2787, %v2827, 0.0
        %v2835 = vsel %vm2788, %v2826, 0.0
        %s2836 = scalar_lea.vmem %s1, 96
        %v2837 = vld [vmem:[%s2836] sm:$0xff]
        %v2838 = vld [vmem:[%s2836 + $0x8] sm:$0xff]
        %s2839 = scalar_lea.vmem %s2, 96
        %v2840 = vld [vmem:[%s2839] sm:$0xff]
        %v2841 = vld [vmem:[%s2839 + $0x8] sm:$0xff]
        %2843 = vset.pattern.permute.xlu0 0
        %2844 = vperm.xlu0 %2843, %v2837
        %v2845 = vpop.permute.xlu0 %2844
        %2848 = vset.pattern.permute.xlu0 0
        %2849 = vperm.xlu0 %2848, %v2838
        %v2850 = vpop.permute.xlu0 %2849
        %v2852 = vlaneseq
        %v2853 = vshrl.u32 %v2852, 7
        %v2854 = vsub.s32 0, %v2853
        %v2855 = vrot.slane %v2831, %v2854
        %v2856 = vlaneseq
        %v2857 = vshrl.u32 %v2856, 7
        %v2858 = vsub.s32 0, %v2857
        %v2859 = vrot.slane %v2832, %v2858
        %v2860 = vlaneseq
        %v2861 = vshrl.u32 %v2860, 7
        %v2862 = vsub.s32 0, %v2861
        %v2863 = vrot.slane %v2833, %v2862
        %v2864 = vlaneseq
        %v2865 = vshrl.u32 %v2864, 7
        %v2866 = vsub.s32 0, %v2865
        %v2867 = vrot.slane %v2834, %v2866
        %v2868 = vlaneseq
        %v2869 = vshrl.u32 %v2868, 7
        %v2870 = vsub.s32 0, %v2869
        %v2871 = vrot.slane %v2835, %v2870
        %v2872 = vmul.f32 %v2845, %v2855
        %v2873 = vmul.f32 %v2845, %v2859
        %v2874 = vmul.f32 %v2845, %v2863
        %v2875 = vmul.f32 %v2845, %v2867
        %v2876 = vmul.f32 %v2845, %v2871
        %v2877 = vmul.f32 %v2850, %v2855
        %v2878 = vmul.f32 %v2850, %v2859
        %v2879 = vmul.f32 %v2850, %v2863
        %v2880 = vmul.f32 %v2850, %v2867
        %v2881 = vmul.f32 %v2850, %v2871
        %2882 = vset.pattern.permute.xlu0 1
        %2883 = vperm.xlu0 %2882, %v2837
        %v2884 = vpop.permute.xlu0 %2883
        %2886 = vset.pattern.permute.xlu0 1
        %2887 = vperm.xlu0 %2886, %v2838
        %v2888 = vpop.permute.xlu0 %2887
        %v2890 = vmul.f32 %v2884, %v2793
        %v2891 = vmul.f32 %v2884, %v2797
        %v2892 = vmul.f32 %v2884, %v2801
        %v2893 = vmul.f32 %v2884, %v2805
        %v2894 = vmul.f32 %v2884, %v2809
        %v2895 = vmul.f32 %v2888, %v2793
        %v2896 = vmul.f32 %v2888, %v2797
        %v2897 = vmul.f32 %v2888, %v2801
        %v2898 = vmul.f32 %v2888, %v2805
        %v2899 = vmul.f32 %v2888, %v2809
        %v2900 = vadd.f32 %v2872, %v2890
        %v2901 = vadd.f32 %v2873, %v2891
        %v2902 = vadd.f32 %v2874, %v2892
        %v2903 = vadd.f32 %v2875, %v2893
        %v2904 = vadd.f32 %v2876, %v2894
        %v2905 = vadd.f32 %v2877, %v2895
        %v2906 = vadd.f32 %v2878, %v2896
        %v2907 = vadd.f32 %v2879, %v2897
        %v2908 = vadd.f32 %v2880, %v2898
        %v2909 = vadd.f32 %v2881, %v2899
        %2911 = vset.pattern.permute.xlu0 0
        %2912 = vperm.xlu0 %2911, %v2840
        %v2913 = vpop.permute.xlu0 %2912
        %2916 = vset.pattern.permute.xlu0 0
        %2917 = vperm.xlu0 %2916, %v2841
        %v2918 = vpop.permute.xlu0 %2917
        %v2920 = vmul.f32 %v2913, %v2855
        %v2921 = vmul.f32 %v2913, %v2859
        %v2922 = vmul.f32 %v2913, %v2863
        %v2923 = vmul.f32 %v2913, %v2867
        %v2924 = vmul.f32 %v2913, %v2871
        %v2925 = vmul.f32 %v2918, %v2855
        %v2926 = vmul.f32 %v2918, %v2859
        %v2927 = vmul.f32 %v2918, %v2863
        %v2928 = vmul.f32 %v2918, %v2867
        %v2929 = vmul.f32 %v2918, %v2871
        %2930 = vset.pattern.permute.xlu0 1
        %2931 = vperm.xlu0 %2930, %v2840
        %v2932 = vpop.permute.xlu0 %2931
        %2934 = vset.pattern.permute.xlu0 1
        %2935 = vperm.xlu0 %2934, %v2841
        %v2936 = vpop.permute.xlu0 %2935
        %v2938 = vmul.f32 %v2932, %v2793
        %v2939 = vmul.f32 %v2932, %v2797
        %v2940 = vmul.f32 %v2932, %v2801
        %v2941 = vmul.f32 %v2932, %v2805
        %v2942 = vmul.f32 %v2932, %v2809
        %v2943 = vmul.f32 %v2936, %v2793
        %v2944 = vmul.f32 %v2936, %v2797
        %v2945 = vmul.f32 %v2936, %v2801
        %v2946 = vmul.f32 %v2936, %v2805
        %v2947 = vmul.f32 %v2936, %v2809
        %v2948 = vadd.f32 %v2920, %v2938
        %v2949 = vadd.f32 %v2921, %v2939
        %v2950 = vadd.f32 %v2922, %v2940
        %v2951 = vadd.f32 %v2923, %v2941
        %v2952 = vadd.f32 %v2924, %v2942
        %v2953 = vadd.f32 %v2925, %v2943
        %v2954 = vadd.f32 %v2926, %v2944
        %v2955 = vadd.f32 %v2927, %v2945
        %v2956 = vadd.f32 %v2928, %v2946
        %v2957 = vadd.f32 %v2929, %v2947
        %v2958 = vtanh.pop %v2900
        %v2959 = vtanh.pop %v2901
        %v2960 = vtanh.pop %v2902
        %v2961 = vtanh.pop %v2903
        %v2962 = vtanh.pop %v2904
        %v2963 = vtanh.pop %v2905
        %v2964 = vtanh.pop %v2906
        %v2965 = vtanh.pop %v2907
        %v2966 = vtanh.pop %v2908
        %v2967 = vtanh.pop %v2909
        %v2968 = vxor.u32 %v2948, 2147483648
        %v2969 = vxor.u32 %v2949, 2147483648
        %v2970 = vxor.u32 %v2950, 2147483648
        %v2971 = vxor.u32 %v2951, 2147483648
        %v2972 = vxor.u32 %v2952, 2147483648
        %v2973 = vxor.u32 %v2953, 2147483648
        %v2974 = vxor.u32 %v2954, 2147483648
        %v2975 = vxor.u32 %v2955, 2147483648
        %v2976 = vxor.u32 %v2956, 2147483648
        %v2977 = vxor.u32 %v2957, 2147483648
        %v2978 = vmul.f32 %v2968, 1.442695
        %v2979 = vpow.pop %v2978
        %v2980 = vmul.f32 %v2969, 1.442695
        %v2981 = vpow.pop %v2980
        %v2982 = vmul.f32 %v2970, 1.442695
        %v2983 = vpow.pop %v2982
        %v2984 = vmul.f32 %v2971, 1.442695
        %v2985 = vpow.pop %v2984
        %v2986 = vmul.f32 %v2972, 1.442695
        %v2987 = vpow.pop %v2986
        %v2988 = vmul.f32 %v2973, 1.442695
        %v2989 = vpow.pop %v2988
        %v2990 = vmul.f32 %v2974, 1.442695
        %v2991 = vpow.pop %v2990
        %v2992 = vmul.f32 %v2975, 1.442695
        %v2993 = vpow.pop %v2992
        %v2994 = vmul.f32 %v2976, 1.442695
        %v2995 = vpow.pop %v2994
        %v2996 = vmul.f32 %v2977, 1.442695
        %v2997 = vpow.pop %v2996
        %v2998 = vadd.f32 %v2979, 1.0
        %v2999 = vadd.f32 %v2981, 1.0
        %v3000 = vadd.f32 %v2983, 1.0
        %v3001 = vadd.f32 %v2985, 1.0
        %v3002 = vadd.f32 %v2987, 1.0
        %v3003 = vadd.f32 %v2989, 1.0
        %v3004 = vadd.f32 %v2991, 1.0
        %v3005 = vadd.f32 %v2993, 1.0
        %v3006 = vadd.f32 %v2995, 1.0
        %v3007 = vadd.f32 %v2997, 1.0
        %v3008 = vrcp.pop %v2998
        %v3009 = vmul.f32 1.0, %v3008
        %v3010 = vrcp.pop %v2999
        %v3011 = vmul.f32 1.0, %v3010
        %v3012 = vrcp.pop %v3000
        %v3013 = vmul.f32 1.0, %v3012
        %v3014 = vrcp.pop %v3001
        %v3015 = vmul.f32 1.0, %v3014
        %v3016 = vrcp.pop %v3002
        %v3017 = vmul.f32 1.0, %v3016
        %v3018 = vrcp.pop %v3003
        %v3019 = vmul.f32 1.0, %v3018
        %v3020 = vrcp.pop %v3004
        %v3021 = vmul.f32 1.0, %v3020
        %v3022 = vrcp.pop %v3005
        %v3023 = vmul.f32 1.0, %v3022
        %v3024 = vrcp.pop %v3006
        %v3025 = vmul.f32 1.0, %v3024
        %v3026 = vrcp.pop %v3007
        %v3027 = vmul.f32 1.0, %v3026
        %v3028 = vmul.f32 %v2958, %v3009
        %v3029 = vmul.f32 %v2959, %v3011
        %v3030 = vmul.f32 %v2960, %v3013
        %v3031 = vmul.f32 %v2961, %v3015
        %v3032 = vmul.f32 %v2962, %v3017
        %v3033 = vmul.f32 %v2963, %v3019
        %v3034 = vmul.f32 %v2964, %v3021
        %v3035 = vmul.f32 %v2965, %v3023
        %v3036 = vmul.f32 %v2966, %v3025
        %v3037 = vmul.f32 %v2967, %v3027
        %s3038 = scalar_lea.vmem %s3, 96
        %v3039 = vld [vmem:[%s3038] sm:$0xff]
        %v3040 = vld [vmem:[%s3038 + $0x8] sm:$0xff]
        %3042 = vset.pattern.permute.xlu0 0
        %3043 = vperm.xlu0 %3042, %v3039
        %v3044 = vpop.permute.xlu0 %3043
        %3047 = vset.pattern.permute.xlu0 0
        %3048 = vperm.xlu0 %3047, %v3040
        %v3049 = vpop.permute.xlu0 %3048
        %v3051 = vmul.f32 %v3044, %v3028
        %v3052 = vmul.f32 %v3044, %v3029
        %v3053 = vmul.f32 %v3044, %v3030
        %v3054 = vmul.f32 %v3044, %v3031
        %v3055 = vmul.f32 %v3044, %v3032
        %v3056 = vmul.f32 %v3049, %v3033
        %v3057 = vmul.f32 %v3049, %v3034
        %v3058 = vmul.f32 %v3049, %v3035
        %v3059 = vmul.f32 %v3049, %v3036
        %v3060 = vmul.f32 %v3049, %v3037
        %v3061 = vadd.f32 %v3051, %v3056
        %v3062 = vrot.slane %v3061, 4
        %v3063 = vadd.f32 %v3061, %v3062
        %v3064 = vrot.slane %v3063, 2
        %v3065 = vadd.f32 %v3063, %v3064
        %v3066 = vrot.slane %v3065, 1
        %v3067 = vadd.f32 %v3065, %v3066
        %v3068 = vadd.f32 %v3052, %v3057
        %v3069 = vrot.slane %v3068, 4
        %v3070 = vadd.f32 %v3068, %v3069
        %v3071 = vrot.slane %v3070, 2
        %v3072 = vadd.f32 %v3070, %v3071
        %v3073 = vrot.slane %v3072, 1
        %v3074 = vadd.f32 %v3072, %v3073
        %v3075 = vadd.f32 %v3053, %v3058
        %v3076 = vrot.slane %v3075, 4
        %v3077 = vadd.f32 %v3075, %v3076
        %v3078 = vrot.slane %v3077, 2
        %v3079 = vadd.f32 %v3077, %v3078
        %v3080 = vrot.slane %v3079, 1
        %v3081 = vadd.f32 %v3079, %v3080
        %v3082 = vadd.f32 %v3054, %v3059
        %v3083 = vrot.slane %v3082, 4
        %v3084 = vadd.f32 %v3082, %v3083
        %v3085 = vrot.slane %v3084, 2
        %v3086 = vadd.f32 %v3084, %v3085
        %v3087 = vrot.slane %v3086, 1
        %v3088 = vadd.f32 %v3086, %v3087
        %v3089 = vadd.f32 %v3055, %v3060
        %v3090 = vrot.slane %v3089, 4
        %v3091 = vadd.f32 %v3089, %v3090
        %v3092 = vrot.slane %v3091, 2
        %v3093 = vadd.f32 %v3091, %v3092
        %v3094 = vrot.slane %v3093, 1
        %v3095 = vadd.f32 %v3093, %v3094
        %v3096 = vadd.f32 %v2733, %v3067
        %v3097 = vadd.f32 %v2734, %v3074
        %v3098 = vadd.f32 %v2735, %v3081
        %v3099 = vadd.f32 %v2736, %v3088
        %v3100 = vadd.f32 %v2737, %v3095
        %v3101 = vlaneseq
        %v3102 = vshrl.u32 %v3101, 7
        %v3103 = vadd.s32 %v3102, 8
        %v3104 = vadd.s32 %v3102, 16
        %v3105 = vadd.s32 %v3102, 24
        %v3106 = vadd.s32 %v3102, 32
        %v3107 = vadd.s32 %v3102, 40
        %v3108 = vadd.s32 %v3102, 48
        %v3109 = vadd.s32 %v3102, 56
        %v3110 = vadd.s32 %v3102, 64
        %v3111 = vadd.s32 %v3102, 72
        %v3112 = vadd.s32 %v3102, 80
        %v3113 = vadd.s32 %v3102, 88
        %v3114 = vadd.s32 %v3102, 96
        %v3115 = vadd.s32 %v3102, 104
        %v3116 = vadd.s32 %v3102, 112
        %v3117 = vadd.s32 %v3102, 120
        %v3118 = vadd.s32 %v3102, 128
        %v3119 = vadd.s32 %v3102, 136
        %v3120 = vadd.s32 %v3102, 144
        %v3121 = vadd.s32 %v3102, 152
        %v3122 = vadd.s32 %v3102, 160
        %v3123 = vadd.s32 %v3102, 168
        %v3124 = vadd.s32 %v3102, 176
        %v3125 = vadd.s32 %v3102, 184
        %v3126 = vadd.s32 %v3102, 192
        %v3127 = vadd.s32 %v3102, 200
        %v3128 = vadd.s32 %v3102, 208
        %v3129 = vadd.s32 %v3102, 216
        %v3130 = vadd.s32 %v3102, 224
        %v3131 = vadd.s32 %v3102, 232
        %v3132 = vadd.s32 %v3102, 240
        %v3133 = vadd.s32 %v3102, 248
        %v3134 = vadd.s32 %v3102, 256
        %v3135 = vadd.s32 %v3102, 264
        %v3136 = vadd.s32 %v3102, 272
        %v3137 = vadd.s32 %v3102, 280
        %v3138 = vadd.s32 %v3102, 288
        %v3139 = vadd.s32 %v3102, 296
        %v3140 = vadd.s32 %v3102, 304
        %v3141 = vadd.s32 %v3102, 312
        %v3142 = vadd.s32 %v3102, 320
        %v3143 = vadd.s32 %v3102, 328
        %v3144 = vadd.s32 %v3102, 336
        %v3145 = vadd.s32 %v3102, 344
        %v3146 = vadd.s32 %v3102, 352
        %v3147 = vadd.s32 %v3102, 360
        %v3148 = vadd.s32 %v3102, 368
        %v3149 = vadd.s32 %v3102, 376
        %v3150 = vadd.s32 %v3102, 384
        %v3151 = vadd.s32 %v3102, 392
        %v3152 = vadd.s32 %v3102, 400
        %v3153 = vadd.s32 %v3102, 408
        %v3154 = vadd.s32 %v3102, 416
        %v3155 = vadd.s32 %v3102, 424
        %v3156 = vadd.s32 %v3102, 432
        %v3157 = vadd.s32 %v3102, 440
        %v3158 = vadd.s32 %v3102, 448
        %v3159 = vadd.s32 %v3102, 456
        %v3160 = vadd.s32 %v3102, 464
        %v3161 = vadd.s32 %v3102, 472
        %v3162 = vadd.s32 %v3102, 480
        %v3163 = vadd.s32 %v3102, 488
        %v3164 = vadd.s32 %v3102, 496
        %v3165 = vadd.s32 %v3102, 504
        %v3166 = vadd.s32 %v3102, 512
        %v3167 = vadd.s32 %v3102, 520
        %v3168 = vadd.s32 %v3102, 528
        %v3169 = vadd.s32 %v3102, 536
        %v3170 = vadd.s32 %v3102, 544
        %v3171 = vadd.s32 %v3102, 552
        %v3172 = vadd.s32 %v3102, 560
        %v3173 = vadd.s32 %v3102, 568
        %v3174 = vadd.s32 %v3102, 576
        %v3175 = vadd.s32 %v3102, 584
        %v3176 = vadd.s32 %v3102, 592
        %v3177 = vadd.s32 %v3102, 600
        %v3178 = vadd.s32 %v3102, 608
        %v3179 = vadd.s32 %v3102, 616
        %v3180 = vadd.s32 %v3102, 624
        %v3181 = vadd.s32 %v3102, 632
        %v3182 = vmul.u32 %v603, 80
        %vm3183 = vcmp.ge.s32.totalorder %v3102, %v3182
        %vm3184 = vcmp.ge.s32.totalorder %v3103, %v3182
        %vm3185 = vcmp.ge.s32.totalorder %v3104, %v3182
        %vm3186 = vcmp.ge.s32.totalorder %v3105, %v3182
        %vm3187 = vcmp.ge.s32.totalorder %v3106, %v3182
        %vm3188 = vcmp.ge.s32.totalorder %v3107, %v3182
        %vm3189 = vcmp.ge.s32.totalorder %v3108, %v3182
        %vm3190 = vcmp.ge.s32.totalorder %v3109, %v3182
        %vm3191 = vcmp.ge.s32.totalorder %v3110, %v3182
        %vm3192 = vcmp.ge.s32.totalorder %v3111, %v3182
        %vm3193 = vcmp.ge.s32.totalorder %v3112, %v3182
        %vm3194 = vcmp.ge.s32.totalorder %v3113, %v3182
        %vm3195 = vcmp.ge.s32.totalorder %v3114, %v3182
        %vm3196 = vcmp.ge.s32.totalorder %v3115, %v3182
        %vm3197 = vcmp.ge.s32.totalorder %v3116, %v3182
        %vm3198 = vcmp.ge.s32.totalorder %v3117, %v3182
        %vm3199 = vcmp.ge.s32.totalorder %v3118, %v3182
        %vm3200 = vcmp.ge.s32.totalorder %v3119, %v3182
        %vm3201 = vcmp.ge.s32.totalorder %v3120, %v3182
        %vm3202 = vcmp.ge.s32.totalorder %v3121, %v3182
        %vm3203 = vcmp.ge.s32.totalorder %v3122, %v3182
        %vm3204 = vcmp.ge.s32.totalorder %v3123, %v3182
        %vm3205 = vcmp.ge.s32.totalorder %v3124, %v3182
        %vm3206 = vcmp.ge.s32.totalorder %v3125, %v3182
        %vm3207 = vcmp.ge.s32.totalorder %v3126, %v3182
        %vm3208 = vcmp.ge.s32.totalorder %v3127, %v3182
        %vm3209 = vcmp.ge.s32.totalorder %v3128, %v3182
        %vm3210 = vcmp.ge.s32.totalorder %v3129, %v3182
        %vm3211 = vcmp.ge.s32.totalorder %v3130, %v3182
        %vm3212 = vcmp.ge.s32.totalorder %v3131, %v3182
        %vm3213 = vcmp.ge.s32.totalorder %v3132, %v3182
        %vm3214 = vcmp.ge.s32.totalorder %v3133, %v3182
        %vm3215 = vcmp.ge.s32.totalorder %v3134, %v3182
        %vm3216 = vcmp.ge.s32.totalorder %v3135, %v3182
        %vm3217 = vcmp.ge.s32.totalorder %v3136, %v3182
        %vm3218 = vcmp.ge.s32.totalorder %v3137, %v3182
        %vm3219 = vcmp.ge.s32.totalorder %v3138, %v3182
        %vm3220 = vcmp.ge.s32.totalorder %v3139, %v3182
        %vm3221 = vcmp.ge.s32.totalorder %v3140, %v3182
        %vm3222 = vcmp.ge.s32.totalorder %v3141, %v3182
        %vm3223 = vcmp.ge.s32.totalorder %v3142, %v3182
        %vm3224 = vcmp.ge.s32.totalorder %v3143, %v3182
        %vm3225 = vcmp.ge.s32.totalorder %v3144, %v3182
        %vm3226 = vcmp.ge.s32.totalorder %v3145, %v3182
        %vm3227 = vcmp.ge.s32.totalorder %v3146, %v3182
        %vm3228 = vcmp.ge.s32.totalorder %v3147, %v3182
        %vm3229 = vcmp.ge.s32.totalorder %v3148, %v3182
        %vm3230 = vcmp.ge.s32.totalorder %v3149, %v3182
        %vm3231 = vcmp.ge.s32.totalorder %v3150, %v3182
        %vm3232 = vcmp.ge.s32.totalorder %v3151, %v3182
        %vm3233 = vcmp.ge.s32.totalorder %v3152, %v3182
        %vm3234 = vcmp.ge.s32.totalorder %v3153, %v3182
        %vm3235 = vcmp.ge.s32.totalorder %v3154, %v3182
        %vm3236 = vcmp.ge.s32.totalorder %v3155, %v3182
        %vm3237 = vcmp.ge.s32.totalorder %v3156, %v3182
        %vm3238 = vcmp.ge.s32.totalorder %v3157, %v3182
        %vm3239 = vcmp.ge.s32.totalorder %v3158, %v3182
        %vm3240 = vcmp.ge.s32.totalorder %v3159, %v3182
        %vm3241 = vcmp.ge.s32.totalorder %v3160, %v3182
        %vm3242 = vcmp.ge.s32.totalorder %v3161, %v3182
        %vm3243 = vcmp.ge.s32.totalorder %v3162, %v3182
        %vm3244 = vcmp.ge.s32.totalorder %v3163, %v3182
        %vm3245 = vcmp.ge.s32.totalorder %v3164, %v3182
        %vm3246 = vcmp.ge.s32.totalorder %v3165, %v3182
        %vm3247 = vcmp.ge.s32.totalorder %v3166, %v3182
        %vm3248 = vcmp.ge.s32.totalorder %v3167, %v3182
        %vm3249 = vcmp.ge.s32.totalorder %v3168, %v3182
        %vm3250 = vcmp.ge.s32.totalorder %v3169, %v3182
        %vm3251 = vcmp.ge.s32.totalorder %v3170, %v3182
        %vm3252 = vcmp.ge.s32.totalorder %v3171, %v3182
        %vm3253 = vcmp.ge.s32.totalorder %v3172, %v3182
        %vm3254 = vcmp.ge.s32.totalorder %v3173, %v3182
        %vm3255 = vcmp.ge.s32.totalorder %v3174, %v3182
        %vm3256 = vcmp.ge.s32.totalorder %v3175, %v3182
        %vm3257 = vcmp.ge.s32.totalorder %v3176, %v3182
        %vm3258 = vcmp.ge.s32.totalorder %v3177, %v3182
        %vm3259 = vcmp.ge.s32.totalorder %v3178, %v3182
        %vm3260 = vcmp.ge.s32.totalorder %v3179, %v3182
        %vm3261 = vcmp.ge.s32.totalorder %v3180, %v3182
        %vm3262 = vcmp.ge.s32.totalorder %v3181, %v3182
        %v3263 = vadd.s32 %v3182, 160
        %vm3264 = vcmp.lt.s32.totalorder %v3102, %v3263
        %vm3265 = vcmp.lt.s32.totalorder %v3103, %v3263
        %vm3266 = vcmp.lt.s32.totalorder %v3104, %v3263
        %vm3267 = vcmp.lt.s32.totalorder %v3105, %v3263
        %vm3268 = vcmp.lt.s32.totalorder %v3106, %v3263
        %vm3269 = vcmp.lt.s32.totalorder %v3107, %v3263
        %vm3270 = vcmp.lt.s32.totalorder %v3108, %v3263
        %vm3271 = vcmp.lt.s32.totalorder %v3109, %v3263
        %vm3272 = vcmp.lt.s32.totalorder %v3110, %v3263
        %vm3273 = vcmp.lt.s32.totalorder %v3111, %v3263
        %vm3274 = vcmp.lt.s32.totalorder %v3112, %v3263
        %vm3275 = vcmp.lt.s32.totalorder %v3113, %v3263
        %vm3276 = vcmp.lt.s32.totalorder %v3114, %v3263
        %vm3277 = vcmp.lt.s32.totalorder %v3115, %v3263
        %vm3278 = vcmp.lt.s32.totalorder %v3116, %v3263
        %vm3279 = vcmp.lt.s32.totalorder %v3117, %v3263
        %vm3280 = vcmp.lt.s32.totalorder %v3118, %v3263
        %vm3281 = vcmp.lt.s32.totalorder %v3119, %v3263
        %vm3282 = vcmp.lt.s32.totalorder %v3120, %v3263
        %vm3283 = vcmp.lt.s32.totalorder %v3121, %v3263
        %vm3284 = vcmp.lt.s32.totalorder %v3122, %v3263
        %vm3285 = vcmp.lt.s32.totalorder %v3123, %v3263
        %vm3286 = vcmp.lt.s32.totalorder %v3124, %v3263
        %vm3287 = vcmp.lt.s32.totalorder %v3125, %v3263
        %vm3288 = vcmp.lt.s32.totalorder %v3126, %v3263
        %vm3289 = vcmp.lt.s32.totalorder %v3127, %v3263
        %vm3290 = vcmp.lt.s32.totalorder %v3128, %v3263
        %vm3291 = vcmp.lt.s32.totalorder %v3129, %v3263
        %vm3292 = vcmp.lt.s32.totalorder %v3130, %v3263
        %vm3293 = vcmp.lt.s32.totalorder %v3131, %v3263
        %vm3294 = vcmp.lt.s32.totalorder %v3132, %v3263
        %vm3295 = vcmp.lt.s32.totalorder %v3133, %v3263
        %vm3296 = vcmp.lt.s32.totalorder %v3134, %v3263
        %vm3297 = vcmp.lt.s32.totalorder %v3135, %v3263
        %vm3298 = vcmp.lt.s32.totalorder %v3136, %v3263
        %vm3299 = vcmp.lt.s32.totalorder %v3137, %v3263
        %vm3300 = vcmp.lt.s32.totalorder %v3138, %v3263
        %vm3301 = vcmp.lt.s32.totalorder %v3139, %v3263
        %vm3302 = vcmp.lt.s32.totalorder %v3140, %v3263
        %vm3303 = vcmp.lt.s32.totalorder %v3141, %v3263
        %vm3304 = vcmp.lt.s32.totalorder %v3142, %v3263
        %vm3305 = vcmp.lt.s32.totalorder %v3143, %v3263
        %vm3306 = vcmp.lt.s32.totalorder %v3144, %v3263
        %vm3307 = vcmp.lt.s32.totalorder %v3145, %v3263
        %vm3308 = vcmp.lt.s32.totalorder %v3146, %v3263
        %vm3309 = vcmp.lt.s32.totalorder %v3147, %v3263
        %vm3310 = vcmp.lt.s32.totalorder %v3148, %v3263
        %vm3311 = vcmp.lt.s32.totalorder %v3149, %v3263
        %vm3312 = vcmp.lt.s32.totalorder %v3150, %v3263
        %vm3313 = vcmp.lt.s32.totalorder %v3151, %v3263
        %vm3314 = vcmp.lt.s32.totalorder %v3152, %v3263
        %vm3315 = vcmp.lt.s32.totalorder %v3153, %v3263
        %vm3316 = vcmp.lt.s32.totalorder %v3154, %v3263
        %vm3317 = vcmp.lt.s32.totalorder %v3155, %v3263
        %vm3318 = vcmp.lt.s32.totalorder %v3156, %v3263
        %vm3319 = vcmp.lt.s32.totalorder %v3157, %v3263
        %vm3320 = vcmp.lt.s32.totalorder %v3158, %v3263
        %vm3321 = vcmp.lt.s32.totalorder %v3159, %v3263
        %vm3322 = vcmp.lt.s32.totalorder %v3160, %v3263
        %vm3323 = vcmp.lt.s32.totalorder %v3161, %v3263
        %vm3324 = vcmp.lt.s32.totalorder %v3162, %v3263
        %vm3325 = vcmp.lt.s32.totalorder %v3163, %v3263
        %vm3326 = vcmp.lt.s32.totalorder %v3164, %v3263
        %vm3327 = vcmp.lt.s32.totalorder %v3165, %v3263
        %vm3328 = vcmp.lt.s32.totalorder %v3166, %v3263
        %vm3329 = vcmp.lt.s32.totalorder %v3167, %v3263
        %vm3330 = vcmp.lt.s32.totalorder %v3168, %v3263
        %vm3331 = vcmp.lt.s32.totalorder %v3169, %v3263
        %vm3332 = vcmp.lt.s32.totalorder %v3170, %v3263
        %vm3333 = vcmp.lt.s32.totalorder %v3171, %v3263
        %vm3334 = vcmp.lt.s32.totalorder %v3172, %v3263
        %vm3335 = vcmp.lt.s32.totalorder %v3173, %v3263
        %vm3336 = vcmp.lt.s32.totalorder %v3174, %v3263
        %vm3337 = vcmp.lt.s32.totalorder %v3175, %v3263
        %vm3338 = vcmp.lt.s32.totalorder %v3176, %v3263
        %vm3339 = vcmp.lt.s32.totalorder %v3177, %v3263
        %vm3340 = vcmp.lt.s32.totalorder %v3178, %v3263
        %vm3341 = vcmp.lt.s32.totalorder %v3179, %v3263
        %vm3342 = vcmp.lt.s32.totalorder %v3180, %v3263
        %vm3343 = vcmp.lt.s32.totalorder %v3181, %v3263
        %vm3344 = vmand %vm3183, %vm3264
        %vm3345 = vmand %vm3184, %vm3265
        %vm3346 = vmand %vm3185, %vm3266
        %vm3347 = vmand %vm3186, %vm3267
        %vm3348 = vmand %vm3187, %vm3268
        %vm3349 = vmand %vm3188, %vm3269
        %vm3350 = vmand %vm3189, %vm3270
        %vm3351 = vmand %vm3190, %vm3271
        %vm3352 = vmand %vm3191, %vm3272
        %vm3353 = vmand %vm3192, %vm3273
        %vm3354 = vmand %vm3193, %vm3274
        %vm3355 = vmand %vm3194, %vm3275
        %vm3356 = vmand %vm3195, %vm3276
        %vm3357 = vmand %vm3196, %vm3277
        %vm3358 = vmand %vm3197, %vm3278
        %vm3359 = vmand %vm3198, %vm3279
        %vm3360 = vmand %vm3199, %vm3280
        %vm3361 = vmand %vm3200, %vm3281
        %vm3362 = vmand %vm3201, %vm3282
        %vm3363 = vmand %vm3202, %vm3283
        %vm3364 = vmand %vm3203, %vm3284
        %vm3365 = vmand %vm3204, %vm3285
        %vm3366 = vmand %vm3205, %vm3286
        %vm3367 = vmand %vm3206, %vm3287
        %vm3368 = vmand %vm3207, %vm3288
        %vm3369 = vmand %vm3208, %vm3289
        %vm3370 = vmand %vm3209, %vm3290
        %vm3371 = vmand %vm3210, %vm3291
        %vm3372 = vmand %vm3211, %vm3292
        %vm3373 = vmand %vm3212, %vm3293
        %vm3374 = vmand %vm3213, %vm3294
        %vm3375 = vmand %vm3214, %vm3295
        %vm3376 = vmand %vm3215, %vm3296
        %vm3377 = vmand %vm3216, %vm3297
        %vm3378 = vmand %vm3217, %vm3298
        %vm3379 = vmand %vm3218, %vm3299
        %vm3380 = vmand %vm3219, %vm3300
        %vm3381 = vmand %vm3220, %vm3301
        %vm3382 = vmand %vm3221, %vm3302
        %vm3383 = vmand %vm3222, %vm3303
        %vm3384 = vmand %vm3223, %vm3304
        %vm3385 = vmand %vm3224, %vm3305
        %vm3386 = vmand %vm3225, %vm3306
        %vm3387 = vmand %vm3226, %vm3307
        %vm3388 = vmand %vm3227, %vm3308
        %vm3389 = vmand %vm3228, %vm3309
        %vm3390 = vmand %vm3229, %vm3310
        %vm3391 = vmand %vm3230, %vm3311
        %vm3392 = vmand %vm3231, %vm3312
        %vm3393 = vmand %vm3232, %vm3313
        %vm3394 = vmand %vm3233, %vm3314
        %vm3395 = vmand %vm3234, %vm3315
        %vm3396 = vmand %vm3235, %vm3316
        %vm3397 = vmand %vm3236, %vm3317
        %vm3398 = vmand %vm3237, %vm3318
        %vm3399 = vmand %vm3238, %vm3319
        %vm3400 = vmand %vm3239, %vm3320
        %vm3401 = vmand %vm3240, %vm3321
        %vm3402 = vmand %vm3241, %vm3322
        %vm3403 = vmand %vm3242, %vm3323
        %vm3404 = vmand %vm3243, %vm3324
        %vm3405 = vmand %vm3244, %vm3325
        %vm3406 = vmand %vm3245, %vm3326
        %vm3407 = vmand %vm3246, %vm3327
        %vm3408 = vmand %vm3247, %vm3328
        %vm3409 = vmand %vm3248, %vm3329
        %vm3410 = vmand %vm3249, %vm3330
        %vm3411 = vmand %vm3250, %vm3331
        %vm3412 = vmand %vm3251, %vm3332
        %vm3413 = vmand %vm3252, %vm3333
        %vm3414 = vmand %vm3253, %vm3334
        %vm3415 = vmand %vm3254, %vm3335
        %vm3416 = vmand %vm3255, %vm3336
        %vm3417 = vmand %vm3256, %vm3337
        %vm3418 = vmand %vm3257, %vm3338
        %vm3419 = vmand %vm3258, %vm3339
        %vm3420 = vmand %vm3259, %vm3340
        %vm3421 = vmand %vm3260, %vm3341
        %vm3422 = vmand %vm3261, %vm3342
        %vm3423 = vmand %vm3262, %vm3343
        %v3424 = vsel %vm3344, 0.00625, 0.0
        %v3425 = vsel %vm3345, 0.00625, 0.0
        %v3426 = vsel %vm3346, 0.00625, 0.0
        %v3427 = vsel %vm3347, 0.00625, 0.0
        %v3428 = vsel %vm3348, 0.00625, 0.0
        %v3429 = vsel %vm3349, 0.00625, 0.0
        %v3430 = vsel %vm3350, 0.00625, 0.0
        %v3431 = vsel %vm3351, 0.00625, 0.0
        %v3432 = vsel %vm3352, 0.00625, 0.0
        %v3433 = vsel %vm3353, 0.00625, 0.0
        %v3434 = vsel %vm3354, 0.00625, 0.0
        %v3435 = vsel %vm3355, 0.00625, 0.0
        %v3436 = vsel %vm3356, 0.00625, 0.0
        %v3437 = vsel %vm3357, 0.00625, 0.0
        %v3438 = vsel %vm3358, 0.00625, 0.0
        %v3439 = vsel %vm3359, 0.00625, 0.0
        %v3440 = vsel %vm3360, 0.00625, 0.0
        %v3441 = vsel %vm3361, 0.00625, 0.0
        %v3442 = vsel %vm3362, 0.00625, 0.0
        %v3443 = vsel %vm3363, 0.00625, 0.0
        %v3444 = vsel %vm3364, 0.00625, 0.0
        %v3445 = vsel %vm3365, 0.00625, 0.0
        %v3446 = vsel %vm3366, 0.00625, 0.0
        %v3447 = vsel %vm3367, 0.00625, 0.0
        %v3448 = vsel %vm3368, 0.00625, 0.0
        %v3449 = vsel %vm3369, 0.00625, 0.0
        %v3450 = vsel %vm3370, 0.00625, 0.0
        %v3451 = vsel %vm3371, 0.00625, 0.0
        %v3452 = vsel %vm3372, 0.00625, 0.0
        %v3453 = vsel %vm3373, 0.00625, 0.0
        %v3454 = vsel %vm3374, 0.00625, 0.0
        %v3455 = vsel %vm3375, 0.00625, 0.0
        %v3456 = vsel %vm3376, 0.00625, 0.0
        %v3457 = vsel %vm3377, 0.00625, 0.0
        %v3458 = vsel %vm3378, 0.00625, 0.0
        %v3459 = vsel %vm3379, 0.00625, 0.0
        %v3460 = vsel %vm3380, 0.00625, 0.0
        %v3461 = vsel %vm3381, 0.00625, 0.0
        %v3462 = vsel %vm3382, 0.00625, 0.0
        %v3463 = vsel %vm3383, 0.00625, 0.0
        %v3464 = vsel %vm3384, 0.00625, 0.0
        %v3465 = vsel %vm3385, 0.00625, 0.0
        %v3466 = vsel %vm3386, 0.00625, 0.0
        %v3467 = vsel %vm3387, 0.00625, 0.0
        %v3468 = vsel %vm3388, 0.00625, 0.0
        %v3469 = vsel %vm3389, 0.00625, 0.0
        %v3470 = vsel %vm3390, 0.00625, 0.0
        %v3471 = vsel %vm3391, 0.00625, 0.0
        %v3472 = vsel %vm3392, 0.00625, 0.0
        %v3473 = vsel %vm3393, 0.00625, 0.0
        %v3474 = vsel %vm3394, 0.00625, 0.0
        %v3475 = vsel %vm3395, 0.00625, 0.0
        %v3476 = vsel %vm3396, 0.00625, 0.0
        %v3477 = vsel %vm3397, 0.00625, 0.0
        %v3478 = vsel %vm3398, 0.00625, 0.0
        %v3479 = vsel %vm3399, 0.00625, 0.0
        %v3480 = vsel %vm3400, 0.00625, 0.0
        %v3481 = vsel %vm3401, 0.00625, 0.0
        %v3482 = vsel %vm3402, 0.00625, 0.0
        %v3483 = vsel %vm3403, 0.00625, 0.0
        %v3484 = vsel %vm3404, 0.00625, 0.0
        %v3485 = vsel %vm3405, 0.00625, 0.0
        %v3486 = vsel %vm3406, 0.00625, 0.0
        %v3487 = vsel %vm3407, 0.00625, 0.0
        %v3488 = vsel %vm3408, 0.00625, 0.0
        %v3489 = vsel %vm3409, 0.00625, 0.0
        %v3490 = vsel %vm3410, 0.00625, 0.0
        %v3491 = vsel %vm3411, 0.00625, 0.0
        %v3492 = vsel %vm3412, 0.00625, 0.0
        %v3493 = vsel %vm3413, 0.00625, 0.0
        %v3494 = vsel %vm3414, 0.00625, 0.0
        %v3495 = vsel %vm3415, 0.00625, 0.0
        %v3496 = vsel %vm3416, 0.00625, 0.0
        %v3497 = vsel %vm3417, 0.00625, 0.0
        %v3498 = vsel %vm3418, 0.00625, 0.0
        %v3499 = vsel %vm3419, 0.00625, 0.0
        %v3500 = vsel %vm3420, 0.00625, 0.0
        %v3501 = vsel %vm3421, 0.00625, 0.0
        %v3502 = vsel %vm3422, 0.00625, 0.0
        %v3503 = vsel %vm3423, 0.00625, 0.0
        %3504 = vmatprep.subr.mxu0 0.0
        %3505 = vmatpush1.msra.mxu0 %v3439
        %3506 = vmatprep.subr.mxu0 0.0
        %3507 = vmatpush1.msra.mxu0 %v3438
        %3508 = vmatprep.subr.mxu0 0.0
        %3509 = vmatpush1.msra.mxu0 %v3437
        %3510 = vmatprep.subr.mxu0 0.0
        %3511 = vmatpush1.msra.mxu0 %v3436
        %3512 = vmatprep.subr.mxu0 0.0
        %3513 = vmatpush1.msra.mxu0 %v3435
        %3514 = vmatprep.subr.mxu0 0.0
        %3515 = vmatpush1.msra.mxu0 %v3434
        %3516 = vmatprep.subr.mxu0 0.0
        %3517 = vmatpush1.msra.mxu0 %v3433
        %3518 = vmatprep.subr.mxu0 0.0
        %3519 = vmatpush1.msra.mxu0 %v3432
        %3520 = vmatprep.subr.mxu0 0.0
        %3521 = vmatpush1.msra.mxu0 %v3431
        %3522 = vmatprep.subr.mxu0 0.0
        %3523 = vmatpush1.msra.mxu0 %v3430
        %3524 = vmatprep.subr.mxu0 0.0
        %3525 = vmatpush1.msra.mxu0 %v3429
        %3526 = vmatprep.subr.mxu0 0.0
        %3527 = vmatpush1.msra.mxu0 %v3428
        %3528 = vmatprep.subr.mxu0 0.0
        %3529 = vmatpush1.msra.mxu0 %v3427
        %3530 = vmatprep.subr.mxu0 0.0
        %3531 = vmatpush1.msra.mxu0 %v3426
        %3532 = vmatprep.subr.mxu0 0.0
        %3533 = vmatpush1.msra.mxu0 %v3425
        %3534 = vmatprep.subr.mxu0 0.0
        %3535 = vmatpush1.msra.mxu0 %v3424
        %3536 = vmatprep.subr.mxu0 0.0
        %3537 = vmatpush2.msra.mxu0 %v3455
        %3538 = vmatprep.subr.mxu0 0.0
        %3539 = vmatpush2.msra.mxu0 %v3454
        %3540 = vmatprep.subr.mxu0 0.0
        %3541 = vmatpush2.msra.mxu0 %v3453
        %3542 = vmatprep.subr.mxu0 0.0
        %3543 = vmatpush2.msra.mxu0 %v3452
        %3544 = vmatprep.subr.mxu0 0.0
        %3545 = vmatpush2.msra.mxu0 %v3451
        %3546 = vmatprep.subr.mxu0 0.0
        %3547 = vmatpush2.msra.mxu0 %v3450
        %3548 = vmatprep.subr.mxu0 0.0
        %3549 = vmatpush2.msra.mxu0 %v3449
        %3550 = vmatprep.subr.mxu0 0.0
        %3551 = vmatpush2.msra.mxu0 %v3448
        %3552 = vmatprep.subr.mxu0 0.0
        %3553 = vmatpush2.msra.mxu0 %v3447
        %3554 = vmatprep.subr.mxu0 0.0
        %3555 = vmatpush2.msra.mxu0 %v3446
        %3556 = vmatprep.subr.mxu0 0.0
        %3557 = vmatpush2.msra.mxu0 %v3445
        %3558 = vmatprep.subr.mxu0 0.0
        %3559 = vmatpush2.msra.mxu0 %v3444
        %3560 = vmatprep.subr.mxu0 0.0
        %3561 = vmatpush2.msra.mxu0 %v3443
        %3562 = vmatprep.subr.mxu0 0.0
        %3563 = vmatpush2.msra.mxu0 %v3442
        %3564 = vmatprep.subr.mxu0 0.0
        %3565 = vmatpush2.msra.mxu0 %v3441
        %3566 = vmatprep.subr.mxu0 0.0
        %3567 = vmatpush2.msra.mxu0 %v3440
        %3568 = vmatprep.mubr.f32.mxu0 %v852
        %3569 = vmatmul.mubr.f32.gmra.mxu0 %v851
        %v3570 = vpop.f32.mrf.mxu0
        %v3571 = vadd.f32 0.0, %v3570
        %v3572 = vpop.f32.mrf.mxu0
        %3573 = vmatprep.mubr.f32.mxu0 %v857
        %3574 = vmatmul.mubr.f32.gmra.mxu0 %v856
        %v3575 = vpop.f32.mrf.mxu0
        %v3576 = vadd.f32 0.0, %v3575
        %v3577 = vpop.f32.mrf.mxu0
        %3578 = vmatprep.mubr.f32.mxu0 %v1214
        %3579 = vmatmul.mubr.f32.gmra.mxu0 %v1213
        %v3580 = vpop.f32.mrf.mxu0
        %v3581 = vadd.f32 0.0, %v3580
        %v3582 = vpop.f32.mrf.mxu0
        %3583 = vmatprep.mubr.f32.mxu0 %v1219
        %3584 = vmatmul.mubr.f32.gmra.mxu0 %v1218
        %v3585 = vpop.f32.mrf.mxu0
        %v3586 = vadd.f32 0.0, %v3585
        %v3587 = vpop.f32.mrf.mxu0
        %3588 = vmatprep.mubr.f32.mxu0 %v1577
        %3589 = vmatmul.mubr.f32.gmra.mxu0 %v1576
        %v3590 = vpop.f32.mrf.mxu0
        %v3591 = vadd.f32 0.0, %v3590
        %v3592 = vpop.f32.mrf.mxu0
        %3593 = vmatprep.mubr.f32.mxu0 %v1582
        %3594 = vmatmul.mubr.f32.gmra.mxu0 %v1581
        %v3595 = vpop.f32.mrf.mxu0
        %v3596 = vadd.f32 0.0, %v3595
        %v3597 = vpop.f32.mrf.mxu0
        %3598 = vmatprep.mubr.f32.mxu0 %v1940
        %3599 = vmatmul.mubr.f32.gmra.mxu0 %v1939
        %v3600 = vpop.f32.mrf.mxu0
        %v3601 = vadd.f32 0.0, %v3600
        %v3602 = vpop.f32.mrf.mxu0
        %3603 = vmatprep.mubr.f32.mxu0 %v1945
        %3604 = vmatmul.mubr.f32.gmra.mxu0 %v1944
        %v3605 = vpop.f32.mrf.mxu0
        %v3606 = vadd.f32 0.0, %v3605
        %v3607 = vpop.f32.mrf.mxu0
        %3608 = vmatprep.mubr.f32.mxu0 %v2303
        %3609 = vmatmul.mubr.f32.gmra.mxu0 %v2302
        %v3610 = vpop.f32.mrf.mxu0
        %v3611 = vadd.f32 0.0, %v3610
        %v3612 = vpop.f32.mrf.mxu0
        %3613 = vmatprep.mubr.f32.mxu0 %v2308
        %3614 = vmatmul.mubr.f32.gmra.mxu0 %v2307
        %v3615 = vpop.f32.mrf.mxu0
        %v3616 = vadd.f32 0.0, %v3615
        %v3617 = vpop.f32.mrf.mxu0
        %3618 = vmatprep.mubr.f32.mxu0 %v2666
        %3619 = vmatmul.mubr.f32.gmra.mxu0 %v2665
        %v3620 = vpop.f32.mrf.mxu0
        %v3621 = vadd.f32 0.0, %v3620
        %v3622 = vpop.f32.mrf.mxu0
        %3623 = vmatprep.mubr.f32.mxu0 %v2671
        %3624 = vmatmul.mubr.f32.gmra.mxu0 %v2670
        %v3625 = vpop.f32.mrf.mxu0
        %v3626 = vadd.f32 0.0, %v3625
        %v3627 = vpop.f32.mrf.mxu0
        %3628 = vmatprep.mubr.f32.mxu0 %v3029
        %3629 = vmatmul.mubr.f32.gmra.mxu0 %v3028
        %v3630 = vpop.f32.mrf.mxu0
        %v3631 = vadd.f32 0.0, %v3630
        %v3632 = vpop.f32.mrf.mxu0
        %3633 = vmatprep.mubr.f32.mxu0 %v3034
        %3634 = vmatmul.mubr.f32.gmra.mxu0 %v3033
        %v3635 = vpop.f32.mrf.mxu0
        %v3636 = vadd.f32 0.0, %v3635
        %v3637 = vpop.f32.mrf.mxu0
        %3638 = vdwg.mxu0
        %3639 = vmatprep.subr.mxu0 0.0
        %3640 = vmatpush1.msra.mxu0 %v3471
        %3641 = vmatprep.subr.mxu0 0.0
        %3642 = vmatpush1.msra.mxu0 %v3470
        %3643 = vmatprep.subr.mxu0 0.0
        %3644 = vmatpush1.msra.mxu0 %v3469
        %3645 = vmatprep.subr.mxu0 0.0
        %3646 = vmatpush1.msra.mxu0 %v3468
        %3647 = vmatprep.subr.mxu0 0.0
        %3648 = vmatpush1.msra.mxu0 %v3467
        %3649 = vmatprep.subr.mxu0 0.0
        %3650 = vmatpush1.msra.mxu0 %v3466
        %3651 = vmatprep.subr.mxu0 0.0
        %3652 = vmatpush1.msra.mxu0 %v3465
        %3653 = vmatprep.subr.mxu0 0.0
        %3654 = vmatpush1.msra.mxu0 %v3464
        %3655 = vmatprep.subr.mxu0 0.0
        %3656 = vmatpush1.msra.mxu0 %v3463
        %3657 = vmatprep.subr.mxu0 0.0
        %3658 = vmatpush1.msra.mxu0 %v3462
        %3659 = vmatprep.subr.mxu0 0.0
        %3660 = vmatpush1.msra.mxu0 %v3461
        %3661 = vmatprep.subr.mxu0 0.0
        %3662 = vmatpush1.msra.mxu0 %v3460
        %3663 = vmatprep.subr.mxu0 0.0
        %3664 = vmatpush1.msra.mxu0 %v3459
        %3665 = vmatprep.subr.mxu0 0.0
        %3666 = vmatpush1.msra.mxu0 %v3458
        %3667 = vmatprep.subr.mxu0 0.0
        %3668 = vmatpush1.msra.mxu0 %v3457
        %3669 = vmatprep.subr.mxu0 0.0
        %3670 = vmatpush1.msra.mxu0 %v3456
        %3671 = vmatprep.subr.mxu0 0.0
        %3672 = vmatpush2.msra.mxu0 %v3487
        %3673 = vmatprep.subr.mxu0 0.0
        %3674 = vmatpush2.msra.mxu0 %v3486
        %3675 = vmatprep.subr.mxu0 0.0
        %3676 = vmatpush2.msra.mxu0 %v3485
        %3677 = vmatprep.subr.mxu0 0.0
        %3678 = vmatpush2.msra.mxu0 %v3484
        %3679 = vmatprep.subr.mxu0 0.0
        %3680 = vmatpush2.msra.mxu0 %v3483
        %3681 = vmatprep.subr.mxu0 0.0
        %3682 = vmatpush2.msra.mxu0 %v3482
        %3683 = vmatprep.subr.mxu0 0.0
        %3684 = vmatpush2.msra.mxu0 %v3481
        %3685 = vmatprep.subr.mxu0 0.0
        %3686 = vmatpush2.msra.mxu0 %v3480
        %3687 = vmatprep.subr.mxu0 0.0
        %3688 = vmatpush2.msra.mxu0 %v3479
        %3689 = vmatprep.subr.mxu0 0.0
        %3690 = vmatpush2.msra.mxu0 %v3478
        %3691 = vmatprep.subr.mxu0 0.0
        %3692 = vmatpush2.msra.mxu0 %v3477
        %3693 = vmatprep.subr.mxu0 0.0
        %3694 = vmatpush2.msra.mxu0 %v3476
        %3695 = vmatprep.subr.mxu0 0.0
        %3696 = vmatpush2.msra.mxu0 %v3475
        %3697 = vmatprep.subr.mxu0 0.0
        %3698 = vmatpush2.msra.mxu0 %v3474
        %3699 = vmatprep.subr.mxu0 0.0
        %3700 = vmatpush2.msra.mxu0 %v3473
        %3701 = vmatprep.subr.mxu0 0.0
        %3702 = vmatpush2.msra.mxu0 %v3472
        %3703 = vmatprep.mubr.f32.mxu0 %v854
        %3704 = vmatmul.mubr.f32.gmra.mxu0 %v853
        %v3705 = vpop.f32.mrf.mxu0
        %v3706 = vadd.f32 %v3571, %v3705
        %v3707 = vpop.f32.mrf.mxu0
        %3708 = vmatprep.mubr.f32.mxu0 %v859
        %3709 = vmatmul.mubr.f32.gmra.mxu0 %v858
        %v3710 = vpop.f32.mrf.mxu0
        %v3711 = vadd.f32 %v3576, %v3710
        %v3712 = vpop.f32.mrf.mxu0
        %3713 = vmatprep.mubr.f32.mxu0 %v1216
        %3714 = vmatmul.mubr.f32.gmra.mxu0 %v1215
        %v3715 = vpop.f32.mrf.mxu0
        %v3716 = vadd.f32 %v3581, %v3715
        %v3717 = vpop.f32.mrf.mxu0
        %3718 = vmatprep.mubr.f32.mxu0 %v1221
        %3719 = vmatmul.mubr.f32.gmra.mxu0 %v1220
        %v3720 = vpop.f32.mrf.mxu0
        %v3721 = vadd.f32 %v3586, %v3720
        %v3722 = vpop.f32.mrf.mxu0
        %3723 = vmatprep.mubr.f32.mxu0 %v1579
        %3724 = vmatmul.mubr.f32.gmra.mxu0 %v1578
        %v3725 = vpop.f32.mrf.mxu0
        %v3726 = vadd.f32 %v3591, %v3725
        %v3727 = vpop.f32.mrf.mxu0
        %3728 = vmatprep.mubr.f32.mxu0 %v1584
        %3729 = vmatmul.mubr.f32.gmra.mxu0 %v1583
        %v3730 = vpop.f32.mrf.mxu0
        %v3731 = vadd.f32 %v3596, %v3730
        %v3732 = vpop.f32.mrf.mxu0
        %3733 = vmatprep.mubr.f32.mxu0 %v1942
        %3734 = vmatmul.mubr.f32.gmra.mxu0 %v1941
        %v3735 = vpop.f32.mrf.mxu0
        %v3736 = vadd.f32 %v3601, %v3735
        %v3737 = vpop.f32.mrf.mxu0
        %3738 = vmatprep.mubr.f32.mxu0 %v1947
        %3739 = vmatmul.mubr.f32.gmra.mxu0 %v1946
        %v3740 = vpop.f32.mrf.mxu0
        %v3741 = vadd.f32 %v3606, %v3740
        %v3742 = vpop.f32.mrf.mxu0
        %3743 = vmatprep.mubr.f32.mxu0 %v2305
        %3744 = vmatmul.mubr.f32.gmra.mxu0 %v2304
        %v3745 = vpop.f32.mrf.mxu0
        %v3746 = vadd.f32 %v3611, %v3745
        %v3747 = vpop.f32.mrf.mxu0
        %3748 = vmatprep.mubr.f32.mxu0 %v2310
        %3749 = vmatmul.mubr.f32.gmra.mxu0 %v2309
        %v3750 = vpop.f32.mrf.mxu0
        %v3751 = vadd.f32 %v3616, %v3750
        %v3752 = vpop.f32.mrf.mxu0
        %3753 = vmatprep.mubr.f32.mxu0 %v2668
        %3754 = vmatmul.mubr.f32.gmra.mxu0 %v2667
        %v3755 = vpop.f32.mrf.mxu0
        %v3756 = vadd.f32 %v3621, %v3755
        %v3757 = vpop.f32.mrf.mxu0
        %3758 = vmatprep.mubr.f32.mxu0 %v2673
        %3759 = vmatmul.mubr.f32.gmra.mxu0 %v2672
        %v3760 = vpop.f32.mrf.mxu0
        %v3761 = vadd.f32 %v3626, %v3760
        %v3762 = vpop.f32.mrf.mxu0
        %3763 = vmatprep.mubr.f32.mxu0 %v3031
        %3764 = vmatmul.mubr.f32.gmra.mxu0 %v3030
        %v3765 = vpop.f32.mrf.mxu0
        %v3766 = vadd.f32 %v3631, %v3765
        %v3767 = vpop.f32.mrf.mxu0
        %3768 = vmatprep.mubr.f32.mxu0 %v3036
        %3769 = vmatmul.mubr.f32.gmra.mxu0 %v3035
        %v3770 = vpop.f32.mrf.mxu0
        %v3771 = vadd.f32 %v3636, %v3770
        %v3772 = vpop.f32.mrf.mxu0
        %3773 = vdwg.mxu0
        %3774 = vmatprep.subr.mxu0 0.0
        %3775 = vmatpush1.msra.mxu0 %v3503
        %3776 = vmatprep.subr.mxu0 0.0
        %3777 = vmatpush1.msra.mxu0 %v3502
        %3778 = vmatprep.subr.mxu0 0.0
        %3779 = vmatpush1.msra.mxu0 %v3501
        %3780 = vmatprep.subr.mxu0 0.0
        %3781 = vmatpush1.msra.mxu0 %v3500
        %3782 = vmatprep.subr.mxu0 0.0
        %3783 = vmatpush1.msra.mxu0 %v3499
        %3784 = vmatprep.subr.mxu0 0.0
        %3785 = vmatpush1.msra.mxu0 %v3498
        %3786 = vmatprep.subr.mxu0 0.0
        %3787 = vmatpush1.msra.mxu0 %v3497
        %3788 = vmatprep.subr.mxu0 0.0
        %3789 = vmatpush1.msra.mxu0 %v3496
        %3790 = vmatprep.subr.mxu0 0.0
        %3791 = vmatpush1.msra.mxu0 %v3495
        %3792 = vmatprep.subr.mxu0 0.0
        %3793 = vmatpush1.msra.mxu0 %v3494
        %3794 = vmatprep.subr.mxu0 0.0
        %3795 = vmatpush1.msra.mxu0 %v3493
        %3796 = vmatprep.subr.mxu0 0.0
        %3797 = vmatpush1.msra.mxu0 %v3492
        %3798 = vmatprep.subr.mxu0 0.0
        %3799 = vmatpush1.msra.mxu0 %v3491
        %3800 = vmatprep.subr.mxu0 0.0
        %3801 = vmatpush1.msra.mxu0 %v3490
        %3802 = vmatprep.subr.mxu0 0.0
        %3803 = vmatpush1.msra.mxu0 %v3489
        %3804 = vmatprep.subr.mxu0 0.0
        %3805 = vmatpush1.msra.mxu0 %v3488
        %3806 = vmatprep.subr.mxu0 0.0
        %3807 = vmatpush2.msra.mxu0 0.0
        %3808 = vmatprep.subr.mxu0 0.0
        %3809 = vmatpush2.msra.mxu0 0.0
        %3810 = vmatprep.subr.mxu0 0.0
        %3811 = vmatpush2.msra.mxu0 0.0
        %3812 = vmatprep.subr.mxu0 0.0
        %3813 = vmatpush2.msra.mxu0 0.0
        %3814 = vmatprep.subr.mxu0 0.0
        %3815 = vmatpush2.msra.mxu0 0.0
        %3816 = vmatprep.subr.mxu0 0.0
        %3817 = vmatpush2.msra.mxu0 0.0
        %3818 = vmatprep.subr.mxu0 0.0
        %3819 = vmatpush2.msra.mxu0 0.0
        %3820 = vmatprep.subr.mxu0 0.0
        %3821 = vmatpush2.msra.mxu0 0.0
        %3822 = vmatprep.subr.mxu0 0.0
        %3823 = vmatpush2.msra.mxu0 0.0
        %3824 = vmatprep.subr.mxu0 0.0
        %3825 = vmatpush2.msra.mxu0 0.0
        %3826 = vmatprep.subr.mxu0 0.0
        %3827 = vmatpush2.msra.mxu0 0.0
        %3828 = vmatprep.subr.mxu0 0.0
        %3829 = vmatpush2.msra.mxu0 0.0
        %3830 = vmatprep.subr.mxu0 0.0
        %3831 = vmatpush2.msra.mxu0 0.0
        %3832 = vmatprep.subr.mxu0 0.0
        %3833 = vmatpush2.msra.mxu0 0.0
        %3834 = vmatprep.subr.mxu0 0.0
        %3835 = vmatpush2.msra.mxu0 0.0
        %3836 = vmatprep.subr.mxu0 0.0
        %3837 = vmatpush2.msra.mxu0 0.0
        %3838 = vmatprep.mubr.f32.mxu0 0.0
        %3839 = vmatmul.mubr.f32.gmra.mxu0 %v855
        %v3840 = vpop.f32.mrf.mxu0
        %v3841 = vadd.f32 %v3706, %v3840
        %v3842 = vpop.f32.mrf.mxu0
        %3843 = vmatprep.mubr.f32.mxu0 0.0
        %3844 = vmatmul.mubr.f32.gmra.mxu0 %v860
        %v3845 = vpop.f32.mrf.mxu0
        %v3846 = vadd.f32 %v3711, %v3845
        %v3847 = vpop.f32.mrf.mxu0
        %3848 = vmatprep.mubr.f32.mxu0 0.0
        %3849 = vmatmul.mubr.f32.gmra.mxu0 %v1217
        %v3850 = vpop.f32.mrf.mxu0
        %v3851 = vadd.f32 %v3716, %v3850
        %v3852 = vpop.f32.mrf.mxu0
        %3853 = vmatprep.mubr.f32.mxu0 0.0
        %3854 = vmatmul.mubr.f32.gmra.mxu0 %v1222
        %v3855 = vpop.f32.mrf.mxu0
        %v3856 = vadd.f32 %v3721, %v3855
        %v3857 = vpop.f32.mrf.mxu0
        %3858 = vmatprep.mubr.f32.mxu0 0.0
        %3859 = vmatmul.mubr.f32.gmra.mxu0 %v1580
        %v3860 = vpop.f32.mrf.mxu0
        %v3861 = vadd.f32 %v3726, %v3860
        %v3862 = vpop.f32.mrf.mxu0
        %3863 = vmatprep.mubr.f32.mxu0 0.0
        %3864 = vmatmul.mubr.f32.gmra.mxu0 %v1585
        %v3865 = vpop.f32.mrf.mxu0
        %v3866 = vadd.f32 %v3731, %v3865
        %v3867 = vpop.f32.mrf.mxu0
        %3868 = vmatprep.mubr.f32.mxu0 0.0
        %3869 = vmatmul.mubr.f32.gmra.mxu0 %v1943
        %v3870 = vpop.f32.mrf.mxu0
        %v3871 = vadd.f32 %v3736, %v3870
        %v3872 = vpop.f32.mrf.mxu0
        %3873 = vmatprep.mubr.f32.mxu0 0.0
        %3874 = vmatmul.mubr.f32.gmra.mxu0 %v1948
        %v3875 = vpop.f32.mrf.mxu0
        %v3876 = vadd.f32 %v3741, %v3875
        %v3877 = vpop.f32.mrf.mxu0
        %3878 = vmatprep.mubr.f32.mxu0 0.0
        %3879 = vmatmul.mubr.f32.gmra.mxu0 %v2306
        %v3880 = vpop.f32.mrf.mxu0
        %v3881 = vadd.f32 %v3746, %v3880
        %v3882 = vpop.f32.mrf.mxu0
        %3883 = vmatprep.mubr.f32.mxu0 0.0
        %3884 = vmatmul.mubr.f32.gmra.mxu0 %v2311
        %v3885 = vpop.f32.mrf.mxu0
        %v3886 = vadd.f32 %v3751, %v3885
        %v3887 = vpop.f32.mrf.mxu0
        %3888 = vmatprep.mubr.f32.mxu0 0.0
        %3889 = vmatmul.mubr.f32.gmra.mxu0 %v2669
        %v3890 = vpop.f32.mrf.mxu0
        %v3891 = vadd.f32 %v3756, %v3890
        %v3892 = vpop.f32.mrf.mxu0
        %3893 = vmatprep.mubr.f32.mxu0 0.0
        %3894 = vmatmul.mubr.f32.gmra.mxu0 %v2674
        %v3895 = vpop.f32.mrf.mxu0
        %v3896 = vadd.f32 %v3761, %v3895
        %v3897 = vpop.f32.mrf.mxu0
        %3898 = vmatprep.mubr.f32.mxu0 0.0
        %3899 = vmatmul.mubr.f32.gmra.mxu0 %v3032
        %v3900 = vpop.f32.mrf.mxu0
        %v3901 = vadd.f32 %v3766, %v3900
        %v3902 = vpop.f32.mrf.mxu0
        %3903 = vmatprep.mubr.f32.mxu0 0.0
        %3904 = vmatmul.mubr.f32.gmra.mxu0 %v3037
        %v3905 = vpop.f32.mrf.mxu0
        %v3906 = vadd.f32 %v3771, %v3905
        %v3907 = vpop.f32.mrf.mxu0
        %3908 = vdwg.mxu0
        %v3909 = vld [vmem:[%s4] sm:$0xff]
        %v3910 = vld [vmem:[%s4 + $0x8] sm:$0xff]
        %v3911 = vld [vmem:[%s4 + $0x10] sm:$0xff]
        %v3912 = vld [vmem:[%s4 + $0x18] sm:$0xff]
        %v3913 = vld [vmem:[%s4 + $0x20] sm:$0xff]
        %v3914 = vld [vmem:[%s4 + $0x28] sm:$0xff]
        %v3915 = vld [vmem:[%s4 + $0x30] sm:$0xff]
        %v3916 = vld [vmem:[%s4 + $0x38] sm:$0xff]
        %v3917 = vld [vmem:[%s4 + $0x40] sm:$0xff]
        %v3918 = vld [vmem:[%s4 + $0x48] sm:$0xff]
        %v3919 = vld [vmem:[%s4 + $0x50] sm:$0xff]
        %v3920 = vld [vmem:[%s4 + $0x58] sm:$0xff]
        %v3921 = vld [vmem:[%s4 + $0x60] sm:$0xff]
        %v3922 = vld [vmem:[%s4 + $0x68] sm:$0xff]
        %v3923 = vld [vmem:[%s4 + $0x70] sm:$0xff]
        %v3924 = vld [vmem:[%s4 + $0x78] sm:$0xff]
        %vm3925 = vcmask 916480
        %v3927 = vsel %vm3925, %v3909, 0
        %v3930 = vsel %vm3925, %v3910, 0
        %v3933 = vsel %vm3925, %v3911, 0
        %v3936 = vsel %vm3925, %v3912, 0
        %v3939 = vsel %vm3925, %v3913, 0
        %v3942 = vsel %vm3925, %v3914, 0
        %v3945 = vsel %vm3925, %v3915, 0
        %v3948 = vsel %vm3925, %v3916, 0
        %v3951 = vsel %vm3925, %v3917, 0
        %v3954 = vsel %vm3925, %v3918, 0
        %v3957 = vsel %vm3925, %v3919, 0
        %v3960 = vsel %vm3925, %v3920, 0
        %v3963 = vsel %vm3925, %v3921, 0
        %v3966 = vsel %vm3925, %v3922, 0
        %v3969 = vsel %vm3925, %v3923, 0
        %v3972 = vsel %vm3925, %v3924, 0
        %3974 = vmatprep.subr.mxu0 0.0
        %3975 = vmatpush1.msra.mxu0 0.0
        %3976 = vmatprep.subr.mxu0 0.0
        %3977 = vmatpush1.msra.mxu0 0.0
        %3978 = vmatprep.subr.mxu0 0.0
        %3979 = vmatpush1.msra.mxu0 %v3906
        %3980 = vmatprep.subr.mxu0 0.0
        %3981 = vmatpush1.msra.mxu0 %v3901
        %3982 = vmatprep.subr.mxu0 0.0
        %3983 = vmatpush1.msra.mxu0 %v3896
        %3984 = vmatprep.subr.mxu0 0.0
        %3985 = vmatpush1.msra.mxu0 %v3891
        %3986 = vmatprep.subr.mxu0 0.0
        %3987 = vmatpush1.msra.mxu0 %v3886
        %3988 = vmatprep.subr.mxu0 0.0
        %3989 = vmatpush1.msra.mxu0 %v3881
        %3990 = vmatprep.subr.mxu0 0.0
        %3991 = vmatpush1.msra.mxu0 %v3876
        %3992 = vmatprep.subr.mxu0 0.0
        %3993 = vmatpush1.msra.mxu0 %v3871
        %3994 = vmatprep.subr.mxu0 0.0
        %3995 = vmatpush1.msra.mxu0 %v3866
        %3996 = vmatprep.subr.mxu0 0.0
        %3997 = vmatpush1.msra.mxu0 %v3861
        %3998 = vmatprep.subr.mxu0 0.0
        %3999 = vmatpush1.msra.mxu0 %v3856
        %4000 = vmatprep.subr.mxu0 0.0
        %4001 = vmatpush1.msra.mxu0 %v3851
        %4002 = vmatprep.subr.mxu0 0.0
        %4003 = vmatpush1.msra.mxu0 %v3846
        %4004 = vmatprep.subr.mxu0 0.0
        %4005 = vmatpush1.msra.mxu0 %v3841
        %4006 = vmatprep.subr.mxu0 0.0
        %4007 = vmatpush2.msra.mxu0 0.0
        %4008 = vmatprep.subr.mxu0 0.0
        %4009 = vmatpush2.msra.mxu0 0.0
        %4010 = vmatprep.subr.mxu0 0.0
        %4011 = vmatpush2.msra.mxu0 0.0
        %4012 = vmatprep.subr.mxu0 0.0
        %4013 = vmatpush2.msra.mxu0 0.0
        %4014 = vmatprep.subr.mxu0 0.0
        %4015 = vmatpush2.msra.mxu0 0.0
        %4016 = vmatprep.subr.mxu0 0.0
        %4017 = vmatpush2.msra.mxu0 0.0
        %4018 = vmatprep.subr.mxu0 0.0
        %4019 = vmatpush2.msra.mxu0 0.0
        %4020 = vmatprep.subr.mxu0 0.0
        %4021 = vmatpush2.msra.mxu0 0.0
        %4022 = vmatprep.subr.mxu0 0.0
        %4023 = vmatpush2.msra.mxu0 0.0
        %4024 = vmatprep.subr.mxu0 0.0
        %4025 = vmatpush2.msra.mxu0 0.0
        %4026 = vmatprep.subr.mxu0 0.0
        %4027 = vmatpush2.msra.mxu0 0.0
        %4028 = vmatprep.subr.mxu0 0.0
        %4029 = vmatpush2.msra.mxu0 0.0
        %4030 = vmatprep.subr.mxu0 0.0
        %4031 = vmatpush2.msra.mxu0 0.0
        %4032 = vmatprep.subr.mxu0 0.0
        %4033 = vmatpush2.msra.mxu0 0.0
        %4034 = vmatprep.subr.mxu0 0.0
        %4035 = vmatpush2.msra.mxu0 0.0
        %4036 = vmatprep.subr.mxu0 0.0
        %4037 = vmatpush2.msra.mxu0 0.0
        %4038 = vmatprep.mubr.f32.mxu0 0.0
        %4039 = vmatmul.mubr.f32.gmra.mxu0 %v3927
        %v4040 = vpop.f32.mrf.mxu0
        %v4041 = vadd.f32 0.0, %v4040
        %v4042 = vpop.f32.mrf.mxu0
        %4043 = vmatprep.mubr.f32.mxu0 0.0
        %4044 = vmatmul.mubr.f32.gmra.mxu0 %v3930
        %v4045 = vpop.f32.mrf.mxu0
        %v4046 = vadd.f32 0.0, %v4045
        %v4047 = vpop.f32.mrf.mxu0
        %4048 = vmatprep.mubr.f32.mxu0 0.0
        %4049 = vmatmul.mubr.f32.gmra.mxu0 %v3933
        %v4050 = vpop.f32.mrf.mxu0
        %v4051 = vadd.f32 0.0, %v4050
        %v4052 = vpop.f32.mrf.mxu0
        %4053 = vmatprep.mubr.f32.mxu0 0.0
        %4054 = vmatmul.mubr.f32.gmra.mxu0 %v3936
        %v4055 = vpop.f32.mrf.mxu0
        %v4056 = vadd.f32 0.0, %v4055
        %v4057 = vpop.f32.mrf.mxu0
        %4058 = vmatprep.mubr.f32.mxu0 0.0
        %4059 = vmatmul.mubr.f32.gmra.mxu0 %v3939
        %v4060 = vpop.f32.mrf.mxu0
        %v4061 = vadd.f32 0.0, %v4060
        %v4062 = vpop.f32.mrf.mxu0
        %4063 = vmatprep.mubr.f32.mxu0 0.0
        %4064 = vmatmul.mubr.f32.gmra.mxu0 %v3942
        %v4065 = vpop.f32.mrf.mxu0
        %v4066 = vadd.f32 0.0, %v4065
        %v4067 = vpop.f32.mrf.mxu0
        %4068 = vmatprep.mubr.f32.mxu0 0.0
        %4069 = vmatmul.mubr.f32.gmra.mxu0 %v3945
        %v4070 = vpop.f32.mrf.mxu0
        %v4071 = vadd.f32 0.0, %v4070
        %v4072 = vpop.f32.mrf.mxu0
        %4073 = vmatprep.mubr.f32.mxu0 0.0
        %4074 = vmatmul.mubr.f32.gmra.mxu0 %v3948
        %v4075 = vpop.f32.mrf.mxu0
        %v4076 = vadd.f32 0.0, %v4075
        %v4077 = vpop.f32.mrf.mxu0
        %4078 = vmatprep.mubr.f32.mxu0 0.0
        %4079 = vmatmul.mubr.f32.gmra.mxu0 %v3951
        %v4080 = vpop.f32.mrf.mxu0
        %v4081 = vadd.f32 0.0, %v4080
        %v4082 = vpop.f32.mrf.mxu0
        %4083 = vmatprep.mubr.f32.mxu0 0.0
        %4084 = vmatmul.mubr.f32.gmra.mxu0 %v3954
        %v4085 = vpop.f32.mrf.mxu0
        %v4086 = vadd.f32 0.0, %v4085
        %v4087 = vpop.f32.mrf.mxu0
        %4088 = vmatprep.mubr.f32.mxu0 0.0
        %4089 = vmatmul.mubr.f32.gmra.mxu0 %v3957
        %v4090 = vpop.f32.mrf.mxu0
        %v4091 = vadd.f32 0.0, %v4090
        %v4092 = vpop.f32.mrf.mxu0
        %4093 = vmatprep.mubr.f32.mxu0 0.0
        %4094 = vmatmul.mubr.f32.gmra.mxu0 %v3960
        %v4095 = vpop.f32.mrf.mxu0
        %v4096 = vadd.f32 0.0, %v4095
        %v4097 = vpop.f32.mrf.mxu0
        %4098 = vmatprep.mubr.f32.mxu0 0.0
        %4099 = vmatmul.mubr.f32.gmra.mxu0 %v3963
        %v4100 = vpop.f32.mrf.mxu0
        %v4101 = vadd.f32 0.0, %v4100
        %v4102 = vpop.f32.mrf.mxu0
        %4103 = vmatprep.mubr.f32.mxu0 0.0
        %4104 = vmatmul.mubr.f32.gmra.mxu0 %v3966
        %v4105 = vpop.f32.mrf.mxu0
        %v4106 = vadd.f32 0.0, %v4105
        %v4107 = vpop.f32.mrf.mxu0
        %4108 = vmatprep.mubr.f32.mxu0 0.0
        %4109 = vmatmul.mubr.f32.gmra.mxu0 %v3969
        %v4110 = vpop.f32.mrf.mxu0
        %v4111 = vadd.f32 0.0, %v4110
        %v4112 = vpop.f32.mrf.mxu0
        %4113 = vmatprep.mubr.f32.mxu0 0.0
        %4114 = vmatmul.mubr.f32.gmra.mxu0 %v3972
        %v4115 = vpop.f32.mrf.mxu0
        %v4116 = vadd.f32 0.0, %v4115
        %v4117 = vpop.f32.mrf.mxu0
        %4118 = vdwg.mxu0
        %v4119 = vmax.f32 %v3096, 0.0
        %v4120 = vmax.f32 %v3097, 0.0
        %v4121 = vmax.f32 %v3098, 0.0
        %v4122 = vmax.f32 %v3099, 0.0
        %v4123 = vmax.f32 %v3100, 0.0
        %v4124 = vld [vmem:[%s5] sm:$0x3]
        %4126 = vset.pattern.permute.xlu0 0
        %4127 = vperm.xlu0 %4126, %v4124
        %v4128 = vpop.permute.xlu0 %4127
        %v4130 = vmul.f32 %v4128, %v4119
        %v4131 = vmul.f32 %v4128, %v4120
        %v4132 = vmul.f32 %v4128, %v4121
        %v4133 = vmul.f32 %v4128, %v4122
        %v4134 = vmul.f32 %v4128, %v4123
        %v4135 = vld [vmem:[%s6] sm:$0x3]
        %4137 = vset.pattern.permute.xlu0 0
        %4138 = vperm.xlu0 %4137, %v4135
        %v4139 = vpop.permute.xlu0 %4138
        %v4141 = vadd.f32 %v4130, %v4139
        %v4142 = vadd.f32 %v4131, %v4139
        %v4143 = vadd.f32 %v4132, %v4139
        %v4144 = vadd.f32 %v4133, %v4139
        %v4145 = vadd.f32 %v4134, %v4139
        %v4146 = vmax.f32 %v4141, 0.0
        %v4147 = vmax.f32 %v4142, 0.0
        %v4148 = vmax.f32 %v4143, 0.0
        %v4149 = vmax.f32 %v4144, 0.0
        %v4150 = vmax.f32 %v4145, 0.0
        %v4151 = vld [vmem:[%s7] sm:$0xff]
        %v4152 = vld [vmem:[%s7 + $0x8] sm:$0xff]
        %v4153 = vld [vmem:[%s7 + $0x10] sm:$0xff]
        %v4154 = vld [vmem:[%s7 + $0x18] sm:$0xff]
        %v4155 = vld [vmem:[%s7 + $0x20] sm:$0xff]
        %v4156 = vld [vmem:[%s7 + $0x28] sm:$0xff]
        %v4157 = vld [vmem:[%s7 + $0x30] sm:$0xff]
        %v4158 = vld [vmem:[%s7 + $0x38] sm:$0xff]
        %v4159 = vld [vmem:[%s7 + $0x40] sm:$0xff]
        %v4160 = vld [vmem:[%s7 + $0x48] sm:$0xff]
        %v4161 = vld [vmem:[%s7 + $0x50] sm:$0xff]
        %v4162 = vld [vmem:[%s7 + $0x58] sm:$0xff]
        %v4163 = vld [vmem:[%s7 + $0x60] sm:$0xff]
        %v4164 = vld [vmem:[%s7 + $0x68] sm:$0xff]
        %v4165 = vld [vmem:[%s7 + $0x70] sm:$0xff]
        %v4166 = vld [vmem:[%s7 + $0x78] sm:$0xff]
        %v4167 = vld [vmem:[%s7 + $0x80] sm:$0xff]
        %v4168 = vld [vmem:[%s7 + $0x88] sm:$0xff]
        %v4169 = vld [vmem:[%s7 + $0x90] sm:$0xff]
        %v4170 = vld [vmem:[%s7 + $0x98] sm:$0xff]
        %v4171 = vld [vmem:[%s7 + $0xa0] sm:$0xff]
        %v4172 = vld [vmem:[%s7 + $0xa8] sm:$0xff]
        %v4173 = vld [vmem:[%s7 + $0xb0] sm:$0xff]
        %v4174 = vld [vmem:[%s7 + $0xb8] sm:$0xff]
        %v4175 = vld [vmem:[%s7 + $0xc0] sm:$0xff]
        %v4176 = vld [vmem:[%s7 + $0xc8] sm:$0xff]
        %v4177 = vld [vmem:[%s7 + $0xd0] sm:$0xff]
        %v4178 = vld [vmem:[%s7 + $0xd8] sm:$0xff]
        %v4179 = vld [vmem:[%s7 + $0xe0] sm:$0xff]
        %v4180 = vld [vmem:[%s7 + $0xe8] sm:$0xff]
        %v4181 = vld [vmem:[%s7 + $0xf0] sm:$0xff]
        %v4182 = vld [vmem:[%s7 + $0xf8] sm:$0xff]
        %4184 = vset.pattern.permute.xlu0 0
        %4185 = vperm.xlu0 %4184, %v4151
        %v4186 = vpop.permute.xlu0 %4185
        %4189 = vset.pattern.permute.xlu0 0
        %4190 = vperm.xlu0 %4189, %v4152
        %v4191 = vpop.permute.xlu0 %4190
        %4194 = vset.pattern.permute.xlu0 0
        %4195 = vperm.xlu0 %4194, %v4153
        %v4196 = vpop.permute.xlu0 %4195
        %4199 = vset.pattern.permute.xlu0 0
        %4200 = vperm.xlu0 %4199, %v4154
        %v4201 = vpop.permute.xlu0 %4200
        %4204 = vset.pattern.permute.xlu0 0
        %4205 = vperm.xlu0 %4204, %v4155
        %v4206 = vpop.permute.xlu0 %4205
        %4209 = vset.pattern.permute.xlu0 0
        %4210 = vperm.xlu0 %4209, %v4156
        %v4211 = vpop.permute.xlu0 %4210
        %4214 = vset.pattern.permute.xlu0 0
        %4215 = vperm.xlu0 %4214, %v4157
        %v4216 = vpop.permute.xlu0 %4215
        %4219 = vset.pattern.permute.xlu0 0
        %4220 = vperm.xlu0 %4219, %v4158
        %v4221 = vpop.permute.xlu0 %4220
        %4224 = vset.pattern.permute.xlu0 0
        %4225 = vperm.xlu0 %4224, %v4159
        %v4226 = vpop.permute.xlu0 %4225
        %4229 = vset.pattern.permute.xlu0 0
        %4230 = vperm.xlu0 %4229, %v4160
        %v4231 = vpop.permute.xlu0 %4230
        %4234 = vset.pattern.permute.xlu0 0
        %4235 = vperm.xlu0 %4234, %v4161
        %v4236 = vpop.permute.xlu0 %4235
        %4239 = vset.pattern.permute.xlu0 0
        %4240 = vperm.xlu0 %4239, %v4162
        %v4241 = vpop.permute.xlu0 %4240
        %4244 = vset.pattern.permute.xlu0 0
        %4245 = vperm.xlu0 %4244, %v4163
        %v4246 = vpop.permute.xlu0 %4245
        %4249 = vset.pattern.permute.xlu0 0
        %4250 = vperm.xlu0 %4249, %v4164
        %v4251 = vpop.permute.xlu0 %4250
        %4254 = vset.pattern.permute.xlu0 0
        %4255 = vperm.xlu0 %4254, %v4165
        %v4256 = vpop.permute.xlu0 %4255
        %4259 = vset.pattern.permute.xlu0 0
        %4260 = vperm.xlu0 %4259, %v4166
        %v4261 = vpop.permute.xlu0 %4260
        %4264 = vset.pattern.permute.xlu0 0
        %4265 = vperm.xlu0 %4264, %v4167
        %v4266 = vpop.permute.xlu0 %4265
        %4269 = vset.pattern.permute.xlu0 0
        %4270 = vperm.xlu0 %4269, %v4168
        %v4271 = vpop.permute.xlu0 %4270
        %4274 = vset.pattern.permute.xlu0 0
        %4275 = vperm.xlu0 %4274, %v4169
        %v4276 = vpop.permute.xlu0 %4275
        %4279 = vset.pattern.permute.xlu0 0
        %4280 = vperm.xlu0 %4279, %v4170
        %v4281 = vpop.permute.xlu0 %4280
        %4284 = vset.pattern.permute.xlu0 0
        %4285 = vperm.xlu0 %4284, %v4171
        %v4286 = vpop.permute.xlu0 %4285
        %4289 = vset.pattern.permute.xlu0 0
        %4290 = vperm.xlu0 %4289, %v4172
        %v4291 = vpop.permute.xlu0 %4290
        %4294 = vset.pattern.permute.xlu0 0
        %4295 = vperm.xlu0 %4294, %v4173
        %v4296 = vpop.permute.xlu0 %4295
        %4299 = vset.pattern.permute.xlu0 0
        %4300 = vperm.xlu0 %4299, %v4174
        %v4301 = vpop.permute.xlu0 %4300
        %4304 = vset.pattern.permute.xlu0 0
        %4305 = vperm.xlu0 %4304, %v4175
        %v4306 = vpop.permute.xlu0 %4305
        %4309 = vset.pattern.permute.xlu0 0
        %4310 = vperm.xlu0 %4309, %v4176
        %v4311 = vpop.permute.xlu0 %4310
        %4314 = vset.pattern.permute.xlu0 0
        %4315 = vperm.xlu0 %4314, %v4177
        %v4316 = vpop.permute.xlu0 %4315
        %4319 = vset.pattern.permute.xlu0 0
        %4320 = vperm.xlu0 %4319, %v4178
        %v4321 = vpop.permute.xlu0 %4320
        %4324 = vset.pattern.permute.xlu0 0
        %4325 = vperm.xlu0 %4324, %v4179
        %v4326 = vpop.permute.xlu0 %4325
        %4329 = vset.pattern.permute.xlu0 0
        %4330 = vperm.xlu0 %4329, %v4180
        %v4331 = vpop.permute.xlu0 %4330
        %4334 = vset.pattern.permute.xlu0 0
        %4335 = vperm.xlu0 %4334, %v4181
        %v4336 = vpop.permute.xlu0 %4335
        %4339 = vset.pattern.permute.xlu0 0
        %4340 = vperm.xlu0 %4339, %v4182
        %v4341 = vpop.permute.xlu0 %4340
        %v4343 = vlaneseq
        %v4344 = vshrl.u32 %v4343, 7
        %v4345 = vsub.s32 0, %v4344
        %v4346 = vrot.slane %v4146, %v4345
        %v4347 = vlaneseq
        %v4348 = vshrl.u32 %v4347, 7
        %v4349 = vsub.s32 0, %v4348
        %v4350 = vrot.slane %v4147, %v4349
        %v4351 = vlaneseq
        %v4352 = vshrl.u32 %v4351, 7
        %v4353 = vsub.s32 0, %v4352
        %v4354 = vrot.slane %v4148, %v4353
        %v4355 = vlaneseq
        %v4356 = vshrl.u32 %v4355, 7
        %v4357 = vsub.s32 0, %v4356
        %v4358 = vrot.slane %v4149, %v4357
        %v4359 = vlaneseq
        %v4360 = vshrl.u32 %v4359, 7
        %v4361 = vsub.s32 0, %v4360
        %v4362 = vrot.slane %v4150, %v4361
        %v4363 = vmul.f32 %v4186, %v4346
        %v4364 = vmul.f32 %v4186, %v4350
        %v4365 = vmul.f32 %v4186, %v4354
        %v4366 = vmul.f32 %v4186, %v4358
        %v4367 = vmul.f32 %v4186, %v4362
        %v4368 = vmul.f32 %v4191, %v4346
        %v4369 = vmul.f32 %v4191, %v4350
        %v4370 = vmul.f32 %v4191, %v4354
        %v4371 = vmul.f32 %v4191, %v4358
        %v4372 = vmul.f32 %v4191, %v4362
        %v4373 = vmul.f32 %v4196, %v4346
        %v4374 = vmul.f32 %v4196, %v4350
        %v4375 = vmul.f32 %v4196, %v4354
        %v4376 = vmul.f32 %v4196, %v4358
        %v4377 = vmul.f32 %v4196, %v4362
        %v4378 = vmul.f32 %v4201, %v4346
        %v4379 = vmul.f32 %v4201, %v4350
        %v4380 = vmul.f32 %v4201, %v4354
        %v4381 = vmul.f32 %v4201, %v4358
        %v4382 = vmul.f32 %v4201, %v4362
        %v4383 = vmul.f32 %v4206, %v4346
        %v4384 = vmul.f32 %v4206, %v4350
        %v4385 = vmul.f32 %v4206, %v4354
        %v4386 = vmul.f32 %v4206, %v4358
        %v4387 = vmul.f32 %v4206, %v4362
        %v4388 = vmul.f32 %v4211, %v4346
        %v4389 = vmul.f32 %v4211, %v4350
        %v4390 = vmul.f32 %v4211, %v4354
        %v4391 = vmul.f32 %v4211, %v4358
        %v4392 = vmul.f32 %v4211, %v4362
        %v4393 = vmul.f32 %v4216, %v4346
        %v4394 = vmul.f32 %v4216, %v4350
        %v4395 = vmul.f32 %v4216, %v4354
        %v4396 = vmul.f32 %v4216, %v4358
        %v4397 = vmul.f32 %v4216, %v4362
        %v4398 = vmul.f32 %v4221, %v4346
        %v4399 = vmul.f32 %v4221, %v4350
        %v4400 = vmul.f32 %v4221, %v4354
        %v4401 = vmul.f32 %v4221, %v4358
        %v4402 = vmul.f32 %v4221, %v4362
        %v4403 = vmul.f32 %v4226, %v4346
        %v4404 = vmul.f32 %v4226, %v4350
        %v4405 = vmul.f32 %v4226, %v4354
        %v4406 = vmul.f32 %v4226, %v4358
        %v4407 = vmul.f32 %v4226, %v4362
        %v4408 = vmul.f32 %v4231, %v4346
        %v4409 = vmul.f32 %v4231, %v4350
        %v4410 = vmul.f32 %v4231, %v4354
        %v4411 = vmul.f32 %v4231, %v4358
        %v4412 = vmul.f32 %v4231, %v4362
        %v4413 = vmul.f32 %v4236, %v4346
        %v4414 = vmul.f32 %v4236, %v4350
        %v4415 = vmul.f32 %v4236, %v4354
        %v4416 = vmul.f32 %v4236, %v4358
        %v4417 = vmul.f32 %v4236, %v4362
        %v4418 = vmul.f32 %v4241, %v4346
        %v4419 = vmul.f32 %v4241, %v4350
        %v4420 = vmul.f32 %v4241, %v4354
        %v4421 = vmul.f32 %v4241, %v4358
        %v4422 = vmul.f32 %v4241, %v4362
        %v4423 = vmul.f32 %v4246, %v4346
        %v4424 = vmul.f32 %v4246, %v4350
        %v4425 = vmul.f32 %v4246, %v4354
        %v4426 = vmul.f32 %v4246, %v4358
        %v4427 = vmul.f32 %v4246, %v4362
        %v4428 = vmul.f32 %v4251, %v4346
        %v4429 = vmul.f32 %v4251, %v4350
        %v4430 = vmul.f32 %v4251, %v4354
        %v4431 = vmul.f32 %v4251, %v4358
        %v4432 = vmul.f32 %v4251, %v4362
        %v4433 = vmul.f32 %v4256, %v4346
        %v4434 = vmul.f32 %v4256, %v4350
        %v4435 = vmul.f32 %v4256, %v4354
        %v4436 = vmul.f32 %v4256, %v4358
        %v4437 = vmul.f32 %v4256, %v4362
        %v4438 = vmul.f32 %v4261, %v4346
        %v4439 = vmul.f32 %v4261, %v4350
        %v4440 = vmul.f32 %v4261, %v4354
        %v4441 = vmul.f32 %v4261, %v4358
        %v4442 = vmul.f32 %v4261, %v4362
        %v4443 = vmul.f32 %v4266, %v4346
        %v4444 = vmul.f32 %v4266, %v4350
        %v4445 = vmul.f32 %v4266, %v4354
        %v4446 = vmul.f32 %v4266, %v4358
        %v4447 = vmul.f32 %v4266, %v4362
        %v4448 = vmul.f32 %v4271, %v4346
        %v4449 = vmul.f32 %v4271, %v4350
        %v4450 = vmul.f32 %v4271, %v4354
        %v4451 = vmul.f32 %v4271, %v4358
        %v4452 = vmul.f32 %v4271, %v4362
        %v4453 = vmul.f32 %v4276, %v4346
        %v4454 = vmul.f32 %v4276, %v4350
        %v4455 = vmul.f32 %v4276, %v4354
        %v4456 = vmul.f32 %v4276, %v4358
        %v4457 = vmul.f32 %v4276, %v4362
        %v4458 = vmul.f32 %v4281, %v4346
        %v4459 = vmul.f32 %v4281, %v4350
        %v4460 = vmul.f32 %v4281, %v4354
        %v4461 = vmul.f32 %v4281, %v4358
        %v4462 = vmul.f32 %v4281, %v4362
        %v4463 = vmul.f32 %v4286, %v4346
        %v4464 = vmul.f32 %v4286, %v4350
        %v4465 = vmul.f32 %v4286, %v4354
        %v4466 = vmul.f32 %v4286, %v4358
        %v4467 = vmul.f32 %v4286, %v4362
        %v4468 = vmul.f32 %v4291, %v4346
        %v4469 = vmul.f32 %v4291, %v4350
        %v4470 = vmul.f32 %v4291, %v4354
        %v4471 = vmul.f32 %v4291, %v4358
        %v4472 = vmul.f32 %v4291, %v4362
        %v4473 = vmul.f32 %v4296, %v4346
        %v4474 = vmul.f32 %v4296, %v4350
        %v4475 = vmul.f32 %v4296, %v4354
        %v4476 = vmul.f32 %v4296, %v4358
        %v4477 = vmul.f32 %v4296, %v4362
        %v4478 = vmul.f32 %v4301, %v4346
        %v4479 = vmul.f32 %v4301, %v4350
        %v4480 = vmul.f32 %v4301, %v4354
        %v4481 = vmul.f32 %v4301, %v4358
        %v4482 = vmul.f32 %v4301, %v4362
        %v4483 = vmul.f32 %v4306, %v4346
        %v4484 = vmul.f32 %v4306, %v4350
        %v4485 = vmul.f32 %v4306, %v4354
        %v4486 = vmul.f32 %v4306, %v4358
        %v4487 = vmul.f32 %v4306, %v4362
        %v4488 = vmul.f32 %v4311, %v4346
        %v4489 = vmul.f32 %v4311, %v4350
        %v4490 = vmul.f32 %v4311, %v4354
        %v4491 = vmul.f32 %v4311, %v4358
        %v4492 = vmul.f32 %v4311, %v4362
        %v4493 = vmul.f32 %v4316, %v4346
        %v4494 = vmul.f32 %v4316, %v4350
        %v4495 = vmul.f32 %v4316, %v4354
        %v4496 = vmul.f32 %v4316, %v4358
        %v4497 = vmul.f32 %v4316, %v4362
        %v4498 = vmul.f32 %v4321, %v4346
        %v4499 = vmul.f32 %v4321, %v4350
        %v4500 = vmul.f32 %v4321, %v4354
        %v4501 = vmul.f32 %v4321, %v4358
        %v4502 = vmul.f32 %v4321, %v4362
        %v4503 = vmul.f32 %v4326, %v4346
        %v4504 = vmul.f32 %v4326, %v4350
        %v4505 = vmul.f32 %v4326, %v4354
        %v4506 = vmul.f32 %v4326, %v4358
        %v4507 = vmul.f32 %v4326, %v4362
        %v4508 = vmul.f32 %v4331, %v4346
        %v4509 = vmul.f32 %v4331, %v4350
        %v4510 = vmul.f32 %v4331, %v4354
        %v4511 = vmul.f32 %v4331, %v4358
        %v4512 = vmul.f32 %v4331, %v4362
        %v4513 = vmul.f32 %v4336, %v4346
        %v4514 = vmul.f32 %v4336, %v4350
        %v4515 = vmul.f32 %v4336, %v4354
        %v4516 = vmul.f32 %v4336, %v4358
        %v4517 = vmul.f32 %v4336, %v4362
        %v4518 = vmul.f32 %v4341, %v4346
        %v4519 = vmul.f32 %v4341, %v4350
        %v4520 = vmul.f32 %v4341, %v4354
        %v4521 = vmul.f32 %v4341, %v4358
        %v4522 = vmul.f32 %v4341, %v4362
        %4523 = vset.pattern.permute.xlu0 1
        %4524 = vperm.xlu0 %4523, %v4151
        %v4525 = vpop.permute.xlu0 %4524
        %4527 = vset.pattern.permute.xlu0 1
        %4528 = vperm.xlu0 %4527, %v4152
        %v4529 = vpop.permute.xlu0 %4528
        %4531 = vset.pattern.permute.xlu0 1
        %4532 = vperm.xlu0 %4531, %v4153
        %v4533 = vpop.permute.xlu0 %4532
        %4535 = vset.pattern.permute.xlu0 1
        %4536 = vperm.xlu0 %4535, %v4154
        %v4537 = vpop.permute.xlu0 %4536
        %4539 = vset.pattern.permute.xlu0 1
        %4540 = vperm.xlu0 %4539, %v4155
        %v4541 = vpop.permute.xlu0 %4540
        %4543 = vset.pattern.permute.xlu0 1
        %4544 = vperm.xlu0 %4543, %v4156
        %v4545 = vpop.permute.xlu0 %4544
        %4547 = vset.pattern.permute.xlu0 1
        %4548 = vperm.xlu0 %4547, %v4157
        %v4549 = vpop.permute.xlu0 %4548
        %4551 = vset.pattern.permute.xlu0 1
        %4552 = vperm.xlu0 %4551, %v4158
        %v4553 = vpop.permute.xlu0 %4552
        %4555 = vset.pattern.permute.xlu0 1
        %4556 = vperm.xlu0 %4555, %v4159
        %v4557 = vpop.permute.xlu0 %4556
        %4559 = vset.pattern.permute.xlu0 1
        %4560 = vperm.xlu0 %4559, %v4160
        %v4561 = vpop.permute.xlu0 %4560
        %4563 = vset.pattern.permute.xlu0 1
        %4564 = vperm.xlu0 %4563, %v4161
        %v4565 = vpop.permute.xlu0 %4564
        %4567 = vset.pattern.permute.xlu0 1
        %4568 = vperm.xlu0 %4567, %v4162
        %v4569 = vpop.permute.xlu0 %4568
        %4571 = vset.pattern.permute.xlu0 1
        %4572 = vperm.xlu0 %4571, %v4163
        %v4573 = vpop.permute.xlu0 %4572
        %4575 = vset.pattern.permute.xlu0 1
        %4576 = vperm.xlu0 %4575, %v4164
        %v4577 = vpop.permute.xlu0 %4576
        %4579 = vset.pattern.permute.xlu0 1
        %4580 = vperm.xlu0 %4579, %v4165
        %v4581 = vpop.permute.xlu0 %4580
        %4583 = vset.pattern.permute.xlu0 1
        %4584 = vperm.xlu0 %4583, %v4166
        %v4585 = vpop.permute.xlu0 %4584
        %4587 = vset.pattern.permute.xlu0 1
        %4588 = vperm.xlu0 %4587, %v4167
        %v4589 = vpop.permute.xlu0 %4588
        %4591 = vset.pattern.permute.xlu0 1
        %4592 = vperm.xlu0 %4591, %v4168
        %v4593 = vpop.permute.xlu0 %4592
        %4595 = vset.pattern.permute.xlu0 1
        %4596 = vperm.xlu0 %4595, %v4169
        %v4597 = vpop.permute.xlu0 %4596
        %4599 = vset.pattern.permute.xlu0 1
        %4600 = vperm.xlu0 %4599, %v4170
        %v4601 = vpop.permute.xlu0 %4600
        %4603 = vset.pattern.permute.xlu0 1
        %4604 = vperm.xlu0 %4603, %v4171
        %v4605 = vpop.permute.xlu0 %4604
        %4607 = vset.pattern.permute.xlu0 1
        %4608 = vperm.xlu0 %4607, %v4172
        %v4609 = vpop.permute.xlu0 %4608
        %4611 = vset.pattern.permute.xlu0 1
        %4612 = vperm.xlu0 %4611, %v4173
        %v4613 = vpop.permute.xlu0 %4612
        %4615 = vset.pattern.permute.xlu0 1
        %4616 = vperm.xlu0 %4615, %v4174
        %v4617 = vpop.permute.xlu0 %4616
        %4619 = vset.pattern.permute.xlu0 1
        %4620 = vperm.xlu0 %4619, %v4175
        %v4621 = vpop.permute.xlu0 %4620
        %4623 = vset.pattern.permute.xlu0 1
        %4624 = vperm.xlu0 %4623, %v4176
        %v4625 = vpop.permute.xlu0 %4624
        %4627 = vset.pattern.permute.xlu0 1
        %4628 = vperm.xlu0 %4627, %v4177
        %v4629 = vpop.permute.xlu0 %4628
        %4631 = vset.pattern.permute.xlu0 1
        %4632 = vperm.xlu0 %4631, %v4178
        %v4633 = vpop.permute.xlu0 %4632
        %4635 = vset.pattern.permute.xlu0 1
        %4636 = vperm.xlu0 %4635, %v4179
        %v4637 = vpop.permute.xlu0 %4636
        %4639 = vset.pattern.permute.xlu0 1
        %4640 = vperm.xlu0 %4639, %v4180
        %v4641 = vpop.permute.xlu0 %4640
        %4643 = vset.pattern.permute.xlu0 1
        %4644 = vperm.xlu0 %4643, %v4181
        %v4645 = vpop.permute.xlu0 %4644
        %4647 = vset.pattern.permute.xlu0 1
        %4648 = vperm.xlu0 %4647, %v4182
        %v4649 = vpop.permute.xlu0 %4648
        %v4651 = vlaneseq
        %v4652 = vshrl.u32 %v4651, 7
        %v4653 = vsub.s32 1, %v4652
        %v4654 = vrot.slane %v4146, %v4653
        %v4655 = vlaneseq
        %v4656 = vshrl.u32 %v4655, 7
        %v4657 = vsub.s32 1, %v4656
        %v4658 = vrot.slane %v4147, %v4657
        %v4659 = vlaneseq
        %v4660 = vshrl.u32 %v4659, 7
        %v4661 = vsub.s32 1, %v4660
        %v4662 = vrot.slane %v4148, %v4661
        %v4663 = vlaneseq
        %v4664 = vshrl.u32 %v4663, 7
        %v4665 = vsub.s32 1, %v4664
        %v4666 = vrot.slane %v4149, %v4665
        %v4667 = vlaneseq
        %v4668 = vshrl.u32 %v4667, 7
        %v4669 = vsub.s32 1, %v4668
        %v4670 = vrot.slane %v4150, %v4669
        %v4671 = vmul.f32 %v4525, %v4654
        %v4672 = vmul.f32 %v4525, %v4658
        %v4673 = vmul.f32 %v4525, %v4662
        %v4674 = vmul.f32 %v4525, %v4666
        %v4675 = vmul.f32 %v4525, %v4670
        %v4676 = vmul.f32 %v4529, %v4654
        %v4677 = vmul.f32 %v4529, %v4658
        %v4678 = vmul.f32 %v4529, %v4662
        %v4679 = vmul.f32 %v4529, %v4666
        %v4680 = vmul.f32 %v4529, %v4670
        %v4681 = vmul.f32 %v4533, %v4654
        %v4682 = vmul.f32 %v4533, %v4658
        %v4683 = vmul.f32 %v4533, %v4662
        %v4684 = vmul.f32 %v4533, %v4666
        %v4685 = vmul.f32 %v4533, %v4670
        %v4686 = vmul.f32 %v4537, %v4654
        %v4687 = vmul.f32 %v4537, %v4658
        %v4688 = vmul.f32 %v4537, %v4662
        %v4689 = vmul.f32 %v4537, %v4666
        %v4690 = vmul.f32 %v4537, %v4670
        %v4691 = vmul.f32 %v4541, %v4654
        %v4692 = vmul.f32 %v4541, %v4658
        %v4693 = vmul.f32 %v4541, %v4662
        %v4694 = vmul.f32 %v4541, %v4666
        %v4695 = vmul.f32 %v4541, %v4670
        %v4696 = vmul.f32 %v4545, %v4654
        %v4697 = vmul.f32 %v4545, %v4658
        %v4698 = vmul.f32 %v4545, %v4662
        %v4699 = vmul.f32 %v4545, %v4666
        %v4700 = vmul.f32 %v4545, %v4670
        %v4701 = vmul.f32 %v4549, %v4654
        %v4702 = vmul.f32 %v4549, %v4658
        %v4703 = vmul.f32 %v4549, %v4662
        %v4704 = vmul.f32 %v4549, %v4666
        %v4705 = vmul.f32 %v4549, %v4670
        %v4706 = vmul.f32 %v4553, %v4654
        %v4707 = vmul.f32 %v4553, %v4658
        %v4708 = vmul.f32 %v4553, %v4662
        %v4709 = vmul.f32 %v4553, %v4666
        %v4710 = vmul.f32 %v4553, %v4670
        %v4711 = vmul.f32 %v4557, %v4654
        %v4712 = vmul.f32 %v4557, %v4658
        %v4713 = vmul.f32 %v4557, %v4662
        %v4714 = vmul.f32 %v4557, %v4666
        %v4715 = vmul.f32 %v4557, %v4670
        %v4716 = vmul.f32 %v4561, %v4654
        %v4717 = vmul.f32 %v4561, %v4658
        %v4718 = vmul.f32 %v4561, %v4662
        %v4719 = vmul.f32 %v4561, %v4666
        %v4720 = vmul.f32 %v4561, %v4670
        %v4721 = vmul.f32 %v4565, %v4654
        %v4722 = vmul.f32 %v4565, %v4658
        %v4723 = vmul.f32 %v4565, %v4662
        %v4724 = vmul.f32 %v4565, %v4666
        %v4725 = vmul.f32 %v4565, %v4670
        %v4726 = vmul.f32 %v4569, %v4654
        %v4727 = vmul.f32 %v4569, %v4658
        %v4728 = vmul.f32 %v4569, %v4662
        %v4729 = vmul.f32 %v4569, %v4666
        %v4730 = vmul.f32 %v4569, %v4670
        %v4731 = vmul.f32 %v4573, %v4654
        %v4732 = vmul.f32 %v4573, %v4658
        %v4733 = vmul.f32 %v4573, %v4662
        %v4734 = vmul.f32 %v4573, %v4666
        %v4735 = vmul.f32 %v4573, %v4670
        %v4736 = vmul.f32 %v4577, %v4654
        %v4737 = vmul.f32 %v4577, %v4658
        %v4738 = vmul.f32 %v4577, %v4662
        %v4739 = vmul.f32 %v4577, %v4666
        %v4740 = vmul.f32 %v4577, %v4670
        %v4741 = vmul.f32 %v4581, %v4654
        %v4742 = vmul.f32 %v4581, %v4658
        %v4743 = vmul.f32 %v4581, %v4662
        %v4744 = vmul.f32 %v4581, %v4666
        %v4745 = vmul.f32 %v4581, %v4670
        %v4746 = vmul.f32 %v4585, %v4654
        %v4747 = vmul.f32 %v4585, %v4658
        %v4748 = vmul.f32 %v4585, %v4662
        %v4749 = vmul.f32 %v4585, %v4666
        %v4750 = vmul.f32 %v4585, %v4670
        %v4751 = vmul.f32 %v4589, %v4654
        %v4752 = vmul.f32 %v4589, %v4658
        %v4753 = vmul.f32 %v4589, %v4662
        %v4754 = vmul.f32 %v4589, %v4666
        %v4755 = vmul.f32 %v4589, %v4670
        %v4756 = vmul.f32 %v4593, %v4654
        %v4757 = vmul.f32 %v4593, %v4658
        %v4758 = vmul.f32 %v4593, %v4662
        %v4759 = vmul.f32 %v4593, %v4666
        %v4760 = vmul.f32 %v4593, %v4670
        %v4761 = vmul.f32 %v4597, %v4654
        %v4762 = vmul.f32 %v4597, %v4658
        %v4763 = vmul.f32 %v4597, %v4662
        %v4764 = vmul.f32 %v4597, %v4666
        %v4765 = vmul.f32 %v4597, %v4670
        %v4766 = vmul.f32 %v4601, %v4654
        %v4767 = vmul.f32 %v4601, %v4658
        %v4768 = vmul.f32 %v4601, %v4662
        %v4769 = vmul.f32 %v4601, %v4666
        %v4770 = vmul.f32 %v4601, %v4670
        %v4771 = vmul.f32 %v4605, %v4654
        %v4772 = vmul.f32 %v4605, %v4658
        %v4773 = vmul.f32 %v4605, %v4662
        %v4774 = vmul.f32 %v4605, %v4666
        %v4775 = vmul.f32 %v4605, %v4670
        %v4776 = vmul.f32 %v4609, %v4654
        %v4777 = vmul.f32 %v4609, %v4658
        %v4778 = vmul.f32 %v4609, %v4662
        %v4779 = vmul.f32 %v4609, %v4666
        %v4780 = vmul.f32 %v4609, %v4670
        %v4781 = vmul.f32 %v4613, %v4654
        %v4782 = vmul.f32 %v4613, %v4658
        %v4783 = vmul.f32 %v4613, %v4662
        %v4784 = vmul.f32 %v4613, %v4666
        %v4785 = vmul.f32 %v4613, %v4670
        %v4786 = vmul.f32 %v4617, %v4654
        %v4787 = vmul.f32 %v4617, %v4658
        %v4788 = vmul.f32 %v4617, %v4662
        %v4789 = vmul.f32 %v4617, %v4666
        %v4790 = vmul.f32 %v4617, %v4670
        %v4791 = vmul.f32 %v4621, %v4654
        %v4792 = vmul.f32 %v4621, %v4658
        %v4793 = vmul.f32 %v4621, %v4662
        %v4794 = vmul.f32 %v4621, %v4666
        %v4795 = vmul.f32 %v4621, %v4670
        %v4796 = vmul.f32 %v4625, %v4654
        %v4797 = vmul.f32 %v4625, %v4658
        %v4798 = vmul.f32 %v4625, %v4662
        %v4799 = vmul.f32 %v4625, %v4666
        %v4800 = vmul.f32 %v4625, %v4670
        %v4801 = vmul.f32 %v4629, %v4654
        %v4802 = vmul.f32 %v4629, %v4658
        %v4803 = vmul.f32 %v4629, %v4662
        %v4804 = vmul.f32 %v4629, %v4666
        %v4805 = vmul.f32 %v4629, %v4670
        %v4806 = vmul.f32 %v4633, %v4654
        %v4807 = vmul.f32 %v4633, %v4658
        %v4808 = vmul.f32 %v4633, %v4662
        %v4809 = vmul.f32 %v4633, %v4666
        %v4810 = vmul.f32 %v4633, %v4670
        %v4811 = vmul.f32 %v4637, %v4654
        %v4812 = vmul.f32 %v4637, %v4658
        %v4813 = vmul.f32 %v4637, %v4662
        %v4814 = vmul.f32 %v4637, %v4666
        %v4815 = vmul.f32 %v4637, %v4670
        %v4816 = vmul.f32 %v4641, %v4654
        %v4817 = vmul.f32 %v4641, %v4658
        %v4818 = vmul.f32 %v4641, %v4662
        %v4819 = vmul.f32 %v4641, %v4666
        %v4820 = vmul.f32 %v4641, %v4670
        %v4821 = vmul.f32 %v4645, %v4654
        %v4822 = vmul.f32 %v4645, %v4658
        %v4823 = vmul.f32 %v4645, %v4662
        %v4824 = vmul.f32 %v4645, %v4666
        %v4825 = vmul.f32 %v4645, %v4670
        %v4826 = vmul.f32 %v4649, %v4654
        %v4827 = vmul.f32 %v4649, %v4658
        %v4828 = vmul.f32 %v4649, %v4662
        %v4829 = vmul.f32 %v4649, %v4666
        %v4830 = vmul.f32 %v4649, %v4670
        %v4831 = vadd.f32 %v4363, %v4671
        %v4832 = vadd.f32 %v4364, %v4672
        %v4833 = vadd.f32 %v4365, %v4673
        %v4834 = vadd.f32 %v4366, %v4674
        %v4835 = vadd.f32 %v4367, %v4675
        %v4836 = vadd.f32 %v4368, %v4676
        %v4837 = vadd.f32 %v4369, %v4677
        %v4838 = vadd.f32 %v4370, %v4678
        %v4839 = vadd.f32 %v4371, %v4679
        %v4840 = vadd.f32 %v4372, %v4680
        %v4841 = vadd.f32 %v4373, %v4681
        %v4842 = vadd.f32 %v4374, %v4682
        %v4843 = vadd.f32 %v4375, %v4683
        %v4844 = vadd.f32 %v4376, %v4684
        %v4845 = vadd.f32 %v4377, %v4685
        %v4846 = vadd.f32 %v4378, %v4686
        %v4847 = vadd.f32 %v4379, %v4687
        %v4848 = vadd.f32 %v4380, %v4688
        %v4849 = vadd.f32 %v4381, %v4689
        %v4850 = vadd.f32 %v4382, %v4690
        %v4851 = vadd.f32 %v4383, %v4691
        %v4852 = vadd.f32 %v4384, %v4692
        %v4853 = vadd.f32 %v4385, %v4693
        %v4854 = vadd.f32 %v4386, %v4694
        %v4855 = vadd.f32 %v4387, %v4695
        %v4856 = vadd.f32 %v4388, %v4696
        %v4857 = vadd.f32 %v4389, %v4697
        %v4858 = vadd.f32 %v4390, %v4698
        %v4859 = vadd.f32 %v4391, %v4699
        %v4860 = vadd.f32 %v4392, %v4700
        %v4861 = vadd.f32 %v4393, %v4701
        %v4862 = vadd.f32 %v4394, %v4702
        %v4863 = vadd.f32 %v4395, %v4703
        %v4864 = vadd.f32 %v4396, %v4704
        %v4865 = vadd.f32 %v4397, %v4705
        %v4866 = vadd.f32 %v4398, %v4706
        %v4867 = vadd.f32 %v4399, %v4707
        %v4868 = vadd.f32 %v4400, %v4708
        %v4869 = vadd.f32 %v4401, %v4709
        %v4870 = vadd.f32 %v4402, %v4710
        %v4871 = vadd.f32 %v4403, %v4711
        %v4872 = vadd.f32 %v4404, %v4712
        %v4873 = vadd.f32 %v4405, %v4713
        %v4874 = vadd.f32 %v4406, %v4714
        %v4875 = vadd.f32 %v4407, %v4715
        %v4876 = vadd.f32 %v4408, %v4716
        %v4877 = vadd.f32 %v4409, %v4717
        %v4878 = vadd.f32 %v4410, %v4718
        %v4879 = vadd.f32 %v4411, %v4719
        %v4880 = vadd.f32 %v4412, %v4720
        %v4881 = vadd.f32 %v4413, %v4721
        %v4882 = vadd.f32 %v4414, %v4722
        %v4883 = vadd.f32 %v4415, %v4723
        %v4884 = vadd.f32 %v4416, %v4724
        %v4885 = vadd.f32 %v4417, %v4725
        %v4886 = vadd.f32 %v4418, %v4726
        %v4887 = vadd.f32 %v4419, %v4727
        %v4888 = vadd.f32 %v4420, %v4728
        %v4889 = vadd.f32 %v4421, %v4729
        %v4890 = vadd.f32 %v4422, %v4730
        %v4891 = vadd.f32 %v4423, %v4731
        %v4892 = vadd.f32 %v4424, %v4732
        %v4893 = vadd.f32 %v4425, %v4733
        %v4894 = vadd.f32 %v4426, %v4734
        %v4895 = vadd.f32 %v4427, %v4735
        %v4896 = vadd.f32 %v4428, %v4736
        %v4897 = vadd.f32 %v4429, %v4737
        %v4898 = vadd.f32 %v4430, %v4738
        %v4899 = vadd.f32 %v4431, %v4739
        %v4900 = vadd.f32 %v4432, %v4740
        %v4901 = vadd.f32 %v4433, %v4741
        %v4902 = vadd.f32 %v4434, %v4742
        %v4903 = vadd.f32 %v4435, %v4743
        %v4904 = vadd.f32 %v4436, %v4744
        %v4905 = vadd.f32 %v4437, %v4745
        %v4906 = vadd.f32 %v4438, %v4746
        %v4907 = vadd.f32 %v4439, %v4747
        %v4908 = vadd.f32 %v4440, %v4748
        %v4909 = vadd.f32 %v4441, %v4749
        %v4910 = vadd.f32 %v4442, %v4750
        %v4911 = vadd.f32 %v4443, %v4751
        %v4912 = vadd.f32 %v4444, %v4752
        %v4913 = vadd.f32 %v4445, %v4753
        %v4914 = vadd.f32 %v4446, %v4754
        %v4915 = vadd.f32 %v4447, %v4755
        %v4916 = vadd.f32 %v4448, %v4756
        %v4917 = vadd.f32 %v4449, %v4757
        %v4918 = vadd.f32 %v4450, %v4758
        %v4919 = vadd.f32 %v4451, %v4759
        %v4920 = vadd.f32 %v4452, %v4760
        %v4921 = vadd.f32 %v4453, %v4761
        %v4922 = vadd.f32 %v4454, %v4762
        %v4923 = vadd.f32 %v4455, %v4763
        %v4924 = vadd.f32 %v4456, %v4764
        %v4925 = vadd.f32 %v4457, %v4765
        %v4926 = vadd.f32 %v4458, %v4766
        %v4927 = vadd.f32 %v4459, %v4767
        %v4928 = vadd.f32 %v4460, %v4768
        %v4929 = vadd.f32 %v4461, %v4769
        %v4930 = vadd.f32 %v4462, %v4770
        %v4931 = vadd.f32 %v4463, %v4771
        %v4932 = vadd.f32 %v4464, %v4772
        %v4933 = vadd.f32 %v4465, %v4773
        %v4934 = vadd.f32 %v4466, %v4774
        %v4935 = vadd.f32 %v4467, %v4775
        %v4936 = vadd.f32 %v4468, %v4776
        %v4937 = vadd.f32 %v4469, %v4777
        %v4938 = vadd.f32 %v4470, %v4778
        %v4939 = vadd.f32 %v4471, %v4779
        %v4940 = vadd.f32 %v4472, %v4780
        %v4941 = vadd.f32 %v4473, %v4781
        %v4942 = vadd.f32 %v4474, %v4782
        %v4943 = vadd.f32 %v4475, %v4783
        %v4944 = vadd.f32 %v4476, %v4784
        %v4945 = vadd.f32 %v4477, %v4785
        %v4946 = vadd.f32 %v4478, %v4786
        %v4947 = vadd.f32 %v4479, %v4787
        %v4948 = vadd.f32 %v4480, %v4788
        %v4949 = vadd.f32 %v4481, %v4789
        %v4950 = vadd.f32 %v4482, %v4790
        %v4951 = vadd.f32 %v4483, %v4791
        %v4952 = vadd.f32 %v4484, %v4792
        %v4953 = vadd.f32 %v4485, %v4793
        %v4954 = vadd.f32 %v4486, %v4794
        %v4955 = vadd.f32 %v4487, %v4795
        %v4956 = vadd.f32 %v4488, %v4796
        %v4957 = vadd.f32 %v4489, %v4797
        %v4958 = vadd.f32 %v4490, %v4798
        %v4959 = vadd.f32 %v4491, %v4799
        %v4960 = vadd.f32 %v4492, %v4800
        %v4961 = vadd.f32 %v4493, %v4801
        %v4962 = vadd.f32 %v4494, %v4802
        %v4963 = vadd.f32 %v4495, %v4803
        %v4964 = vadd.f32 %v4496, %v4804
        %v4965 = vadd.f32 %v4497, %v4805
        %v4966 = vadd.f32 %v4498, %v4806
        %v4967 = vadd.f32 %v4499, %v4807
        %v4968 = vadd.f32 %v4500, %v4808
        %v4969 = vadd.f32 %v4501, %v4809
        %v4970 = vadd.f32 %v4502, %v4810
        %v4971 = vadd.f32 %v4503, %v4811
        %v4972 = vadd.f32 %v4504, %v4812
        %v4973 = vadd.f32 %v4505, %v4813
        %v4974 = vadd.f32 %v4506, %v4814
        %v4975 = vadd.f32 %v4507, %v4815
        %v4976 = vadd.f32 %v4508, %v4816
        %v4977 = vadd.f32 %v4509, %v4817
        %v4978 = vadd.f32 %v4510, %v4818
        %v4979 = vadd.f32 %v4511, %v4819
        %v4980 = vadd.f32 %v4512, %v4820
        %v4981 = vadd.f32 %v4513, %v4821
        %v4982 = vadd.f32 %v4514, %v4822
        %v4983 = vadd.f32 %v4515, %v4823
        %v4984 = vadd.f32 %v4516, %v4824
        %v4985 = vadd.f32 %v4517, %v4825
        %v4986 = vadd.f32 %v4518, %v4826
        %v4987 = vadd.f32 %v4519, %v4827
        %v4988 = vadd.f32 %v4520, %v4828
        %v4989 = vadd.f32 %v4521, %v4829
        %v4990 = vadd.f32 %v4522, %v4830
        %v4991 = vld [vmem:[%s8] sm:$0xff]
        %v4992 = vld [vmem:[%s8 + $0x8] sm:$0xff]
        %v4993 = vld [vmem:[%s8 + $0x10] sm:$0xff]
        %v4994 = vld [vmem:[%s8 + $0x18] sm:$0xff]
        %v4995 = vld [vmem:[%s8 + $0x20] sm:$0xff]
        %v4996 = vld [vmem:[%s8 + $0x28] sm:$0xff]
        %v4997 = vld [vmem:[%s8 + $0x30] sm:$0xff]
        %v4998 = vld [vmem:[%s8 + $0x38] sm:$0xff]
        %v4999 = vld [vmem:[%s8 + $0x40] sm:$0xff]
        %v5000 = vld [vmem:[%s8 + $0x48] sm:$0xff]
        %v5001 = vld [vmem:[%s8 + $0x50] sm:$0xff]
        %v5002 = vld [vmem:[%s8 + $0x58] sm:$0xff]
        %v5003 = vld [vmem:[%s8 + $0x60] sm:$0xff]
        %v5004 = vld [vmem:[%s8 + $0x68] sm:$0xff]
        %v5005 = vld [vmem:[%s8 + $0x70] sm:$0xff]
        %v5006 = vld [vmem:[%s8 + $0x78] sm:$0xff]
        %v5007 = vld [vmem:[%s8 + $0x80] sm:$0xff]
        %v5008 = vld [vmem:[%s8 + $0x88] sm:$0xff]
        %v5009 = vld [vmem:[%s8 + $0x90] sm:$0xff]
        %v5010 = vld [vmem:[%s8 + $0x98] sm:$0xff]
        %v5011 = vld [vmem:[%s8 + $0xa0] sm:$0xff]
        %v5012 = vld [vmem:[%s8 + $0xa8] sm:$0xff]
        %v5013 = vld [vmem:[%s8 + $0xb0] sm:$0xff]
        %v5014 = vld [vmem:[%s8 + $0xb8] sm:$0xff]
        %v5015 = vld [vmem:[%s8 + $0xc0] sm:$0xff]
        %v5016 = vld [vmem:[%s8 + $0xc8] sm:$0xff]
        %v5017 = vld [vmem:[%s8 + $0xd0] sm:$0xff]
        %v5018 = vld [vmem:[%s8 + $0xd8] sm:$0xff]
        %v5019 = vld [vmem:[%s8 + $0xe0] sm:$0xff]
        %v5020 = vld [vmem:[%s8 + $0xe8] sm:$0xff]
        %v5021 = vld [vmem:[%s8 + $0xf0] sm:$0xff]
        %v5022 = vld [vmem:[%s8 + $0xf8] sm:$0xff]
        %5024 = vset.pattern.permute.xlu0 0
        %5025 = vperm.xlu0 %5024, %v4991
        %v5026 = vpop.permute.xlu0 %5025
        %5029 = vset.pattern.permute.xlu0 0
        %5030 = vperm.xlu0 %5029, %v4992
        %v5031 = vpop.permute.xlu0 %5030
        %5034 = vset.pattern.permute.xlu0 0
        %5035 = vperm.xlu0 %5034, %v4993
        %v5036 = vpop.permute.xlu0 %5035
        %5039 = vset.pattern.permute.xlu0 0
        %5040 = vperm.xlu0 %5039, %v4994
        %v5041 = vpop.permute.xlu0 %5040
        %5044 = vset.pattern.permute.xlu0 0
        %5045 = vperm.xlu0 %5044, %v4995
        %v5046 = vpop.permute.xlu0 %5045
        %5049 = vset.pattern.permute.xlu0 0
        %5050 = vperm.xlu0 %5049, %v4996
        %v5051 = vpop.permute.xlu0 %5050
        %5054 = vset.pattern.permute.xlu0 0
        %5055 = vperm.xlu0 %5054, %v4997
        %v5056 = vpop.permute.xlu0 %5055
        %5059 = vset.pattern.permute.xlu0 0
        %5060 = vperm.xlu0 %5059, %v4998
        %v5061 = vpop.permute.xlu0 %5060
        %5064 = vset.pattern.permute.xlu0 0
        %5065 = vperm.xlu0 %5064, %v4999
        %v5066 = vpop.permute.xlu0 %5065
        %5069 = vset.pattern.permute.xlu0 0
        %5070 = vperm.xlu0 %5069, %v5000
        %v5071 = vpop.permute.xlu0 %5070
        %5074 = vset.pattern.permute.xlu0 0
        %5075 = vperm.xlu0 %5074, %v5001
        %v5076 = vpop.permute.xlu0 %5075
        %5079 = vset.pattern.permute.xlu0 0
        %5080 = vperm.xlu0 %5079, %v5002
        %v5081 = vpop.permute.xlu0 %5080
        %5084 = vset.pattern.permute.xlu0 0
        %5085 = vperm.xlu0 %5084, %v5003
        %v5086 = vpop.permute.xlu0 %5085
        %5089 = vset.pattern.permute.xlu0 0
        %5090 = vperm.xlu0 %5089, %v5004
        %v5091 = vpop.permute.xlu0 %5090
        %5094 = vset.pattern.permute.xlu0 0
        %5095 = vperm.xlu0 %5094, %v5005
        %v5096 = vpop.permute.xlu0 %5095
        %5099 = vset.pattern.permute.xlu0 0
        %5100 = vperm.xlu0 %5099, %v5006
        %v5101 = vpop.permute.xlu0 %5100
        %5104 = vset.pattern.permute.xlu0 0
        %5105 = vperm.xlu0 %5104, %v5007
        %v5106 = vpop.permute.xlu0 %5105
        %5109 = vset.pattern.permute.xlu0 0
        %5110 = vperm.xlu0 %5109, %v5008
        %v5111 = vpop.permute.xlu0 %5110
        %5114 = vset.pattern.permute.xlu0 0
        %5115 = vperm.xlu0 %5114, %v5009
        %v5116 = vpop.permute.xlu0 %5115
        %5119 = vset.pattern.permute.xlu0 0
        %5120 = vperm.xlu0 %5119, %v5010
        %v5121 = vpop.permute.xlu0 %5120
        %5124 = vset.pattern.permute.xlu0 0
        %5125 = vperm.xlu0 %5124, %v5011
        %v5126 = vpop.permute.xlu0 %5125
        %5129 = vset.pattern.permute.xlu0 0
        %5130 = vperm.xlu0 %5129, %v5012
        %v5131 = vpop.permute.xlu0 %5130
        %5134 = vset.pattern.permute.xlu0 0
        %5135 = vperm.xlu0 %5134, %v5013
        %v5136 = vpop.permute.xlu0 %5135
        %5139 = vset.pattern.permute.xlu0 0
        %5140 = vperm.xlu0 %5139, %v5014
        %v5141 = vpop.permute.xlu0 %5140
        %5144 = vset.pattern.permute.xlu0 0
        %5145 = vperm.xlu0 %5144, %v5015
        %v5146 = vpop.permute.xlu0 %5145
        %5149 = vset.pattern.permute.xlu0 0
        %5150 = vperm.xlu0 %5149, %v5016
        %v5151 = vpop.permute.xlu0 %5150
        %5154 = vset.pattern.permute.xlu0 0
        %5155 = vperm.xlu0 %5154, %v5017
        %v5156 = vpop.permute.xlu0 %5155
        %5159 = vset.pattern.permute.xlu0 0
        %5160 = vperm.xlu0 %5159, %v5018
        %v5161 = vpop.permute.xlu0 %5160
        %5164 = vset.pattern.permute.xlu0 0
        %5165 = vperm.xlu0 %5164, %v5019
        %v5166 = vpop.permute.xlu0 %5165
        %5169 = vset.pattern.permute.xlu0 0
        %5170 = vperm.xlu0 %5169, %v5020
        %v5171 = vpop.permute.xlu0 %5170
        %5174 = vset.pattern.permute.xlu0 0
        %5175 = vperm.xlu0 %5174, %v5021
        %v5176 = vpop.permute.xlu0 %5175
        %5179 = vset.pattern.permute.xlu0 0
        %5180 = vperm.xlu0 %5179, %v5022
        %v5181 = vpop.permute.xlu0 %5180
        %v5183 = vadd.f32 %v4831, %v5026
        %v5184 = vadd.f32 %v4832, %v5026
        %v5185 = vadd.f32 %v4833, %v5026
        %v5186 = vadd.f32 %v4834, %v5026
        %v5187 = vadd.f32 %v4835, %v5026
        %v5188 = vadd.f32 %v4836, %v5031
        %v5189 = vadd.f32 %v4837, %v5031
        %v5190 = vadd.f32 %v4838, %v5031
        %v5191 = vadd.f32 %v4839, %v5031
        %v5192 = vadd.f32 %v4840, %v5031
        %v5193 = vadd.f32 %v4841, %v5036
        %v5194 = vadd.f32 %v4842, %v5036
        %v5195 = vadd.f32 %v4843, %v5036
        %v5196 = vadd.f32 %v4844, %v5036
        %v5197 = vadd.f32 %v4845, %v5036
        %v5198 = vadd.f32 %v4846, %v5041
        %v5199 = vadd.f32 %v4847, %v5041
        %v5200 = vadd.f32 %v4848, %v5041
        %v5201 = vadd.f32 %v4849, %v5041
        %v5202 = vadd.f32 %v4850, %v5041
        %v5203 = vadd.f32 %v4851, %v5046
        %v5204 = vadd.f32 %v4852, %v5046
        %v5205 = vadd.f32 %v4853, %v5046
        %v5206 = vadd.f32 %v4854, %v5046
        %v5207 = vadd.f32 %v4855, %v5046
        %v5208 = vadd.f32 %v4856, %v5051
        %v5209 = vadd.f32 %v4857, %v5051
        %v5210 = vadd.f32 %v4858, %v5051
        %v5211 = vadd.f32 %v4859, %v5051
        %v5212 = vadd.f32 %v4860, %v5051
        %v5213 = vadd.f32 %v4861, %v5056
        %v5214 = vadd.f32 %v4862, %v5056
        %v5215 = vadd.f32 %v4863, %v5056
        %v5216 = vadd.f32 %v4864, %v5056
        %v5217 = vadd.f32 %v4865, %v5056
        %v5218 = vadd.f32 %v4866, %v5061
        %v5219 = vadd.f32 %v4867, %v5061
        %v5220 = vadd.f32 %v4868, %v5061
        %v5221 = vadd.f32 %v4869, %v5061
        %v5222 = vadd.f32 %v4870, %v5061
        %v5223 = vadd.f32 %v4871, %v5066
        %v5224 = vadd.f32 %v4872, %v5066
        %v5225 = vadd.f32 %v4873, %v5066
        %v5226 = vadd.f32 %v4874, %v5066
        %v5227 = vadd.f32 %v4875, %v5066
        %v5228 = vadd.f32 %v4876, %v5071
        %v5229 = vadd.f32 %v4877, %v5071
        %v5230 = vadd.f32 %v4878, %v5071
        %v5231 = vadd.f32 %v4879, %v5071
        %v5232 = vadd.f32 %v4880, %v5071
        %v5233 = vadd.f32 %v4881, %v5076
        %v5234 = vadd.f32 %v4882, %v5076
        %v5235 = vadd.f32 %v4883, %v5076
        %v5236 = vadd.f32 %v4884, %v5076
        %v5237 = vadd.f32 %v4885, %v5076
        %v5238 = vadd.f32 %v4886, %v5081
        %v5239 = vadd.f32 %v4887, %v5081
        %v5240 = vadd.f32 %v4888, %v5081
        %v5241 = vadd.f32 %v4889, %v5081
        %v5242 = vadd.f32 %v4890, %v5081
        %v5243 = vadd.f32 %v4891, %v5086
        %v5244 = vadd.f32 %v4892, %v5086
        %v5245 = vadd.f32 %v4893, %v5086
        %v5246 = vadd.f32 %v4894, %v5086
        %v5247 = vadd.f32 %v4895, %v5086
        %v5248 = vadd.f32 %v4896, %v5091
        %v5249 = vadd.f32 %v4897, %v5091
        %v5250 = vadd.f32 %v4898, %v5091
        %v5251 = vadd.f32 %v4899, %v5091
        %v5252 = vadd.f32 %v4900, %v5091
        %v5253 = vadd.f32 %v4901, %v5096
        %v5254 = vadd.f32 %v4902, %v5096
        %v5255 = vadd.f32 %v4903, %v5096
        %v5256 = vadd.f32 %v4904, %v5096
        %v5257 = vadd.f32 %v4905, %v5096
        %v5258 = vadd.f32 %v4906, %v5101
        %v5259 = vadd.f32 %v4907, %v5101
        %v5260 = vadd.f32 %v4908, %v5101
        %v5261 = vadd.f32 %v4909, %v5101
        %v5262 = vadd.f32 %v4910, %v5101
        %v5263 = vadd.f32 %v4911, %v5106
        %v5264 = vadd.f32 %v4912, %v5106
        %v5265 = vadd.f32 %v4913, %v5106
        %v5266 = vadd.f32 %v4914, %v5106
        %v5267 = vadd.f32 %v4915, %v5106
        %v5268 = vadd.f32 %v4916, %v5111
        %v5269 = vadd.f32 %v4917, %v5111
        %v5270 = vadd.f32 %v4918, %v5111
        %v5271 = vadd.f32 %v4919, %v5111
        %v5272 = vadd.f32 %v4920, %v5111
        %v5273 = vadd.f32 %v4921, %v5116
        %v5274 = vadd.f32 %v4922, %v5116
        %v5275 = vadd.f32 %v4923, %v5116
        %v5276 = vadd.f32 %v4924, %v5116
        %v5277 = vadd.f32 %v4925, %v5116
        %v5278 = vadd.f32 %v4926, %v5121
        %v5279 = vadd.f32 %v4927, %v5121
        %v5280 = vadd.f32 %v4928, %v5121
        %v5281 = vadd.f32 %v4929, %v5121
        %v5282 = vadd.f32 %v4930, %v5121
        %v5283 = vadd.f32 %v4931, %v5126
        %v5284 = vadd.f32 %v4932, %v5126
        %v5285 = vadd.f32 %v4933, %v5126
        %v5286 = vadd.f32 %v4934, %v5126
        %v5287 = vadd.f32 %v4935, %v5126
        %v5288 = vadd.f32 %v4936, %v5131
        %v5289 = vadd.f32 %v4937, %v5131
        %v5290 = vadd.f32 %v4938, %v5131
        %v5291 = vadd.f32 %v4939, %v5131
        %v5292 = vadd.f32 %v4940, %v5131
        %v5293 = vadd.f32 %v4941, %v5136
        %v5294 = vadd.f32 %v4942, %v5136
        %v5295 = vadd.f32 %v4943, %v5136
        %v5296 = vadd.f32 %v4944, %v5136
        %v5297 = vadd.f32 %v4945, %v5136
        %v5298 = vadd.f32 %v4946, %v5141
        %v5299 = vadd.f32 %v4947, %v5141
        %v5300 = vadd.f32 %v4948, %v5141
        %v5301 = vadd.f32 %v4949, %v5141
        %v5302 = vadd.f32 %v4950, %v5141
        %v5303 = vadd.f32 %v4951, %v5146
        %v5304 = vadd.f32 %v4952, %v5146
        %v5305 = vadd.f32 %v4953, %v5146
        %v5306 = vadd.f32 %v4954, %v5146
        %v5307 = vadd.f32 %v4955, %v5146
        %v5308 = vadd.f32 %v4956, %v5151
        %v5309 = vadd.f32 %v4957, %v5151
        %v5310 = vadd.f32 %v4958, %v5151
        %v5311 = vadd.f32 %v4959, %v5151
        %v5312 = vadd.f32 %v4960, %v5151
        %v5313 = vadd.f32 %v4961, %v5156
        %v5314 = vadd.f32 %v4962, %v5156
        %v5315 = vadd.f32 %v4963, %v5156
        %v5316 = vadd.f32 %v4964, %v5156
        %v5317 = vadd.f32 %v4965, %v5156
        %v5318 = vadd.f32 %v4966, %v5161
        %v5319 = vadd.f32 %v4967, %v5161
        %v5320 = vadd.f32 %v4968, %v5161
        %v5321 = vadd.f32 %v4969, %v5161
        %v5322 = vadd.f32 %v4970, %v5161
        %v5323 = vadd.f32 %v4971, %v5166
        %v5324 = vadd.f32 %v4972, %v5166
        %v5325 = vadd.f32 %v4973, %v5166
        %v5326 = vadd.f32 %v4974, %v5166
        %v5327 = vadd.f32 %v4975, %v5166
        %v5328 = vadd.f32 %v4976, %v5171
        %v5329 = vadd.f32 %v4977, %v5171
        %v5330 = vadd.f32 %v4978, %v5171
        %v5331 = vadd.f32 %v4979, %v5171
        %v5332 = vadd.f32 %v4980, %v5171
        %v5333 = vadd.f32 %v4981, %v5176
        %v5334 = vadd.f32 %v4982, %v5176
        %v5335 = vadd.f32 %v4983, %v5176
        %v5336 = vadd.f32 %v4984, %v5176
        %v5337 = vadd.f32 %v4985, %v5176
        %v5338 = vadd.f32 %v4986, %v5181
        %v5339 = vadd.f32 %v4987, %v5181
        %v5340 = vadd.f32 %v4988, %v5181
        %v5341 = vadd.f32 %v4989, %v5181
        %v5342 = vadd.f32 %v4990, %v5181
        %5343 = vst [vmem:[%s595] sm:$0xff] %v5183
        %5344 = vst [vmem:[%s595 + $0x8] sm:$0xff] %v5184
        %5345 = vst [vmem:[%s595 + $0x10] sm:$0xff] %v5185
        %5346 = vst [vmem:[%s595 + $0x18] sm:$0xff] %v5186
        %5347 = vst [vmem:[%s595 + $0x20] sm:$0xff] %v5187
        %5348 = vst [vmem:[%s595 + $0x28] sm:$0xff] %v5188
        %5349 = vst [vmem:[%s595 + $0x30] sm:$0xff] %v5189
        %5350 = vst [vmem:[%s595 + $0x38] sm:$0xff] %v5190
        %5351 = vst [vmem:[%s595 + $0x40] sm:$0xff] %v5191
        %5352 = vst [vmem:[%s595 + $0x48] sm:$0xff] %v5192
        %5353 = vst [vmem:[%s595 + $0x50] sm:$0xff] %v5193
        %5354 = vst [vmem:[%s595 + $0x58] sm:$0xff] %v5194
        %5355 = vst [vmem:[%s595 + $0x60] sm:$0xff] %v5195
        %5356 = vst [vmem:[%s595 + $0x68] sm:$0xff] %v5196
        %5357 = vst [vmem:[%s595 + $0x70] sm:$0xff] %v5197
        %5358 = vst [vmem:[%s595 + $0x78] sm:$0xff] %v5198
        %5359 = vst [vmem:[%s595 + $0x80] sm:$0xff] %v5199
        %5360 = vst [vmem:[%s595 + $0x88] sm:$0xff] %v5200
        %5361 = vst [vmem:[%s595 + $0x90] sm:$0xff] %v5201
        %5362 = vst [vmem:[%s595 + $0x98] sm:$0xff] %v5202
        %5363 = vst [vmem:[%s595 + $0xa0] sm:$0xff] %v5203
        %5364 = vst [vmem:[%s595 + $0xa8] sm:$0xff] %v5204
        %5365 = vst [vmem:[%s595 + $0xb0] sm:$0xff] %v5205
        %5366 = vst [vmem:[%s595 + $0xb8] sm:$0xff] %v5206
        %5367 = vst [vmem:[%s595 + $0xc0] sm:$0xff] %v5207
        %5368 = vst [vmem:[%s595 + $0xc8] sm:$0xff] %v5208
        %5369 = vst [vmem:[%s595 + $0xd0] sm:$0xff] %v5209
        %5370 = vst [vmem:[%s595 + $0xd8] sm:$0xff] %v5210
        %5371 = vst [vmem:[%s595 + $0xe0] sm:$0xff] %v5211
        %5372 = vst [vmem:[%s595 + $0xe8] sm:$0xff] %v5212
        %5373 = vst [vmem:[%s595 + $0xf0] sm:$0xff] %v5213
        %5374 = vst [vmem:[%s595 + $0xf8] sm:$0xff] %v5214
        %5375 = vst [vmem:[%s595 + $0x100] sm:$0xff] %v5215
        %5376 = vst [vmem:[%s595 + $0x108] sm:$0xff] %v5216
        %5377 = vst [vmem:[%s595 + $0x110] sm:$0xff] %v5217
        %5378 = vst [vmem:[%s595 + $0x118] sm:$0xff] %v5218
        %5379 = vst [vmem:[%s595 + $0x120] sm:$0xff] %v5219
        %5380 = vst [vmem:[%s595 + $0x128] sm:$0xff] %v5220
        %5381 = vst [vmem:[%s595 + $0x130] sm:$0xff] %v5221
        %5382 = vst [vmem:[%s595 + $0x138] sm:$0xff] %v5222
        %5383 = vst [vmem:[%s595 + $0x140] sm:$0xff] %v5223
        %5384 = vst [vmem:[%s595 + $0x148] sm:$0xff] %v5224
        %5385 = vst [vmem:[%s595 + $0x150] sm:$0xff] %v5225
        %5386 = vst [vmem:[%s595 + $0x158] sm:$0xff] %v5226
        %5387 = vst [vmem:[%s595 + $0x160] sm:$0xff] %v5227
        %5388 = vst [vmem:[%s595 + $0x168] sm:$0xff] %v5228
        %5389 = vst [vmem:[%s595 + $0x170] sm:$0xff] %v5229
        %5390 = vst [vmem:[%s595 + $0x178] sm:$0xff] %v5230
        %5391 = vst [vmem:[%s595 + $0x180] sm:$0xff] %v5231
        %5392 = vst [vmem:[%s595 + $0x188] sm:$0xff] %v5232
        %5393 = vst [vmem:[%s595 + $0x190] sm:$0xff] %v5233
        %5394 = vst [vmem:[%s595 + $0x198] sm:$0xff] %v5234
        %5395 = vst [vmem:[%s595 + $0x1a0] sm:$0xff] %v5235
        %5396 = vst [vmem:[%s595 + $0x1a8] sm:$0xff] %v5236
        %5397 = vst [vmem:[%s595 + $0x1b0] sm:$0xff] %v5237
        %5398 = vst [vmem:[%s595 + $0x1b8] sm:$0xff] %v5238
        %5399 = vst [vmem:[%s595 + $0x1c0] sm:$0xff] %v5239
        %5400 = vst [vmem:[%s595 + $0x1c8] sm:$0xff] %v5240
        %5401 = vst [vmem:[%s595 + $0x1d0] sm:$0xff] %v5241
        %5402 = vst [vmem:[%s595 + $0x1d8] sm:$0xff] %v5242
        %5403 = vst [vmem:[%s595 + $0x1e0] sm:$0xff] %v5243
        %5404 = vst [vmem:[%s595 + $0x1e8] sm:$0xff] %v5244
        %5405 = vst [vmem:[%s595 + $0x1f0] sm:$0xff] %v5245
        %5406 = vst [vmem:[%s595 + $0x1f8] sm:$0xff] %v5246
        %5407 = vst [vmem:[%s595 + $0x200] sm:$0xff] %v5247
        %5408 = vst [vmem:[%s595 + $0x208] sm:$0xff] %v5248
        %5409 = vst [vmem:[%s595 + $0x210] sm:$0xff] %v5249
        %5410 = vst [vmem:[%s595 + $0x218] sm:$0xff] %v5250
        %5411 = vst [vmem:[%s595 + $0x220] sm:$0xff] %v5251
        %5412 = vst [vmem:[%s595 + $0x228] sm:$0xff] %v5252
        %5413 = vst [vmem:[%s595 + $0x230] sm:$0xff] %v5253
        %5414 = vst [vmem:[%s595 + $0x238] sm:$0xff] %v5254
        %5415 = vst [vmem:[%s595 + $0x240] sm:$0xff] %v5255
        %5416 = vst [vmem:[%s595 + $0x248] sm:$0xff] %v5256
        %5417 = vst [vmem:[%s595 + $0x250] sm:$0xff] %v5257
        %5418 = vst [vmem:[%s595 + $0x258] sm:$0xff] %v5258
        %5419 = vst [vmem:[%s595 + $0x260] sm:$0xff] %v5259
        %5420 = vst [vmem:[%s595 + $0x268] sm:$0xff] %v5260
        %5421 = vst [vmem:[%s595 + $0x270] sm:$0xff] %v5261
        %5422 = vst [vmem:[%s595 + $0x278] sm:$0xff] %v5262
        %5423 = vst [vmem:[%s595 + $0x280] sm:$0xff] %v5263
        %5424 = vst [vmem:[%s595 + $0x288] sm:$0xff] %v5264
        %5425 = vst [vmem:[%s595 + $0x290] sm:$0xff] %v5265
        %5426 = vst [vmem:[%s595 + $0x298] sm:$0xff] %v5266
        %5427 = vst [vmem:[%s595 + $0x2a0] sm:$0xff] %v5267
        %5428 = vst [vmem:[%s595 + $0x2a8] sm:$0xff] %v5268
        %5429 = vst [vmem:[%s595 + $0x2b0] sm:$0xff] %v5269
        %5430 = vst [vmem:[%s595 + $0x2b8] sm:$0xff] %v5270
        %5431 = vst [vmem:[%s595 + $0x2c0] sm:$0xff] %v5271
        %5432 = vst [vmem:[%s595 + $0x2c8] sm:$0xff] %v5272
        %5433 = vst [vmem:[%s595 + $0x2d0] sm:$0xff] %v5273
        %5434 = vst [vmem:[%s595 + $0x2d8] sm:$0xff] %v5274
        %5435 = vst [vmem:[%s595 + $0x2e0] sm:$0xff] %v5275
        %5436 = vst [vmem:[%s595 + $0x2e8] sm:$0xff] %v5276
        %5437 = vst [vmem:[%s595 + $0x2f0] sm:$0xff] %v5277
        %5438 = vst [vmem:[%s595 + $0x2f8] sm:$0xff] %v5278
        %5439 = vst [vmem:[%s595 + $0x300] sm:$0xff] %v5279
        %5440 = vst [vmem:[%s595 + $0x308] sm:$0xff] %v5280
        %5441 = vst [vmem:[%s595 + $0x310] sm:$0xff] %v5281
        %5442 = vst [vmem:[%s595 + $0x318] sm:$0xff] %v5282
        %5443 = vst [vmem:[%s595 + $0x320] sm:$0xff] %v5283
        %5444 = vst [vmem:[%s595 + $0x328] sm:$0xff] %v5284
        %5445 = vst [vmem:[%s595 + $0x330] sm:$0xff] %v5285
        %5446 = vst [vmem:[%s595 + $0x338] sm:$0xff] %v5286
        %5447 = vst [vmem:[%s595 + $0x340] sm:$0xff] %v5287
        %5448 = vst [vmem:[%s595 + $0x348] sm:$0xff] %v5288
        %5449 = vst [vmem:[%s595 + $0x350] sm:$0xff] %v5289
        %5450 = vst [vmem:[%s595 + $0x358] sm:$0xff] %v5290
        %5451 = vst [vmem:[%s595 + $0x360] sm:$0xff] %v5291
        %5452 = vst [vmem:[%s595 + $0x368] sm:$0xff] %v5292
        %5453 = vst [vmem:[%s595 + $0x370] sm:$0xff] %v5293
        %5454 = vst [vmem:[%s595 + $0x378] sm:$0xff] %v5294
        %5455 = vst [vmem:[%s595 + $0x380] sm:$0xff] %v5295
        %5456 = vst [vmem:[%s595 + $0x388] sm:$0xff] %v5296
        %5457 = vst [vmem:[%s595 + $0x390] sm:$0xff] %v5297
        %5458 = vst [vmem:[%s595 + $0x398] sm:$0xff] %v5298
        %5459 = vst [vmem:[%s595 + $0x3a0] sm:$0xff] %v5299
        %5460 = vst [vmem:[%s595 + $0x3a8] sm:$0xff] %v5300
        %5461 = vst [vmem:[%s595 + $0x3b0] sm:$0xff] %v5301
        %5462 = vst [vmem:[%s595 + $0x3b8] sm:$0xff] %v5302
        %5463 = vst [vmem:[%s595 + $0x3c0] sm:$0xff] %v5303
        %5464 = vst [vmem:[%s595 + $0x3c8] sm:$0xff] %v5304
        %5465 = vst [vmem:[%s595 + $0x3d0] sm:$0xff] %v5305
        %5466 = vst [vmem:[%s595 + $0x3d8] sm:$0xff] %v5306
        %5467 = vst [vmem:[%s595 + $0x3e0] sm:$0xff] %v5307
        %5468 = vst [vmem:[%s595 + $0x3e8] sm:$0xff] %v5308
        %5469 = vst [vmem:[%s595 + $0x3f0] sm:$0xff] %v5309
        %5470 = vst [vmem:[%s595 + $0x3f8] sm:$0xff] %v5310
        %5471 = vst [vmem:[%s595 + $0x400] sm:$0xff] %v5311
        %5472 = vst [vmem:[%s595 + $0x408] sm:$0xff] %v5312
        %5473 = vst [vmem:[%s595 + $0x410] sm:$0xff] %v5313
        %5474 = vst [vmem:[%s595 + $0x418] sm:$0xff] %v5314
        %5475 = vst [vmem:[%s595 + $0x420] sm:$0xff] %v5315
        %5476 = vst [vmem:[%s595 + $0x428] sm:$0xff] %v5316
        %5477 = vst [vmem:[%s595 + $0x430] sm:$0xff] %v5317
        %5478 = vst [vmem:[%s595 + $0x438] sm:$0xff] %v5318
        %5479 = vst [vmem:[%s595 + $0x440] sm:$0xff] %v5319
        %5480 = vst [vmem:[%s595 + $0x448] sm:$0xff] %v5320
        %5481 = vst [vmem:[%s595 + $0x450] sm:$0xff] %v5321
        %5482 = vst [vmem:[%s595 + $0x458] sm:$0xff] %v5322
        %5483 = vst [vmem:[%s595 + $0x460] sm:$0xff] %v5323
        %5484 = vst [vmem:[%s595 + $0x468] sm:$0xff] %v5324
        %5485 = vst [vmem:[%s595 + $0x470] sm:$0xff] %v5325
        %5486 = vst [vmem:[%s595 + $0x478] sm:$0xff] %v5326
        %5487 = vst [vmem:[%s595 + $0x480] sm:$0xff] %v5327
        %5488 = vst [vmem:[%s595 + $0x488] sm:$0xff] %v5328
        %5489 = vst [vmem:[%s595 + $0x490] sm:$0xff] %v5329
        %5490 = vst [vmem:[%s595 + $0x498] sm:$0xff] %v5330
        %5491 = vst [vmem:[%s595 + $0x4a0] sm:$0xff] %v5331
        %5492 = vst [vmem:[%s595 + $0x4a8] sm:$0xff] %v5332
        %5493 = vst [vmem:[%s595 + $0x4b0] sm:$0xff] %v5333
        %5494 = vst [vmem:[%s595 + $0x4b8] sm:$0xff] %v5334
        %5495 = vst [vmem:[%s595 + $0x4c0] sm:$0xff] %v5335
        %5496 = vst [vmem:[%s595 + $0x4c8] sm:$0xff] %v5336
        %5497 = vst [vmem:[%s595 + $0x4d0] sm:$0xff] %v5337
        %5498 = vst [vmem:[%s595 + $0x4d8] sm:$0xff] %v5338
        %5499 = vst [vmem:[%s595 + $0x4e0] sm:$0xff] %v5339
        %5500 = vst [vmem:[%s595 + $0x4e8] sm:$0xff] %v5340
        %5501 = vst [vmem:[%s595 + $0x4f0] sm:$0xff] %v5341
        %5502 = vst [vmem:[%s595 + $0x4f8] sm:$0xff] %v5342
        %v5503 = vmax.f32 %v4041, 0.0
        %v5504 = vmax.f32 %v4046, 0.0
        %v5505 = vmax.f32 %v4051, 0.0
        %v5506 = vmax.f32 %v4056, 0.0
        %v5507 = vmax.f32 %v4061, 0.0
        %v5508 = vmax.f32 %v4066, 0.0
        %v5509 = vmax.f32 %v4071, 0.0
        %v5510 = vmax.f32 %v4076, 0.0
        %v5511 = vmax.f32 %v4081, 0.0
        %v5512 = vmax.f32 %v4086, 0.0
        %v5513 = vmax.f32 %v4091, 0.0
        %v5514 = vmax.f32 %v4096, 0.0
        %v5515 = vmax.f32 %v4101, 0.0
        %v5516 = vmax.f32 %v4106, 0.0
        %v5517 = vmax.f32 %v4111, 0.0
        %v5518 = vmax.f32 %v4116, 0.0
        %v5519 = vld [vmem:[#allocation6] sm:$0xff]
        %v5520 = vld [vmem:[#allocation6 + $0x8] sm:$0xff]
        %v5521 = vld [vmem:[#allocation6 + $0x10] sm:$0xff]
        %v5522 = vld [vmem:[#allocation6 + $0x18] sm:$0xff]
        %v5523 = vld [vmem:[#allocation6 + $0x20] sm:$0xff]
        %v5524 = vld [vmem:[#allocation6 + $0x28] sm:$0xff]
        %v5525 = vld [vmem:[#allocation6 + $0x30] sm:$0xff]
        %v5526 = vld [vmem:[#allocation6 + $0x38] sm:$0xff]
        %v5527 = vld [vmem:[#allocation6 + $0x40] sm:$0xff]
        %v5528 = vld [vmem:[#allocation6 + $0x48] sm:$0xff]
        %v5529 = vld [vmem:[#allocation6 + $0x50] sm:$0xff]
        %v5530 = vld [vmem:[#allocation6 + $0x58] sm:$0xff]
        %v5531 = vld [vmem:[#allocation6 + $0x60] sm:$0xff]
        %v5532 = vld [vmem:[#allocation6 + $0x68] sm:$0xff]
        %v5533 = vld [vmem:[#allocation6 + $0x70] sm:$0xff]
        %v5534 = vld [vmem:[#allocation6 + $0x78] sm:$0xff]
        %v5535 = vld [vmem:[%s10] sm:$0xff]
        %v5536 = vld [vmem:[%s10 + $0x8] sm:$0xff]
        %v5537 = vld [vmem:[%s10 + $0x10] sm:$0xff]
        %v5538 = vld [vmem:[%s10 + $0x18] sm:$0xff]
        %v5539 = vld [vmem:[%s10 + $0x20] sm:$0xff]
        %v5540 = vld [vmem:[%s10 + $0x28] sm:$0xff]
        %v5541 = vld [vmem:[%s10 + $0x30] sm:$0xff]
        %v5542 = vld [vmem:[%s10 + $0x38] sm:$0xff]
        %v5543 = vld [vmem:[%s10 + $0x40] sm:$0xff]
        %v5544 = vld [vmem:[%s10 + $0x48] sm:$0xff]
        %v5545 = vld [vmem:[%s10 + $0x50] sm:$0xff]
        %v5546 = vld [vmem:[%s10 + $0x58] sm:$0xff]
        %v5547 = vld [vmem:[%s10 + $0x60] sm:$0xff]
        %v5548 = vld [vmem:[%s10 + $0x68] sm:$0xff]
        %v5549 = vld [vmem:[%s10 + $0x70] sm:$0xff]
        %v5550 = vld [vmem:[%s10 + $0x78] sm:$0xff]
        %5552 = vset.pattern.permute.xlu0 0
        %5553 = vperm.xlu0 %5552, %v5535
        %v5554 = vpop.permute.xlu0 %5553
        %5557 = vset.pattern.permute.xlu0 0
        %5558 = vperm.xlu0 %5557, %v5536
        %v5559 = vpop.permute.xlu0 %5558
        %5562 = vset.pattern.permute.xlu0 0
        %5563 = vperm.xlu0 %5562, %v5537
        %v5564 = vpop.permute.xlu0 %5563
        %5567 = vset.pattern.permute.xlu0 0
        %5568 = vperm.xlu0 %5567, %v5538
        %v5569 = vpop.permute.xlu0 %5568
        %5572 = vset.pattern.permute.xlu0 0
        %5573 = vperm.xlu0 %5572, %v5539
        %v5574 = vpop.permute.xlu0 %5573
        %5577 = vset.pattern.permute.xlu0 0
        %5578 = vperm.xlu0 %5577, %v5540
        %v5579 = vpop.permute.xlu0 %5578
        %5582 = vset.pattern.permute.xlu0 0
        %5583 = vperm.xlu0 %5582, %v5541
        %v5584 = vpop.permute.xlu0 %5583
        %5587 = vset.pattern.permute.xlu0 0
        %5588 = vperm.xlu0 %5587, %v5542
        %v5589 = vpop.permute.xlu0 %5588
        %5592 = vset.pattern.permute.xlu0 0
        %5593 = vperm.xlu0 %5592, %v5543
        %v5594 = vpop.permute.xlu0 %5593
        %5597 = vset.pattern.permute.xlu0 0
        %5598 = vperm.xlu0 %5597, %v5544
        %v5599 = vpop.permute.xlu0 %5598
        %5602 = vset.pattern.permute.xlu0 0
        %5603 = vperm.xlu0 %5602, %v5545
        %v5604 = vpop.permute.xlu0 %5603
        %5607 = vset.pattern.permute.xlu0 0
        %5608 = vperm.xlu0 %5607, %v5546
        %v5609 = vpop.permute.xlu0 %5608
        %5612 = vset.pattern.permute.xlu0 0
        %5613 = vperm.xlu0 %5612, %v5547
        %v5614 = vpop.permute.xlu0 %5613
        %5617 = vset.pattern.permute.xlu0 0
        %5618 = vperm.xlu0 %5617, %v5548
        %v5619 = vpop.permute.xlu0 %5618
        %5622 = vset.pattern.permute.xlu0 0
        %5623 = vperm.xlu0 %5622, %v5549
        %v5624 = vpop.permute.xlu0 %5623
        %5627 = vset.pattern.permute.xlu0 0
        %5628 = vperm.xlu0 %5627, %v5550
        %v5629 = vpop.permute.xlu0 %5628
        %5631 = vmatprep.subr.mxu0 0.0
        %5632 = vmatpush1.msra.mxu0 %v5518
        %5633 = vmatprep.subr.mxu0 0.0
        %5634 = vmatpush1.msra.mxu0 %v5517
        %5635 = vmatprep.subr.mxu0 0.0
        %5636 = vmatpush1.msra.mxu0 %v5516
        %5637 = vmatprep.subr.mxu0 0.0
        %5638 = vmatpush1.msra.mxu0 %v5515
        %5639 = vmatprep.subr.mxu0 0.0
        %5640 = vmatpush1.msra.mxu0 %v5514
        %5641 = vmatprep.subr.mxu0 0.0
        %5642 = vmatpush1.msra.mxu0 %v5513
        %5643 = vmatprep.subr.mxu0 0.0
        %5644 = vmatpush1.msra.mxu0 %v5512
        %5645 = vmatprep.subr.mxu0 0.0
        %5646 = vmatpush1.msra.mxu0 %v5511
        %5647 = vmatprep.subr.mxu0 0.0
        %5648 = vmatpush1.msra.mxu0 %v5510
        %5649 = vmatprep.subr.mxu0 0.0
        %5650 = vmatpush1.msra.mxu0 %v5509
        %5651 = vmatprep.subr.mxu0 0.0
        %5652 = vmatpush1.msra.mxu0 %v5508
        %5653 = vmatprep.subr.mxu0 0.0
        %5654 = vmatpush1.msra.mxu0 %v5507
        %5655 = vmatprep.subr.mxu0 0.0
        %5656 = vmatpush1.msra.mxu0 %v5506
        %5657 = vmatprep.subr.mxu0 0.0
        %5658 = vmatpush1.msra.mxu0 %v5505
        %5659 = vmatprep.subr.mxu0 0.0
        %5660 = vmatpush1.msra.mxu0 %v5504
        %5661 = vmatprep.subr.mxu0 0.0
        %5662 = vmatpush1.msra.mxu0 %v5503
        %5663 = vmatprep.subr.mxu0 0.0
        %5664 = vmatpush2.msra.mxu0 0.0
        %5665 = vmatprep.subr.mxu0 0.0
        %5666 = vmatpush2.msra.mxu0 0.0
        %5667 = vmatprep.subr.mxu0 0.0
        %5668 = vmatpush2.msra.mxu0 0.0
        %5669 = vmatprep.subr.mxu0 0.0
        %5670 = vmatpush2.msra.mxu0 0.0
        %5671 = vmatprep.subr.mxu0 0.0
        %5672 = vmatpush2.msra.mxu0 0.0
        %5673 = vmatprep.subr.mxu0 0.0
        %5674 = vmatpush2.msra.mxu0 0.0
        %5675 = vmatprep.subr.mxu0 0.0
        %5676 = vmatpush2.msra.mxu0 0.0
        %5677 = vmatprep.subr.mxu0 0.0
        %5678 = vmatpush2.msra.mxu0 0.0
        %5679 = vmatprep.subr.mxu0 0.0
        %5680 = vmatpush2.msra.mxu0 0.0
        %5681 = vmatprep.subr.mxu0 0.0
        %5682 = vmatpush2.msra.mxu0 0.0
        %5683 = vmatprep.subr.mxu0 0.0
        %5684 = vmatpush2.msra.mxu0 0.0
        %5685 = vmatprep.subr.mxu0 0.0
        %5686 = vmatpush2.msra.mxu0 0.0
        %5687 = vmatprep.subr.mxu0 0.0
        %5688 = vmatpush2.msra.mxu0 0.0
        %5689 = vmatprep.subr.mxu0 0.0
        %5690 = vmatpush2.msra.mxu0 0.0
        %5691 = vmatprep.subr.mxu0 0.0
        %5692 = vmatpush2.msra.mxu0 0.0
        %5693 = vmatprep.subr.mxu0 0.0
        %5694 = vmatpush2.msra.mxu0 0.0
        %5695 = vmatprep.mubr.f32.mxu0 0.0
        %5696 = vmatmul.mubr.f32.gmra.mxu0 %v5519
        %v5697 = vpop.f32.mrf.mxu0
        %v5698 = vadd.f32 %v5554, %v5697
        %v5699 = vpop.f32.mrf.mxu0
        %5700 = vmatprep.mubr.f32.mxu0 0.0
        %5701 = vmatmul.mubr.f32.gmra.mxu0 %v5520
        %v5702 = vpop.f32.mrf.mxu0
        %v5703 = vadd.f32 %v5559, %v5702
        %v5704 = vpop.f32.mrf.mxu0
        %5705 = vmatprep.mubr.f32.mxu0 0.0
        %5706 = vmatmul.mubr.f32.gmra.mxu0 %v5521
        %v5707 = vpop.f32.mrf.mxu0
        %v5708 = vadd.f32 %v5564, %v5707
        %v5709 = vpop.f32.mrf.mxu0
        %5710 = vmatprep.mubr.f32.mxu0 0.0
        %5711 = vmatmul.mubr.f32.gmra.mxu0 %v5522
        %v5712 = vpop.f32.mrf.mxu0
        %v5713 = vadd.f32 %v5569, %v5712
        %v5714 = vpop.f32.mrf.mxu0
        %5715 = vmatprep.mubr.f32.mxu0 0.0
        %5716 = vmatmul.mubr.f32.gmra.mxu0 %v5523
        %v5717 = vpop.f32.mrf.mxu0
        %v5718 = vadd.f32 %v5574, %v5717
        %v5719 = vpop.f32.mrf.mxu0
        %5720 = vmatprep.mubr.f32.mxu0 0.0
        %5721 = vmatmul.mubr.f32.gmra.mxu0 %v5524
        %v5722 = vpop.f32.mrf.mxu0
        %v5723 = vadd.f32 %v5579, %v5722
        %v5724 = vpop.f32.mrf.mxu0
        %5725 = vmatprep.mubr.f32.mxu0 0.0
        %5726 = vmatmul.mubr.f32.gmra.mxu0 %v5525
        %v5727 = vpop.f32.mrf.mxu0
        %v5728 = vadd.f32 %v5584, %v5727
        %v5729 = vpop.f32.mrf.mxu0
        %5730 = vmatprep.mubr.f32.mxu0 0.0
        %5731 = vmatmul.mubr.f32.gmra.mxu0 %v5526
        %v5732 = vpop.f32.mrf.mxu0
        %v5733 = vadd.f32 %v5589, %v5732
        %v5734 = vpop.f32.mrf.mxu0
        %5735 = vmatprep.mubr.f32.mxu0 0.0
        %5736 = vmatmul.mubr.f32.gmra.mxu0 %v5527
        %v5737 = vpop.f32.mrf.mxu0
        %v5738 = vadd.f32 %v5594, %v5737
        %v5739 = vpop.f32.mrf.mxu0
        %5740 = vmatprep.mubr.f32.mxu0 0.0
        %5741 = vmatmul.mubr.f32.gmra.mxu0 %v5528
        %v5742 = vpop.f32.mrf.mxu0
        %v5743 = vadd.f32 %v5599, %v5742
        %v5744 = vpop.f32.mrf.mxu0
        %5745 = vmatprep.mubr.f32.mxu0 0.0
        %5746 = vmatmul.mubr.f32.gmra.mxu0 %v5529
        %v5747 = vpop.f32.mrf.mxu0
        %v5748 = vadd.f32 %v5604, %v5747
        %v5749 = vpop.f32.mrf.mxu0
        %5750 = vmatprep.mubr.f32.mxu0 0.0
        %5751 = vmatmul.mubr.f32.gmra.mxu0 %v5530
        %v5752 = vpop.f32.mrf.mxu0
        %v5753 = vadd.f32 %v5609, %v5752
        %v5754 = vpop.f32.mrf.mxu0
        %5755 = vmatprep.mubr.f32.mxu0 0.0
        %5756 = vmatmul.mubr.f32.gmra.mxu0 %v5531
        %v5757 = vpop.f32.mrf.mxu0
        %v5758 = vadd.f32 %v5614, %v5757
        %v5759 = vpop.f32.mrf.mxu0
        %5760 = vmatprep.mubr.f32.mxu0 0.0
        %5761 = vmatmul.mubr.f32.gmra.mxu0 %v5532
        %v5762 = vpop.f32.mrf.mxu0
        %v5763 = vadd.f32 %v5619, %v5762
        %v5764 = vpop.f32.mrf.mxu0
        %5765 = vmatprep.mubr.f32.mxu0 0.0
        %5766 = vmatmul.mubr.f32.gmra.mxu0 %v5533
        %v5767 = vpop.f32.mrf.mxu0
        %v5768 = vadd.f32 %v5624, %v5767
        %v5769 = vpop.f32.mrf.mxu0
        %5770 = vmatprep.mubr.f32.mxu0 0.0
        %5771 = vmatmul.mubr.f32.gmra.mxu0 %v5534
        %v5772 = vpop.f32.mrf.mxu0
        %v5773 = vadd.f32 %v5629, %v5772
        %v5774 = vpop.f32.mrf.mxu0
        %5775 = vdwg.mxu0
        %v5776 = vmax.f32 %v5698, 0.0
        %v5777 = vmax.f32 %v5703, 0.0
        %v5778 = vmax.f32 %v5708, 0.0
        %v5779 = vmax.f32 %v5713, 0.0
        %v5780 = vmax.f32 %v5718, 0.0
        %v5781 = vmax.f32 %v5723, 0.0
        %v5782 = vmax.f32 %v5728, 0.0
        %v5783 = vmax.f32 %v5733, 0.0
        %v5784 = vmax.f32 %v5738, 0.0
        %v5785 = vmax.f32 %v5743, 0.0
        %v5786 = vmax.f32 %v5748, 0.0
        %v5787 = vmax.f32 %v5753, 0.0
        %v5788 = vmax.f32 %v5758, 0.0
        %v5789 = vmax.f32 %v5763, 0.0
        %v5790 = vmax.f32 %v5768, 0.0
        %v5791 = vmax.f32 %v5773, 0.0
        %v5792 = vld [vmem:[#allocation8] sm:$0x1]
        %v5793 = vld [vmem:[#allocation2] sm:$0x1]
        %5795 = vset.pattern.permute.xlu0 0
        %5796 = vperm.xlu0 %5795, %v5793
        %v5797 = vpop.permute.xlu0 %5796
        %v5799 = vlaneseq
        %v5800 = vshrl.u32 %v5799, 7
        %v5801 = vsub.s32 0, %v5800
        %v5802 = vrot.slane %v5797, %v5801
        %5803 = vmatprep.subr.mxu0 0.0
        %5804 = vmatpush1.msra.mxu0 %v5791
        %5805 = vmatprep.subr.mxu0 0.0
        %5806 = vmatpush1.msra.mxu0 %v5790
        %5807 = vmatprep.subr.mxu0 0.0
        %5808 = vmatpush1.msra.mxu0 %v5789
        %5809 = vmatprep.subr.mxu0 0.0
        %5810 = vmatpush1.msra.mxu0 %v5788
        %5811 = vmatprep.subr.mxu0 0.0
        %5812 = vmatpush1.msra.mxu0 %v5787
        %5813 = vmatprep.subr.mxu0 0.0
        %5814 = vmatpush1.msra.mxu0 %v5786
        %5815 = vmatprep.subr.mxu0 0.0
        %5816 = vmatpush1.msra.mxu0 %v5785
        %5817 = vmatprep.subr.mxu0 0.0
        %5818 = vmatpush1.msra.mxu0 %v5784
        %5819 = vmatprep.subr.mxu0 0.0
        %5820 = vmatpush1.msra.mxu0 %v5783
        %5821 = vmatprep.subr.mxu0 0.0
        %5822 = vmatpush1.msra.mxu0 %v5782
        %5823 = vmatprep.subr.mxu0 0.0
        %5824 = vmatpush1.msra.mxu0 %v5781
        %5825 = vmatprep.subr.mxu0 0.0
        %5826 = vmatpush1.msra.mxu0 %v5780
        %5827 = vmatprep.subr.mxu0 0.0
        %5828 = vmatpush1.msra.mxu0 %v5779
        %5829 = vmatprep.subr.mxu0 0.0
        %5830 = vmatpush1.msra.mxu0 %v5778
        %5831 = vmatprep.subr.mxu0 0.0
        %5832 = vmatpush1.msra.mxu0 %v5777
        %5833 = vmatprep.subr.mxu0 0.0
        %5834 = vmatpush1.msra.mxu0 %v5776
        %5835 = vmatprep.subr.mxu0 0.0
        %5836 = vmatpush2.msra.mxu0 0.0
        %5837 = vmatprep.subr.mxu0 0.0
        %5838 = vmatpush2.msra.mxu0 0.0
        %5839 = vmatprep.subr.mxu0 0.0
        %5840 = vmatpush2.msra.mxu0 0.0
        %5841 = vmatprep.subr.mxu0 0.0
        %5842 = vmatpush2.msra.mxu0 0.0
        %5843 = vmatprep.subr.mxu0 0.0
        %5844 = vmatpush2.msra.mxu0 0.0
        %5845 = vmatprep.subr.mxu0 0.0
        %5846 = vmatpush2.msra.mxu0 0.0
        %5847 = vmatprep.subr.mxu0 0.0
        %5848 = vmatpush2.msra.mxu0 0.0
        %5849 = vmatprep.subr.mxu0 0.0
        %5850 = vmatpush2.msra.mxu0 0.0
        %5851 = vmatprep.subr.mxu0 0.0
        %5852 = vmatpush2.msra.mxu0 0.0
        %5853 = vmatprep.subr.mxu0 0.0
        %5854 = vmatpush2.msra.mxu0 0.0
        %5855 = vmatprep.subr.mxu0 0.0
        %5856 = vmatpush2.msra.mxu0 0.0
        %5857 = vmatprep.subr.mxu0 0.0
        %5858 = vmatpush2.msra.mxu0 0.0
        %5859 = vmatprep.subr.mxu0 0.0
        %5860 = vmatpush2.msra.mxu0 0.0
        %5861 = vmatprep.subr.mxu0 0.0
        %5862 = vmatpush2.msra.mxu0 0.0
        %5863 = vmatprep.subr.mxu0 0.0
        %5864 = vmatpush2.msra.mxu0 0.0
        %5865 = vmatprep.subr.mxu0 0.0
        %5866 = vmatpush2.msra.mxu0 0.0
        %5867 = vmatprep.mubr.f32.mxu0 0.0
        %5868 = vmatmul.mubr.f32.gmra.mxu0 %v5792
        %v5869 = vpop.f32.mrf.mxu0
        %v5870 = vadd.f32 %v5802, %v5869
        %v5871 = vpop.f32.mrf.mxu0
        %5872 = vdwg.mxu0
        %v5873 = vmax.f32 %v5870, 0.0
        %v5874 = vld [vmem:[#allocation9] sm:$0x7f]
        %v5875 = vld [vmem:[#allocation11] sm:$0x1]
        %vm5876 = vcmask 56320
        %v5878 = vsel %vm5876, %v5873, 0
        %vm5880 = vcmask 1046528
        %v5882 = vsel %vm5880, %v5874, 0
        %5884 = vmatprep.subr.mxu0 0.0
        %5885 = vmatpush1.msra.mxu0 0.0
        %5886 = vmatprep.subr.mxu0 0.0
        %5887 = vmatpush1.msra.mxu0 0.0
        %5888 = vmatprep.subr.mxu0 0.0
        %5889 = vmatpush1.msra.mxu0 0.0
        %5890 = vmatprep.subr.mxu0 0.0
        %5891 = vmatpush1.msra.mxu0 0.0
        %5892 = vmatprep.subr.mxu0 0.0
        %5893 = vmatpush1.msra.mxu0 0.0
        %5894 = vmatprep.subr.mxu0 0.0
        %5895 = vmatpush1.msra.mxu0 0.0
        %5896 = vmatprep.subr.mxu0 0.0
        %5897 = vmatpush1.msra.mxu0 0.0
        %5898 = vmatprep.subr.mxu0 0.0
        %5899 = vmatpush1.msra.mxu0 0.0
        %5900 = vmatprep.subr.mxu0 0.0
        %5901 = vmatpush1.msra.mxu0 0.0
        %5902 = vmatprep.subr.mxu0 0.0
        %5903 = vmatpush1.msra.mxu0 0.0
        %5904 = vmatprep.subr.mxu0 0.0
        %5905 = vmatpush1.msra.mxu0 0.0
        %5906 = vmatprep.subr.mxu0 0.0
        %5907 = vmatpush1.msra.mxu0 0.0
        %5908 = vmatprep.subr.mxu0 0.0
        %5909 = vmatpush1.msra.mxu0 0.0
        %5910 = vmatprep.subr.mxu0 0.0
        %5911 = vmatpush1.msra.mxu0 0.0
        %5912 = vmatprep.subr.mxu0 0.0
        %5913 = vmatpush1.msra.mxu0 0.0
        %5914 = vmatprep.subr.mxu0 0.0
        %5915 = vmatpush1.msra.mxu0 %v5882
        %5916 = vmatprep.subr.mxu0 0.0
        %5917 = vmatpush2.msra.mxu0 0.0
        %5918 = vmatprep.subr.mxu0 0.0
        %5919 = vmatpush2.msra.mxu0 0.0
        %5920 = vmatprep.subr.mxu0 0.0
        %5921 = vmatpush2.msra.mxu0 0.0
        %5922 = vmatprep.subr.mxu0 0.0
        %5923 = vmatpush2.msra.mxu0 0.0
        %5924 = vmatprep.subr.mxu0 0.0
        %5925 = vmatpush2.msra.mxu0 0.0
        %5926 = vmatprep.subr.mxu0 0.0
        %5927 = vmatpush2.msra.mxu0 0.0
        %5928 = vmatprep.subr.mxu0 0.0
        %5929 = vmatpush2.msra.mxu0 0.0
        %5930 = vmatprep.subr.mxu0 0.0
        %5931 = vmatpush2.msra.mxu0 0.0
        %5932 = vmatprep.subr.mxu0 0.0
        %5933 = vmatpush2.msra.mxu0 0.0
        %5934 = vmatprep.subr.mxu0 0.0
        %5935 = vmatpush2.msra.mxu0 0.0
        %5936 = vmatprep.subr.mxu0 0.0
        %5937 = vmatpush2.msra.mxu0 0.0
        %5938 = vmatprep.subr.mxu0 0.0
        %5939 = vmatpush2.msra.mxu0 0.0
        %5940 = vmatprep.subr.mxu0 0.0
        %5941 = vmatpush2.msra.mxu0 0.0
        %5942 = vmatprep.subr.mxu0 0.0
        %5943 = vmatpush2.msra.mxu0 0.0
        %5944 = vmatprep.subr.mxu0 0.0
        %5945 = vmatpush2.msra.mxu0 0.0
        %5946 = vmatprep.subr.mxu0 0.0
        %5947 = vmatpush2.msra.mxu0 0.0
        %5948 = vmatprep.mubr.f32.mxu0 0.0
        %5949 = vmatmul.mubr.f32.gmra.mxu0 %v5878
        %v5950 = vpop.f32.mrf.mxu0
        %v5951 = vadd.f32 %v5875, %v5950
        %v5952 = vpop.f32.mrf.mxu0
        %5953 = vdwg.mxu0
        %vm5954 = vcmask 57344
        %v5955 = vsel %vm5954, %v5951, -inf
        %5956 = vmax.xlane.f32.xlu0 %v5955
        %v5957 = vpop.xlane.xlu0 %5956
        %v5958 = vsub.f32 %v5951, %v5957
        %v5959 = vmul.f32 %v5958, 1.442695
        %v5960 = vpow.pop %v5959
        %v5961 = vsel %vm5954, %v5960, 0.0
        %5962 = vadd.xlane.f32.xlu0 %v5961
        %v5963 = vpop.xlane.xlu0 %5962
        %v5964 = vrcp.pop %v5963
        %v5965 = vmul.f32 %v5960, %v5964
        %5966 = vst.msk [vmem:[%s601] sm:$0x1] %vm5954, %v5965
        %s5967 = sand.u32 %s369, 1
        %s5968 = scalar_lea.sflag [#allocation5], %s5967
        %s5969 = sand.u32 %s369, 1
        %s5970 = smul.addr %s5969, 1280
        %s5971 = scalar_lea.vmem [#allocation12], %s5970
        %s5972 = sand.u32 %s395, 1
        %s5973 = scalar_lea.sflag [#allocation14], %s5972
        %s5974 = sand.u32 %s395, 1
        %s5975 = scalar_lea.vmem [#allocation13], %s5974
        // Predicated region
        $region101: #{wavenet_forward.1} parent=79 // pred_check
          %p5976 = pneg %p379
        $region102: #{wavenet_forward.1} parent=79 // pred_check_branch
          %5978 = sbr.rel (%p5976) target = $region104
        $region103: #{wavenet_forward.1} parent=79 // pred_region
          %s5980 = ssub.s32 20480, 20480
          %5981 = vsyncadd %s5968, %s5980
          %s5982 = smul.addr %s41, 160
          %s5983 = smul.addr %s5982, 128
          %s5984 = scalar_lea.hbm %s15, %s5983
          %s5985 = sshll.u32 %s5971, 4
          %s5986 = int_to_ptr.vmem [resolvable:$true] %s5985
          %5991 = dma.vmem_to_hbm [thread:$0]  %s5986, 20480, %s5984, %s5968, 640, 640, 40
        $region104: #{wavenet_forward.1} parent=79 // pred_fallthru
          _
        // Predicated region
        $region105: #{wavenet_forward.1} parent=79 // pred_check
          %p5992 = pneg %p405
        $region106: #{wavenet_forward.1} parent=79 // pred_check_branch
          %5994 = sbr.rel (%p5992) target = $region108
        $region107: #{wavenet_forward.1} parent=79 // pred_region
          %s5996 = ssub.s32 16, 16
          %5997 = vsyncadd %s5973, %s5996
          %s5998 = smul.addr %s41, 16
          %s5999 = scalar_lea.hbm %s16, %s5998
          %s6001 = sshll.u32 %s5975, 4
          %s6002 = int_to_ptr.vmem [resolvable:$true] %s6001
          %6004 = dma.vmem_to_hbm [thread:$0]  %s6002, 16, %s5999, %s5973
        $region108: #{wavenet_forward.1} parent=79 // pred_fallthru
          _
      $region80: #{wavenet_forward.1} parent=5 // pred_fallthru
        _
      %p6005 = scmp.le.s32.totalorder 2, %s36
      // Predicated region
      $region109: #{wavenet_forward.1} parent=5 // pred_check
        %p6006 = pneg %p6005
      $region110: #{wavenet_forward.1} parent=5 // pred_check_branch
        %6008 = sbr.rel (%p6006) target = $region112
      $region111: #{wavenet_forward.1} parent=5 // pred_region
        %s6009 = ssub.s32 %s36, 2
        // Predicated region
        $region113: #{wavenet_forward.1} parent=111 // pred_check
          %p6010 = pneg %p385
        $region114: #{wavenet_forward.1} parent=111 // pred_check_branch
          %6012 = sbr.rel (%p6010) target = $region116
        $region115: #{wavenet_forward.1} parent=111 // pred_region
          %s6013 = sand.u32 %s370, 1
          %s6014 = scalar_lea.sflag [#allocation5], %s6013
          %s6015 = sand.u32 %s370, 1
          %s6016 = smul.addr %s6015, 1280
          %s6017 = scalar_lea.vmem [#allocation12], %s6016
          %6018 = dma.done %s6014, 20480
        $region116: #{wavenet_forward.1} parent=111 // pred_fallthru
          _
        // Predicated region
        $region117: #{wavenet_forward.1} parent=111 // pred_check
          %p6019 = pneg %p411
        $region118: #{wavenet_forward.1} parent=111 // pred_check_branch
          %6021 = sbr.rel (%p6019) target = $region120
        $region119: #{wavenet_forward.1} parent=111 // pred_region
          %s6022 = sand.u32 %s396, 1
          %s6023 = scalar_lea.sflag [#allocation14], %s6022
          %s6024 = sand.u32 %s396, 1
          %s6025 = scalar_lea.vmem [#allocation13], %s6024
          %6026 = dma.done %s6023, 16
        $region120: #{wavenet_forward.1} parent=111 // pred_fallthru
          _
      $region112: #{wavenet_forward.1} parent=5 // pred_fallthru
        _
    $region6: #{wavenet_forward.1} parent=1 // loop_footer
      %s40 = sadd.s32 1, %s36
    $region7: #{wavenet_forward.1} parent=1 // loop_footer_branch
      %35 = sbr.rel target = $region3
    $region8: #{wavenet_forward.1} parent=1 // loop_exit
      _
    %6027 = vsyncpa [#allocation4], 1
    %s6028 = scalar_lea.sflag [#allocation4], 1
    %6029 = vsyncpa %s6028, 1
    %6030 = vsyncpa [#allocation7], 1
    %6031 = vsyncpa [#allocation10], 1
    %6032 = vsyncpa [#allocation5], 1
    %s6033 = scalar_lea.sflag [#allocation5], 1
    %6034 = vsyncpa %s6033, 1
    %6035 = vsyncpa [#allocation14], 1
    %s6036 = scalar_lea.sflag [#allocation14], 1
    %6037 = vsyncpa %s6036, 1

</llo_original>
